<compile_context>
chip_gen: v6e
topology: v6e:2x2x1
jax: 0.10.0
libtpu: 0.0.40
codegen_flags: <defaults>
</compile_context>

<pallas_src>
import functools
import itertools

import numpy as np
import jax
import jax.numpy as jnp
from jax.experimental import pallas as pl
from jax.experimental.pallas import tpu as pltpu

# module configuration (args): model='bounded_stn', grid 4x4, span 0.9,
# image 28x28 (28x28 is required by the CNN's hard-coded 320-dim flatten).
GRID_H = 4
GRID_W = 4
SPAN = 0.9
IMG_H = 28
IMG_W = 28

CH_PAD = 128          # conv output channels padded onto lanes


def _round_up(x, m):
    return (x + m - 1) // m * m


# ----------------------------- Pallas kernels ------------------------------

def _conv_pool_kernel(p_ref, w_ref, b_ref, o_ref):
    """Fused conv (as patch matmul) + bias + ReLU + 2x2 maxpool.

    p_ref : (4, tm, Kp) bf16  -- patch matrices for the 4 pooled positions
    w_ref : (Kp, 128)   bf16  -- (kh,kw,c)-ordered conv weight, zero-padded
    b_ref : (1, 128)    f32
    o_ref : (tm, 128)   f32   -- pooled+ReLU conv output, channels on lanes
    """
    w = w_ref[...]
    acc = jnp.dot(p_ref[0], w, preferred_element_type=jnp.float32)
    for s in range(1, 4):
        acc = jnp.maximum(acc, jnp.dot(p_ref[s], w, preferred_element_type=jnp.float32))
    o_ref[...] = jnp.maximum(acc + b_ref[...], 0.0)


def conv_pool_relu(p4, w, b, tm):
    _, Mp, Kp = p4.shape
    N = w.shape[1]
    return pl.pallas_call(
        _conv_pool_kernel,
        out_shape=jax.ShapeDtypeStruct((Mp, N), jnp.float32),
        grid=(Mp // tm,),
        in_specs=[pl.BlockSpec((4, tm, Kp), lambda i: (0, i, 0)),
                  pl.BlockSpec((Kp, N), lambda i: (0, 0)),
                  pl.BlockSpec((1, N), lambda i: (0, 0))],
        out_specs=pl.BlockSpec((tm, N), lambda i: (i, 0)),
        compiler_params=pltpu.CompilerParams(dimension_semantics=("parallel",)),
    )(p4, w, b)


def _fc_head_kernel(act, n_valid, x_ref, w1_ref, b1_ref, w2_ref, b2_ref, o_ref):
    """Fused fc1 + ReLU + fc2 (+ tanh or masked log_softmax), padded to 128 cols."""
    h = jnp.dot(x_ref[...], w1_ref[...], preferred_element_type=jnp.float32)
    h = jnp.maximum(h + b1_ref[...], 0.0)
    out = jnp.dot(h.astype(jnp.bfloat16), w2_ref[...], preferred_element_type=jnp.float32)
    out = out + b2_ref[...]
    if act == "tanh":
        out = jnp.tanh(out)                       # padded cols: tanh(0) = 0, sliced off later
    elif act == "log_softmax":                    # row-wise, only the first n_valid cols count
        cols = jax.lax.broadcasted_iota(jnp.int32, out.shape, 1)
        valid = cols < n_valid
        masked = jnp.where(valid, out, -jnp.inf)
        m = jnp.max(masked, axis=1, keepdims=True)
        s = out - m
        denom = jnp.sum(jnp.where(valid, jnp.exp(s), 0.0), axis=1, keepdims=True)
        out = s - jnp.log(denom)
    o_ref[...] = out


def fc_head(x, w1, b1, w2, b2, act, n_valid, tm):
    Bp, K = x.shape
    N = w2.shape[1]
    return pl.pallas_call(
        functools.partial(_fc_head_kernel, act, n_valid),
        out_shape=jax.ShapeDtypeStruct((Bp, N), jnp.float32),
        grid=(Bp // tm,),
        in_specs=[pl.BlockSpec((tm, K), lambda i: (i, 0)),
                  pl.BlockSpec((K, w1.shape[1]), lambda i: (0, 0)),
                  pl.BlockSpec((1, w1.shape[1]), lambda i: (0, 0)),
                  pl.BlockSpec((w2.shape[0], N), lambda i: (0, 0)),
                  pl.BlockSpec((1, N), lambda i: (0, 0))],
        out_specs=pl.BlockSpec((tm, N), lambda i: (i, 0)),
        compiler_params=pltpu.CompilerParams(dimension_semantics=("parallel",)),
    )(x, w1, b1, w2, b2)


def _tps_sample_kernel(img_h, img_w, tt_ref, cp_ref, xt_ref, o_ref):
    """Fused TPS grid generation + bilinear grid_sample (zeros pad, align_corners=True).

    tt_ref : (N, P)  f32  -- precomputed ((tcr @ inv_kernel)[:, :N]).T
    cp_ref : (1, 2, N) f32 -- source control points, rows (x; y)
    xt_ref : (1, W, H) f32 -- spatially transposed input image
    o_ref  : (1, 1, P) f32 -- sampled image, P = H*W lane-dense
    """
    coord = jnp.dot(cp_ref[0], tt_ref[...], preferred_element_type=jnp.float32)   # (2, P)
    P = coord.shape[1]
    ix = (coord[0:1, :] + 1.0) * (0.5 * (img_w - 1))                               # (1, P)
    iy = (coord[1:2, :] + 1.0) * (0.5 * (img_h - 1))
    rows = jax.lax.broadcasted_iota(jnp.int32, (img_h, P), 0).astype(jnp.float32)
    cols = jax.lax.broadcasted_iota(jnp.int32, (img_w, P), 0).astype(jnp.float32)
    wy = jnp.maximum(1.0 - jnp.abs(iy - rows), 0.0)                                # (H, P)
    wx = jnp.maximum(1.0 - jnp.abs(ix - cols), 0.0)                                # (W, P)
    t = jnp.dot(xt_ref[0], wy, preferred_element_type=jnp.float32)                 # (W, P)
    ones_row = jnp.ones((1, img_w), jnp.float32)
    o_ref[0] = jnp.dot(ones_row, wx * t, preferred_element_type=jnp.float32)       # (1, P)


def tps_grid_sample(x, cp_t, tt):
    # x: (B, 1, H, W), cp_t: (B, 2, N), tt: (N, H*W) -> (B, 1, H*W)
    B, _, H, W = x.shape
    P = H * W
    N = tt.shape[0]
    xt = jnp.swapaxes(x[:, 0], 1, 2)                     # (B, W, H)
    return pl.pallas_call(
        functools.partial(_tps_sample_kernel, H, W),
        out_shape=jax.ShapeDtypeStruct((B, 1, P), jnp.float32),
        grid=(B,),
        in_specs=[pl.BlockSpec((N, P), lambda b: (0, 0)),
                  pl.BlockSpec((1, 2, N), lambda b: (b, 0, 0)),
                  pl.BlockSpec((1, W, H), lambda b: (b, 0, 0))],
        out_specs=pl.BlockSpec((1, 1, P), lambda b: (b, 0, 0)),
        compiler_params=pltpu.CompilerParams(dimension_semantics=("parallel",)),
    )(tt, cp_t, xt)


# ------------------------------- JAX glue ----------------------------------

def _pooled_patches(xcl, k, k_pad, tm_cap=512):
    """Channels-last im2col grouped by 2x2 pool position.

    xcl: (B, H, W, C) -> (4, Mp, k_pad) bf16 with rows ordered (b, ph, pw),
    columns ordered (kh, kw, c) to match the host-reordered conv weight.
    """
    B, H, W, C = xcl.shape
    OH, OW = H - k + 1, W - k + 1
    PH, PW = OH // 2, OW // 2
    slabs = [xcl[:, dh:dh + OH, dw:dw + OW, :] for dh in range(k) for dw in range(k)]
    pat = jnp.concatenate(slabs, axis=-1)                              # (B, OH, OW, k*k*C)
    groups = [pat[:, dy::2, dx::2, :].reshape(B * PH * PW, k * k * C)
              for dy in range(2) for dx in range(2)]
    p4 = jnp.stack(groups, axis=0)                                     # (4, M, K)
    K = k * k * C
    M = B * PH * PW
    tm = min(tm_cap, _round_up(M, 8))
    Mp = _round_up(M, tm)
    p4 = jnp.pad(p4, ((0, 0), (0, Mp - M), (0, k_pad - K)))
    return p4.astype(jnp.bfloat16), PH, PW, M, tm


def cnn_forward(xcl, params, act, n_out):
    """CNN.forward on a channels-last (B, 28, 28, 1) input. Dropout = identity (eval)."""
    B = xcl.shape[0]
    w1, b1, w2, b2, wf1, bf1, wf2, bf2 = params

    p1, ph1, pw1, m1, tm1 = _pooled_patches(xcl, 5, 128)               # (4, B*144, 128)
    h1 = conv_pool_relu(p1, w1, b1, tm1)                               # (M1p, 128)
    h1 = h1[:m1].reshape(B, ph1, pw1, CH_PAD)[..., :10]                # (B, 12, 12, 10)

    p2, ph2, pw2, m2, tm2 = _pooled_patches(h1, 5, 256)                # (4, B*16, 256)
    h2 = conv_pool_relu(p2, w2, b2, tm2)                               # (M2p, 128)
    h2 = h2[:m2].reshape(B, ph2, pw2, CH_PAD)[..., :20]                # (B, 4, 4, 20)
    feat = h2.reshape(B, 320)                                          # (h, w, c) order

    bp = _round_up(B, 8)
    tm_b = min(512, bp)
    bp = _round_up(bp, tm_b)
    featp = jnp.pad(feat, ((0, bp - B), (0, 0))).astype(jnp.bfloat16)
    out = fc_head(featp, wf1, bf1, wf2, bf2, act, n_out, tm_b)         # (bp, 128)
    return out[:B, :n_out]


def stn_forward(x, loc_params, cls_params, tt):
    B = x.shape[0]
    xcl = jnp.transpose(x, (0, 2, 3, 1))                               # (B, 28, 28, 1)
    # BoundedGridLocNet: points = tanh(cnn(x)) -> (B, N, 2)
    points = cnn_forward(xcl, loc_params, "tanh", GRID_H * GRID_W * 2)
    cp = points.reshape(B, GRID_H * GRID_W, 2)
    cp_t = jnp.transpose(cp, (0, 2, 1))                                # (B, 2, N) rows (x; y)
    sampled = tps_grid_sample(x, cp_t, tt)                             # (B, 1, 784)
    xs_cl = sampled.reshape(B, IMG_H, IMG_W, 1)                        # channels-last directly
    logit = cnn_forward(xs_cl, cls_params, "log_softmax", 10)
    return logit


# --------------------------- host-side parameter prep ----------------------

def compute_partial_repr(a, b):
    d = a[:, None, :] - b[None, :, :]
    d2 = (d ** 2).sum(-1)
    with np.errstate(divide="ignore", invalid="ignore"):
        r = 0.5 * d2 * np.log(d2)
    r[~np.isfinite(r)] = 0.0
    return r


def build_tps_mapping(image_h, image_w, tcp):
    """Precompute T = (target_repr @ inv_kernel)[:, :N], transposed, as (N, H*W) f32."""
    N = tcp.shape[0]
    tcp64 = tcp.astype(np.float64)
    fk = np.zeros((N + 3, N + 3), np.float64)
    fk[:N, :N] = compute_partial_repr(tcp64, tcp64)
    fk[:N, N] = 1.0
    fk[N, :N] = 1.0
    fk[:N, N + 1:] = tcp64
    fk[N + 1:, :N] = tcp64.T
    inv_k = np.linalg.inv(fk)
    coords = np.array(list(itertools.product(range(image_h), range(image_w))), np.float64)
    Y = coords[:, 0:1] * 2.0 / (image_h - 1) - 1.0
    X = coords[:, 1:2] * 2.0 / (image_w - 1) - 1.0
    tc = np.concatenate([X, Y], axis=1)                                # (HW, 2) as (x, y)
    pr = compute_partial_repr(tc, tcp64)                               # (HW, N)
    tcr = np.concatenate([pr, np.ones((tc.shape[0], 1)), tc], axis=1)  # (HW, N+3)
    t_full = tcr @ inv_k                                               # (HW, N+3)
    tt = t_full[:, :N].T.astype(np.float32)                            # (N, HW); Y pad rows are 0
    return jnp.asarray(tt)


def init_cnn_params(key, num_output, fc2_weight=None, fc2_bias=None):
    ks = jax.random.split(key, 8)

    def u(k, shape, fan_in):
        bound = 1.0 / np.sqrt(fan_in)
        return jax.random.uniform(k, shape, jnp.float32, -bound, bound)

    w1 = u(ks[0], (10, 1, 5, 5), 25);   b1 = u(ks[1], (10,), 25)
    w2 = u(ks[2], (20, 10, 5, 5), 250); b2 = u(ks[3], (20,), 250)
    wf1 = u(ks[4], (50, 320), 320);     bf1 = u(ks[5], (50,), 320)
    wf2 = u(ks[6], (num_output, 50), 50) if fc2_weight is None else jnp.asarray(fc2_weight)
    bf2 = u(ks[7], (num_output,), 50) if fc2_bias is None else jnp.asarray(fc2_bias)
    return (w1, b1, w2, b2, wf1, bf1, wf2, bf2)


def prepare_cnn_params(raw):
    """Reorder / pad PyTorch-layout weights once on the host (bf16 matmul operands)."""
    w1, b1, w2, b2, wf1, bf1, wf2, bf2 = raw

    def pad2(a, r, c):
        return jnp.pad(a, ((0, r - a.shape[0]), (0, c - a.shape[1])))

    # conv weights -> columns ordered (kh, kw, c) to match the patch layout
    w1m = jnp.transpose(w1, (2, 3, 1, 0)).reshape(25, 10)
    w1p = pad2(w1m, 128, CH_PAD).astype(jnp.bfloat16)
    b1p = jnp.pad(b1, (0, CH_PAD - 10)).reshape(1, CH_PAD).astype(jnp.float32)

    w2m = jnp.transpose(w2, (2, 3, 1, 0)).reshape(250, 20)
    w2p = pad2(w2m, 256, CH_PAD).astype(jnp.bfloat16)
    b2p = jnp.pad(b2, (0, CH_PAD - 20)).reshape(1, CH_PAD).astype(jnp.float32)

    # fc1: PyTorch flatten is (c, h, w); our channels-last flatten is (h, w, c) -> permute cols
    wf1m = jnp.transpose(wf1.reshape(-1, 20, 4, 4), (0, 2, 3, 1)).reshape(-1, 320).T
    wf1p = pad2(wf1m, 320, 128).astype(jnp.bfloat16)
    bf1p = jnp.pad(bf1, (0, 128 - bf1.shape[0])).reshape(1, 128).astype(jnp.float32)

    n_out = wf2.shape[0]
    wf2p = pad2(wf2.T, 128, 128).astype(jnp.bfloat16)
    bf2p = jnp.pad(bf2, (0, 128 - n_out)).reshape(1, 128).astype(jnp.float32)
    return (w1p, b1p, w2p, b2p, wf1p, bf1p, wf2p, bf2p)


if __name__ == "__main__":
    B = 2

    # target_control_points exactly as STNClsNet.__init__ builds them.
    ys = np.arange(-SPAN, SPAN + 1e-5, 2.0 * SPAN / (GRID_H - 1))
    xs = np.arange(-SPAN, SPAN + 1e-5, 2.0 * SPAN / (GRID_W - 1))
    pts = np.array(list(itertools.product(ys, xs)), np.float32)        # (N, 2) as (y, x)
    tcp = np.stack([pts[:, 1], pts[:, 0]], axis=1).astype(np.float32)  # cat([X, Y]) -> (x, y)

    tt = build_tps_mapping(IMG_H, IMG_W, tcp)                          # (16, 784)

    key = jax.random.PRNGKey(0)
    k_loc, k_cls, k_x = jax.random.split(key, 3)
    # BoundedGridLocNet: fc2.weight zeroed, fc2.bias = arctanh(target control points)
    loc_raw = init_cnn_params(
        k_loc, GRID_H * GRID_W * 2,
        fc2_weight=np.zeros((GRID_H * GRID_W * 2, 50), np.float32),
        fc2_bias=np.arctanh(tcp).reshape(-1).astype(np.float32))
    cls_raw = init_cnn_params(k_cls, 10)
    loc_params = prepare_cnn_params(loc_raw)
    cls_params = prepare_cnn_params(cls_raw)

    x = jax.random.uniform(k_x, (B, 1, IMG_H, IMG_W), jnp.float32)

    fwd = jax.jit(stn_forward)
    logit = jax.block_until_ready(fwd(x, loc_params, cls_params, tt))
    assert logit.shape == (B, 10)
    assert bool(jnp.all(jnp.isfinite(logit)))
    print("KERNEL_OK")
</pallas_src>

<mosaic_0001>
module attributes {stable_mosaic.version = 11 : i64} {
  func.func @_conv_pool_kernel(%arg0: i32, %arg1: memref<4x288x128xbf16, #tpu.memory_space<vmem>>, %arg2: memref<128x128xbf16, #tpu.memory_space<vmem>>, %arg3: memref<1x128xf32, #tpu.memory_space<vmem>>, %arg4: memref<288x128xf32, #tpu.memory_space<vmem>>) attributes {dimension_semantics = [#tpu.dimension_semantics<parallel>], iteration_bounds = array<i64: 1>, scalar_prefetch = 0 : i64, scratch_operands = 0 : i64, tpu.core_type = #tpu.core_type<tc>, window_params = [{transform_indices = @transform_0, window_bounds = array<i64: 4, 288, 128>}, {pipeline_mode = #tpu.pipeline_mode<synchronous>, transform_indices = @transform_1, window_bounds = array<i64: 128, 128>}, {pipeline_mode = #tpu.pipeline_mode<synchronous>, transform_indices = @transform_2, window_bounds = array<i64: 1, 128>}, {transform_indices = @transform_3, window_bounds = array<i64: 288, 128>}]} {
    %c0 = arith.constant 0 : index
    %c0_0 = arith.constant 0 : index
    %0 = vector.load %arg2[%c0, %c0_0] : memref<128x128xbf16, #tpu.memory_space<vmem>>, vector<128x128xbf16>
    %c0_1 = arith.constant 0 : index
    %c0_2 = arith.constant 0 : index
    %c0_3 = arith.constant 0 : index
    %1 = vector.load %arg1[%c0_1, %c0_2, %c0_3] : memref<4x288x128xbf16, #tpu.memory_space<vmem>>, vector<1x288x128xbf16>
    %2 = vector.shape_cast %1 : vector<1x288x128xbf16> to vector<288x128xbf16>
    %cst = arith.constant dense<0.000000e+00> : vector<288x128xf32>
    %3 = tpu.matmul %2, %0, %cst {dimension_numbers = #tpu.dot_dimension_numbers<[1], [0], [0], [1], [0, 0, 1, 1], [], []>} : vector<288x128xbf16>, vector<128x128xbf16>, vector<288x128xf32> -> vector<288x128xf32>
    %c1 = arith.constant 1 : index
    %c0_4 = arith.constant 0 : index
    %c0_5 = arith.constant 0 : index
    %4 = vector.load %arg1[%c1, %c0_4, %c0_5] : memref<4x288x128xbf16, #tpu.memory_space<vmem>>, vector<1x288x128xbf16>
    %5 = vector.shape_cast %4 : vector<1x288x128xbf16> to vector<288x128xbf16>
    %cst_6 = arith.constant dense<0.000000e+00> : vector<288x128xf32>
    %6 = tpu.matmul %5, %0, %cst_6 {dimension_numbers = #tpu.dot_dimension_numbers<[1], [0], [0], [1], [0, 0, 1, 1], [], []>} : vector<288x128xbf16>, vector<128x128xbf16>, vector<288x128xf32> -> vector<288x128xf32>
    %7 = arith.maximumf %3, %6 : vector<288x128xf32>
    %c2 = arith.constant 2 : index
    %c0_7 = arith.constant 0 : index
    %c0_8 = arith.constant 0 : index
    %8 = vector.load %arg1[%c2, %c0_7, %c0_8] : memref<4x288x128xbf16, #tpu.memory_space<vmem>>, vector<1x288x128xbf16>
    %9 = vector.shape_cast %8 : vector<1x288x128xbf16> to vector<288x128xbf16>
    %cst_9 = arith.constant dense<0.000000e+00> : vector<288x128xf32>
    %10 = tpu.matmul %9, %0, %cst_9 {dimension_numbers = #tpu.dot_dimension_numbers<[1], [0], [0], [1], [0, 0, 1, 1], [], []>} : vector<288x128xbf16>, vector<128x128xbf16>, vector<288x128xf32> -> vector<288x128xf32>
    %11 = arith.maximumf %7, %10 : vector<288x128xf32>
    %c3 = arith.constant 3 : index
    %c0_10 = arith.constant 0 : index
    %c0_11 = arith.constant 0 : index
    %12 = vector.load %arg1[%c3, %c0_10, %c0_11] : memref<4x288x128xbf16, #tpu.memory_space<vmem>>, vector<1x288x128xbf16>
    %13 = vector.shape_cast %12 : vector<1x288x128xbf16> to vector<288x128xbf16>
    %cst_12 = arith.constant dense<0.000000e+00> : vector<288x128xf32>
    %14 = tpu.matmul %13, %0, %cst_12 {dimension_numbers = #tpu.dot_dimension_numbers<[1], [0], [0], [1], [0, 0, 1, 1], [], []>} : vector<288x128xbf16>, vector<128x128xbf16>, vector<288x128xf32> -> vector<288x128xf32>
    %15 = arith.maximumf %11, %14 : vector<288x128xf32>
    %c0_13 = arith.constant 0 : index
    %c0_14 = arith.constant 0 : index
    %16 = vector.load %arg3[%c0_13, %c0_14] : memref<1x128xf32, #tpu.memory_space<vmem>>, vector<1x128xf32>
    %17 = vector.broadcast %16 : vector<1x128xf32> to vector<288x128xf32>
    %18 = arith.addf %15, %17 : vector<288x128xf32>
    %cst_15 = arith.constant 0.000000e+00 : f32
    %19 = vector.broadcast %cst_15 : f32 to vector<288x128xf32>
    %20 = arith.maximumf %18, %19 : vector<288x128xf32>
    %c0_16 = arith.constant 0 : index
    %c0_17 = arith.constant 0 : index
    %21 = vector.load %arg4[%c0_16, %c0_17] : memref<288x128xf32, #tpu.memory_space<vmem>>, vector<288x128xf32>
    tpu.vector_store %arg4[%c0_16, %c0_17], %20 {strides = array<i32>} : memref<288x128xf32, #tpu.memory_space<vmem>>, vector<288x128xf32>,
    return
  }
  func.func @transform_0(%arg0: i32) -> (i32, i32, i32) {
    %c0_i32 = arith.constant 0 : i32
    %c0_i32_0 = arith.constant 0 : i32
    %c0_i32_1 = arith.constant 0 : i32
    return %c0_i32, %arg0, %c0_i32_0 : i32, i32, i32
  }
  func.func @transform_1(%arg0: i32) -> (i32, i32) {
    %c0_i32 = arith.constant 0 : i32
    %c0_i32_0 = arith.constant 0 : i32
    %c0_i32_1 = arith.constant 0 : i32
    return %c0_i32, %c0_i32_0 : i32, i32
  }
  func.func @transform_2(%arg0: i32) -> (i32, i32) {
    %c0_i32 = arith.constant 0 : i32
    %c0_i32_0 = arith.constant 0 : i32
    %c0_i32_1 = arith.constant 0 : i32
    return %c0_i32, %c0_i32_0 : i32, i32
  }
  func.func @transform_3(%arg0: i32) -> (i32, i32) {
    %c0_i32 = arith.constant 0 : i32
    %c0_i32_0 = arith.constant 0 : i32
    return %arg0, %c0_i32 : i32, i32
  }
}

module attributes {stable_mosaic.version = 11 : i64} {
  func.func @_conv_pool_kernel(%arg0: i32, %arg1: memref<4x32x256xbf16, #tpu.memory_space<vmem>>, %arg2: memref<256x128xbf16, #tpu.memory_space<vmem>>, %arg3: memref<1x128xf32, #tpu.memory_space<vmem>>, %arg4: memref<32x128xf32, #tpu.memory_space<vmem>>) attributes {dimension_semantics = [#tpu.dimension_semantics<parallel>], iteration_bounds = array<i64: 1>, scalar_prefetch = 0 : i64, scratch_operands = 0 : i64, tpu.core_type = #tpu.core_type<tc>, window_params = [{transform_indices = @transform_0, window_bounds = array<i64: 4, 32, 256>}, {pipeline_mode = #tpu.pipeline_mode<synchronous>, transform_indices = @transform_1, window_bounds = array<i64: 256, 128>}, {pipeline_mode = #tpu.pipeline_mode<synchronous>, transform_indices = @transform_2, window_bounds = array<i64: 1, 128>}, {transform_indices = @transform_3, window_bounds = array<i64: 32, 128>}]} {
    %c0 = arith.constant 0 : index
    %c0_0 = arith.constant 0 : index
    %0 = vector.load %arg2[%c0, %c0_0] : memref<256x128xbf16, #tpu.memory_space<vmem>>, vector<256x128xbf16>
    %c0_1 = arith.constant 0 : index
    %c0_2 = arith.constant 0 : index
    %c0_3 = arith.constant 0 : index
    %1 = vector.load %arg1[%c0_1, %c0_2, %c0_3] : memref<4x32x256xbf16, #tpu.memory_space<vmem>>, vector<1x32x256xbf16>
    %2 = vector.shape_cast %1 : vector<1x32x256xbf16> to vector<32x256xbf16>
    %cst = arith.constant dense<0.000000e+00> : vector<32x128xf32>
    %3 = tpu.matmul %2, %0, %cst {dimension_numbers = #tpu.dot_dimension_numbers<[1], [0], [0], [1], [0, 0, 1, 1], [], []>} : vector<32x256xbf16>, vector<256x128xbf16>, vector<32x128xf32> -> vector<32x128xf32>
    %c1 = arith.constant 1 : index
    %c0_4 = arith.constant 0 : index
    %c0_5 = arith.constant 0 : index
    %4 = vector.load %arg1[%c1, %c0_4, %c0_5] : memref<4x32x256xbf16, #tpu.memory_space<vmem>>, vector<1x32x256xbf16>
    %5 = vector.shape_cast %4 : vector<1x32x256xbf16> to vector<32x256xbf16>
    %cst_6 = arith.constant dense<0.000000e+00> : vector<32x128xf32>
    %6 = tpu.matmul %5, %0, %cst_6 {dimension_numbers = #tpu.dot_dimension_numbers<[1], [0], [0], [1], [0, 0, 1, 1], [], []>} : vector<32x256xbf16>, vector<256x128xbf16>, vector<32x128xf32> -> vector<32x128xf32>
    %7 = arith.maximumf %3, %6 : vector<32x128xf32>
    %c2 = arith.constant 2 : index
    %c0_7 = arith.constant 0 : index
    %c0_8 = arith.constant 0 : index
    %8 = vector.load %arg1[%c2, %c0_7, %c0_8] : memref<4x32x256xbf16, #tpu.memory_space<vmem>>, vector<1x32x256xbf16>
    %9 = vector.shape_cast %8 : vector<1x32x256xbf16> to vector<32x256xbf16>
    %cst_9 = arith.constant dense<0.000000e+00> : vector<32x128xf32>
    %10 = tpu.matmul %9, %0, %cst_9 {dimension_numbers = #tpu.dot_dimension_numbers<[1], [0], [0], [1], [0, 0, 1, 1], [], []>} : vector<32x256xbf16>, vector<256x128xbf16>, vector<32x128xf32> -> vector<32x128xf32>
    %11 = arith.maximumf %7, %10 : vector<32x128xf32>
    %c3 = arith.constant 3 : index
    %c0_10 = arith.constant 0 : index
    %c0_11 = arith.constant 0 : index
    %12 = vector.load %arg1[%c3, %c0_10, %c0_11] : memref<4x32x256xbf16, #tpu.memory_space<vmem>>, vector<1x32x256xbf16>
    %13 = vector.shape_cast %12 : vector<1x32x256xbf16> to vector<32x256xbf16>
    %cst_12 = arith.constant dense<0.000000e+00> : vector<32x128xf32>
    %14 = tpu.matmul %13, %0, %cst_12 {dimension_numbers = #tpu.dot_dimension_numbers<[1], [0], [0], [1], [0, 0, 1, 1], [], []>} : vector<32x256xbf16>, vector<256x128xbf16>, vector<32x128xf32> -> vector<32x128xf32>
    %15 = arith.maximumf %11, %14 : vector<32x128xf32>
    %c0_13 = arith.constant 0 : index
    %c0_14 = arith.constant 0 : index
    %16 = vector.load %arg3[%c0_13, %c0_14] : memref<1x128xf32, #tpu.memory_space<vmem>>, vector<1x128xf32>
    %17 = vector.broadcast %16 : vector<1x128xf32> to vector<32x128xf32>
    %18 = arith.addf %15, %17 : vector<32x128xf32>
    %cst_15 = arith.constant 0.000000e+00 : f32
    %19 = vector.broadcast %cst_15 : f32 to vector<32x128xf32>
    %20 = arith.maximumf %18, %19 : vector<32x128xf32>
    %c0_16 = arith.constant 0 : index
    %c0_17 = arith.constant 0 : index
    %21 = vector.load %arg4[%c0_16, %c0_17] : memref<32x128xf32, #tpu.memory_space<vmem>>, vector<32x128xf32>
    tpu.vector_store %arg4[%c0_16, %c0_17], %20 {strides = array<i32>} : memref<32x128xf32, #tpu.memory_space<vmem>>, vector<32x128xf32>,
    return
  }
  func.func @transform_0(%arg0: i32) -> (i32, i32, i32) {
    %c0_i32 = arith.constant 0 : i32
    %c0_i32_0 = arith.constant 0 : i32
    %c0_i32_1 = arith.constant 0 : i32
    return %c0_i32, %arg0, %c0_i32_0 : i32, i32, i32
  }
  func.func @transform_1(%arg0: i32) -> (i32, i32) {
    %c0_i32 = arith.constant 0 : i32
    %c0_i32_0 = arith.constant 0 : i32
    %c0_i32_1 = arith.constant 0 : i32
    return %c0_i32, %c0_i32_0 : i32, i32
  }
  func.func @transform_2(%arg0: i32) -> (i32, i32) {
    %c0_i32 = arith.constant 0 : i32
    %c0_i32_0 = arith.constant 0 : i32
    %c0_i32_1 = arith.constant 0 : i32
    return %c0_i32, %c0_i32_0 : i32, i32
  }
  func.func @transform_3(%arg0: i32) -> (i32, i32) {
    %c0_i32 = arith.constant 0 : i32
    %c0_i32_0 = arith.constant 0 : i32
    return %arg0, %c0_i32 : i32, i32
  }
}

module attributes {stable_mosaic.version = 11 : i64} {
  func.func @_fc_head_kernel(%arg0: i32, %arg1: memref<8x320xbf16, #tpu.memory_space<vmem>>, %arg2: memref<320x128xbf16, #tpu.memory_space<vmem>>, %arg3: memref<1x128xf32, #tpu.memory_space<vmem>>, %arg4: memref<128x128xbf16, #tpu.memory_space<vmem>>, %arg5: memref<1x128xf32, #tpu.memory_space<vmem>>, %arg6: memref<8x128xf32, #tpu.memory_space<vmem>>) attributes {dimension_semantics = [#tpu.dimension_semantics<parallel>], iteration_bounds = array<i64: 1>, scalar_prefetch = 0 : i64, scratch_operands = 0 : i64, tpu.core_type = #tpu.core_type<tc>, window_params = [{transform_indices = @transform_0, window_bounds = array<i64: 8, 320>}, {pipeline_mode = #tpu.pipeline_mode<synchronous>, transform_indices = @transform_1, window_bounds = array<i64: 320, 128>}, {pipeline_mode = #tpu.pipeline_mode<synchronous>, transform_indices = @transform_2, window_bounds = array<i64: 1, 128>}, {pipeline_mode = #tpu.pipeline_mode<synchronous>, transform_indices = @transform_3, window_bounds = array<i64: 128, 128>}, {pipeline_mode = #tpu.pipeline_mode<synchronous>, transform_indices = @transform_4, window_bounds = array<i64: 1, 128>}, {transform_indices = @transform_5, window_bounds = array<i64: 8, 128>}]} {
    %c0 = arith.constant 0 : index
    %c0_0 = arith.constant 0 : index
    %0 = vector.load %arg1[%c0, %c0_0] : memref<8x320xbf16, #tpu.memory_space<vmem>>, vector<8x320xbf16>
    %c0_1 = arith.constant 0 : index
    %c0_2 = arith.constant 0 : index
    %1 = vector.load %arg2[%c0_1, %c0_2] : memref<320x128xbf16, #tpu.memory_space<vmem>>, vector<320x128xbf16>
    %cst = arith.constant dense<0.000000e+00> : vector<8x128xf32>
    %2 = tpu.matmul %0, %1, %cst {dimension_numbers = #tpu.dot_dimension_numbers<[1], [0], [0], [1], [0, 0, 1, 1], [], []>} : vector<8x320xbf16>, vector<320x128xbf16>, vector<8x128xf32> -> vector<8x128xf32>
    %c0_3 = arith.constant 0 : index
    %c0_4 = arith.constant 0 : index
    %3 = vector.load %arg3[%c0_3, %c0_4] : memref<1x128xf32, #tpu.memory_space<vmem>>, vector<1x128xf32>
    %4 = vector.broadcast %3 : vector<1x128xf32> to vector<8x128xf32>
    %5 = arith.addf %2, %4 : vector<8x128xf32>
    %cst_5 = arith.constant 0.000000e+00 : f32
    %6 = vector.broadcast %cst_5 : f32 to vector<8x128xf32>
    %7 = arith.maximumf %5, %6 : vector<8x128xf32>
    %8 = arith.truncf %7 : vector<8x128xf32> to vector<8x128xbf16>
    %c0_6 = arith.constant 0 : index
    %c0_7 = arith.constant 0 : index
    %9 = vector.load %arg4[%c0_6, %c0_7] : memref<128x128xbf16, #tpu.memory_space<vmem>>, vector<128x128xbf16>
    %cst_8 = arith.constant dense<0.000000e+00> : vector<8x128xf32>
    %10 = tpu.matmul %8, %9, %cst_8 {dimension_numbers = #tpu.dot_dimension_numbers<[1], [0], [0], [1], [0, 0, 1, 1], [], []>} : vector<8x128xbf16>, vector<128x128xbf16>, vector<8x128xf32> -> vector<8x128xf32>
    %c0_9 = arith.constant 0 : index
    %c0_10 = arith.constant 0 : index
    %11 = vector.load %arg5[%c0_9, %c0_10] : memref<1x128xf32, #tpu.memory_space<vmem>>, vector<1x128xf32>
    %12 = vector.broadcast %11 : vector<1x128xf32> to vector<8x128xf32>
    %13 = arith.addf %10, %12 : vector<8x128xf32>
    %14 = math.tanh %13 : vector<8x128xf32>
    %c0_11 = arith.constant 0 : index
    %c0_12 = arith.constant 0 : index
    %15 = vector.load %arg6[%c0_11, %c0_12] : memref<8x128xf32, #tpu.memory_space<vmem>>, vector<8x128xf32>
    tpu.vector_store %arg6[%c0_11, %c0_12], %14 {strides = array<i32>} : memref<8x128xf32, #tpu.memory_space<vmem>>, vector<8x128xf32>,
    return
  }
  func.func @transform_0(%arg0: i32) -> (i32, i32) {
    %c0_i32 = arith.constant 0 : i32
    %c0_i32_0 = arith.constant 0 : i32
    return %arg0, %c0_i32 : i32, i32
  }
  func.func @transform_1(%arg0: i32) -> (i32, i32) {
    %c0_i32 = arith.constant 0 : i32
    %c0_i32_0 = arith.constant 0 : i32
    %c0_i32_1 = arith.constant 0 : i32
    return %c0_i32, %c0_i32_0 : i32, i32
  }
  func.func @transform_2(%arg0: i32) -> (i32, i32) {
    %c0_i32 = arith.constant 0 : i32
    %c0_i32_0 = arith.constant 0 : i32
    %c0_i32_1 = arith.constant 0 : i32
    return %c0_i32, %c0_i32_0 : i32, i32
  }
  func.func @transform_3(%arg0: i32) -> (i32, i32) {
    %c0_i32 = arith.constant 0 : i32
    %c0_i32_0 = arith.constant 0 : i32
    %c0_i32_1 = arith.constant 0 : i32
    return %c0_i32, %c0_i32_0 : i32, i32
  }
  func.func @transform_4(%arg0: i32) -> (i32, i32) {
    %c0_i32 = arith.constant 0 : i32
    %c0_i32_0 = arith.constant 0 : i32
    %c0_i32_1 = arith.constant 0 : i32
    return %c0_i32, %c0_i32_0 : i32, i32
  }
  func.func @transform_5(%arg0: i32) -> (i32, i32) {
    %c0_i32 = arith.constant 0 : i32
    %c0_i32_0 = arith.constant 0 : i32
    return %arg0, %c0_i32 : i32, i32
  }
}

module attributes {stable_mosaic.version = 11 : i64} {
  func.func @_tps_sample_kernel(%arg0: i32, %arg1: memref<16x784xf32, #tpu.memory_space<vmem>>, %arg2: memref<1x2x16xf32, #tpu.memory_space<vmem>>, %arg3: memref<1x28x28xf32, #tpu.memory_space<vmem>>, %arg4: memref<1x1x784xf32, #tpu.memory_space<vmem>>) attributes {dimension_semantics = [#tpu.dimension_semantics<parallel>], iteration_bounds = array<i64: 2>, scalar_prefetch = 0 : i64, scratch_operands = 0 : i64, tpu.core_type = #tpu.core_type<tc>, window_params = [{pipeline_mode = #tpu.pipeline_mode<synchronous>, transform_indices = @transform_0, window_bounds = array<i64: 16, 784>}, {transform_indices = @transform_1, window_bounds = array<i64: 1, 2, 16>}, {transform_indices = @transform_2, window_bounds = array<i64: 1, 28, 28>}, {transform_indices = @transform_3, window_bounds = array<i64: 1, 1, 784>}]} {
    %c0 = arith.constant 0 : index
    %c0_0 = arith.constant 0 : index
    %c0_1 = arith.constant 0 : index
    %0 = vector.load %arg2[%c0, %c0_0, %c0_1] : memref<1x2x16xf32, #tpu.memory_space<vmem>>, vector<1x2x16xf32>
    %1 = vector.shape_cast %0 : vector<1x2x16xf32> to vector<2x16xf32>
    %c0_2 = arith.constant 0 : index
    %c0_3 = arith.constant 0 : index
    %2 = vector.load %arg1[%c0_2, %c0_3] : memref<16x784xf32, #tpu.memory_space<vmem>>, vector<16x784xf32>
    %cst = arith.constant dense<0.000000e+00> : vector<2x784xf32>
    %3 = tpu.matmul %1, %2, %cst {dimension_numbers = #tpu.dot_dimension_numbers<[1], [0], [0], [1], [0, 0, 1, 1], [], []>} : vector<2x16xf32>, vector<16x784xf32>, vector<2x784xf32> -> vector<2x784xf32>
    %4 = vector.extract_strided_slice %3 {offsets = [0, 0], sizes = [1, 784], strides = [1, 1]} : vector<2x784xf32> to vector<1x784xf32>
    %cst_4 = arith.constant 1.000000e+00 : f32
    %5 = vector.broadcast %cst_4 : f32 to vector<1x784xf32>
    %6 = arith.addf %4, %5 : vector<1x784xf32>
    %cst_5 = arith.constant 1.350000e+01 : f32
    %7 = vector.broadcast %cst_5 : f32 to vector<1x784xf32>
    %8 = arith.mulf %6, %7 : vector<1x784xf32>
    %9 = vector.extract_strided_slice %3 {offsets = [1, 0], sizes = [1, 784], strides = [1, 1]} : vector<2x784xf32> to vector<1x784xf32>
    %cst_6 = arith.constant 1.000000e+00 : f32
    %10 = vector.broadcast %cst_6 : f32 to vector<1x784xf32>
    %11 = arith.addf %9, %10 : vector<1x784xf32>
    %cst_7 = arith.constant 1.350000e+01 : f32
    %12 = vector.broadcast %cst_7 : f32 to vector<1x784xf32>
    %13 = arith.mulf %11, %12 : vector<1x784xf32>
    %14 = tpu.iota {dimensions = array<i32: 0>} : vector<28x784xi32>
    %15 = arith.sitofp %14 : vector<28x784xi32> to vector<28x784xf32>
    %16 = tpu.iota {dimensions = array<i32: 0>} : vector<28x784xi32>
    %17 = arith.sitofp %16 : vector<28x784xi32> to vector<28x784xf32>
    %18 = vector.broadcast %13 : vector<1x784xf32> to vector<28x784xf32>
    %19 = arith.subf %18, %15 : vector<28x784xf32>
    %20 = math.absf %19 : vector<28x784xf32>
    %cst_8 = arith.constant 1.000000e+00 : f32
    %21 = vector.broadcast %cst_8 : f32 to vector<28x784xf32>
    %22 = arith.subf %21, %20 : vector<28x784xf32>
    %cst_9 = arith.constant 0.000000e+00 : f32
    %23 = vector.broadcast %cst_9 : f32 to vector<28x784xf32>
    %24 = arith.maximumf %22, %23 : vector<28x784xf32>
    %25 = vector.broadcast %8 : vector<1x784xf32> to vector<28x784xf32>
    %26 = arith.subf %25, %17 : vector<28x784xf32>
    %27 = math.absf %26 : vector<28x784xf32>
    %cst_10 = arith.constant 1.000000e+00 : f32
    %28 = vector.broadcast %cst_10 : f32 to vector<28x784xf32>
    %29 = arith.subf %28, %27 : vector<28x784xf32>
    %cst_11 = arith.constant 0.000000e+00 : f32
    %30 = vector.broadcast %cst_11 : f32 to vector<28x784xf32>
    %31 = arith.maximumf %29, %30 : vector<28x784xf32>
    %c0_12 = arith.constant 0 : index
    %c0_13 = arith.constant 0 : index
    %c0_14 = arith.constant 0 : index
    %32 = vector.load %arg3[%c0_12, %c0_13, %c0_14] : memref<1x28x28xf32, #tpu.memory_space<vmem>>, vector<1x28x28xf32>
    %33 = vector.shape_cast %32 : vector<1x28x28xf32> to vector<28x28xf32>
    %cst_15 = arith.constant dense<0.000000e+00> : vector<28x784xf32>
    %34 = tpu.matmul %33, %24, %cst_15 {dimension_numbers = #tpu.dot_dimension_numbers<[1], [0], [0], [1], [0, 0, 1, 1], [], []>} : vector<28x28xf32>, vector<28x784xf32>, vector<28x784xf32> -> vector<28x784xf32>
    %cst_16 = arith.constant 1.000000e+00 : f32
    %35 = vector.broadcast %cst_16 : f32 to vector<1x28xf32>
    %36 = arith.mulf %31, %34 : vector<28x784xf32>
    %cst_17 = arith.constant dense<0.000000e+00> : vector<1x784xf32>
    %37 = tpu.matmul %35, %36, %cst_17 {dimension_numbers = #tpu.dot_dimension_numbers<[1], [0], [0], [1], [0, 0, 1, 1], [], []>} : vector<1x28xf32>, vector<28x784xf32>, vector<1x784xf32> -> vector<1x784xf32>
    %c0_18 = arith.constant 0 : index
    %c0_19 = arith.constant 0 : index
    %c0_20 = arith.constant 0 : index
    %38 = vector.load %arg4[%c0_18, %c0_19, %c0_20] : memref<1x1x784xf32, #tpu.memory_space<vmem>>, vector<1x1x784xf32>
    %39 = vector.shape_cast %38 : vector<1x1x784xf32> to vector<1x784xf32>
    %40 = vector.shape_cast %37 : vector<1x784xf32> to vector<1x1x784xf32>
    tpu.vector_store %arg4[%c0_18, %c0_19, %c0_20], %40 {strides = array<i32>} : memref<1x1x784xf32, #tpu.memory_space<vmem>>, vector<1x1x784xf32>,
    return
  }
  func.func @transform_0(%arg0: i32) -> (i32, i32) {
    %c0_i32 = arith.constant 0 : i32
    %c0_i32_0 = arith.constant 0 : i32
    %c0_i32_1 = arith.constant 0 : i32
    return %c0_i32, %c0_i32_0 : i32, i32
  }
  func.func @transform_1(%arg0: i32) -> (i32, i32, i32) {
    %c0_i32 = arith.constant 0 : i32
    %c0_i32_0 = arith.constant 0 : i32
    %c0_i32_1 = arith.constant 0 : i32
    return %arg0, %c0_i32, %c0_i32_0 : i32, i32, i32
  }
  func.func @transform_2(%arg0: i32) -> (i32, i32, i32) {
    %c0_i32 = arith.constant 0 : i32
    %c0_i32_0 = arith.constant 0 : i32
    %c0_i32_1 = arith.constant 0 : i32
    return %arg0, %c0_i32, %c0_i32_0 : i32, i32, i32
  }
  func.func @transform_3(%arg0: i32) -> (i32, i32, i32) {
    %c0_i32 = arith.constant 0 : i32
    %c0_i32_0 = arith.constant 0 : i32
    %c0_i32_1 = arith.constant 0 : i32
    return %arg0, %c0_i32, %c0_i32_0 : i32, i32, i32
  }
}

module attributes {stable_mosaic.version = 11 : i64} {
  func.func @_fc_head_kernel(%arg0: i32, %arg1: memref<8x320xbf16, #tpu.memory_space<vmem>>, %arg2: memref<320x128xbf16, #tpu.memory_space<vmem>>, %arg3: memref<1x128xf32, #tpu.memory_space<vmem>>, %arg4: memref<128x128xbf16, #tpu.memory_space<vmem>>, %arg5: memref<1x128xf32, #tpu.memory_space<vmem>>, %arg6: memref<8x128xf32, #tpu.memory_space<vmem>>) attributes {dimension_semantics = [#tpu.dimension_semantics<parallel>], iteration_bounds = array<i64: 1>, scalar_prefetch = 0 : i64, scratch_operands = 0 : i64, tpu.core_type = #tpu.core_type<tc>, window_params = [{transform_indices = @transform_0, window_bounds = array<i64: 8, 320>}, {pipeline_mode = #tpu.pipeline_mode<synchronous>, transform_indices = @transform_1, window_bounds = array<i64: 320, 128>}, {pipeline_mode = #tpu.pipeline_mode<synchronous>, transform_indices = @transform_2, window_bounds = array<i64: 1, 128>}, {pipeline_mode = #tpu.pipeline_mode<synchronous>, transform_indices = @transform_3, window_bounds = array<i64: 128, 128>}, {pipeline_mode = #tpu.pipeline_mode<synchronous>, transform_indices = @transform_4, window_bounds = array<i64: 1, 128>}, {transform_indices = @transform_5, window_bounds = array<i64: 8, 128>}]} {
    %c0 = arith.constant 0 : index
    %c0_0 = arith.constant 0 : index
    %0 = vector.load %arg1[%c0, %c0_0] : memref<8x320xbf16, #tpu.memory_space<vmem>>, vector<8x320xbf16>
    %c0_1 = arith.constant 0 : index
    %c0_2 = arith.constant 0 : index
    %1 = vector.load %arg2[%c0_1, %c0_2] : memref<320x128xbf16, #tpu.memory_space<vmem>>, vector<320x128xbf16>
    %cst = arith.constant dense<0.000000e+00> : vector<8x128xf32>
    %2 = tpu.matmul %0, %1, %cst {dimension_numbers = #tpu.dot_dimension_numbers<[1], [0], [0], [1], [0, 0, 1, 1], [], []>} : vector<8x320xbf16>, vector<320x128xbf16>, vector<8x128xf32> -> vector<8x128xf32>
    %c0_3 = arith.constant 0 : index
    %c0_4 = arith.constant 0 : index
    %3 = vector.load %arg3[%c0_3, %c0_4] : memref<1x128xf32, #tpu.memory_space<vmem>>, vector<1x128xf32>
    %4 = vector.broadcast %3 : vector<1x128xf32> to vector<8x128xf32>
    %5 = arith.addf %2, %4 : vector<8x128xf32>
    %cst_5 = arith.constant 0.000000e+00 : f32
    %6 = vector.broadcast %cst_5 : f32 to vector<8x128xf32>
    %7 = arith.maximumf %5, %6 : vector<8x128xf32>
    %8 = arith.truncf %7 : vector<8x128xf32> to vector<8x128xbf16>
    %c0_6 = arith.constant 0 : index
    %c0_7 = arith.constant 0 : index
    %9 = vector.load %arg4[%c0_6, %c0_7] : memref<128x128xbf16, #tpu.memory_space<vmem>>, vector<128x128xbf16>
    %cst_8 = arith.constant dense<0.000000e+00> : vector<8x128xf32>
    %10 = tpu.matmul %8, %9, %cst_8 {dimension_numbers = #tpu.dot_dimension_numbers<[1], [0], [0], [1], [0, 0, 1, 1], [], []>} : vector<8x128xbf16>, vector<128x128xbf16>, vector<8x128xf32> -> vector<8x128xf32>
    %c0_9 = arith.constant 0 : index
    %c0_10 = arith.constant 0 : index
    %11 = vector.load %arg5[%c0_9, %c0_10] : memref<1x128xf32, #tpu.memory_space<vmem>>, vector<1x128xf32>
    %12 = vector.broadcast %11 : vector<1x128xf32> to vector<8x128xf32>
    %13 = arith.addf %10, %12 : vector<8x128xf32>
    %14 = tpu.iota {dimensions = array<i32: 1>} : vector<8x128xi32>
    %c10_i32 = arith.constant 10 : i32
    %15 = vector.broadcast %c10_i32 : i32 to vector<8x128xi32>
    %16 = arith.cmpi slt, %14, %15 : vector<8x128xi32>
    %cst_11 = arith.constant 0xFF800000 : f32
    %17 = vector.broadcast %cst_11 : f32 to vector<8x128xf32>
    %18 = arith.select %16, %13, %17 : vector<8x128xi1>, vector<8x128xf32>
    %cst_12 = arith.constant dense<0xFF800000> : vector<8xf32>
    %19 = vector.multi_reduction <maximumf>, %18, %cst_12 [1] : vector<8x128xf32> to vector<8xf32>
    %20 = vector.shape_cast %19 : vector<8xf32> to vector<8x1xf32>
    %21 = vector.broadcast %20 : vector<8x1xf32> to vector<8x128xf32>
    %22 = arith.subf %13, %21 : vector<8x128xf32>
    %23 = math.exp %22 : vector<8x128xf32>
    %cst_13 = arith.constant 0.000000e+00 : f32
    %24 = vector.broadcast %cst_13 : f32 to vector<8x128xf32>
    %25 = arith.select %16, %23, %24 : vector<8x128xi1>, vector<8x128xf32>
    %cst_14 = arith.constant dense<0.000000e+00> : vector<8xf32>
    %26 = vector.multi_reduction <add>, %25, %cst_14 [1] : vector<8x128xf32> to vector<8xf32>
    %27 = vector.shape_cast %26 : vector<8xf32> to vector<8x1xf32>
    %28 = math.log %27 : vector<8x1xf32>
    %29 = vector.broadcast %28 : vector<8x1xf32> to vector<8x128xf32>
    %30 = arith.subf %22, %29 : vector<8x128xf32>
    %c0_15 = arith.constant 0 : index
    %c0_16 = arith.constant 0 : index
    %31 = vector.load %arg6[%c0_15, %c0_16] : memref<8x128xf32, #tpu.memory_space<vmem>>, vector<8x128xf32>
    tpu.vector_store %arg6[%c0_15, %c0_16], %30 {strides = array<i32>} : memref<8x128xf32, #tpu.memory_space<vmem>>, vector<8x128xf32>,
    return
  }
  func.func @transform_0(%arg0: i32) -> (i32, i32) {
    %c0_i32 = arith.constant 0 : i32
    %c0_i32_0 = arith.constant 0 : i32
    return %arg0, %c0_i32 : i32, i32
  }
  func.func @transform_1(%arg0: i32) -> (i32, i32) {
    %c0_i32 = arith.constant 0 : i32
    %c0_i32_0 = arith.constant 0 : i32
    %c0_i32_1 = arith.constant 0 : i32
    return %c0_i32, %c0_i32_0 : i32, i32
  }
  func.func @transform_2(%arg0: i32) -> (i32, i32) {
    %c0_i32 = arith.constant 0 : i32
    %c0_i32_0 = arith.constant 0 : i32
    %c0_i32_1 = arith.constant 0 : i32
    return %c0_i32, %c0_i32_0 : i32, i32
  }
  func.func @transform_3(%arg0: i32) -> (i32, i32) {
    %c0_i32 = arith.constant 0 : i32
    %c0_i32_0 = arith.constant 0 : i32
    %c0_i32_1 = arith.constant 0 : i32
    return %c0_i32, %c0_i32_0 : i32, i32
  }
  func.func @transform_4(%arg0: i32) -> (i32, i32) {
    %c0_i32 = arith.constant 0 : i32
    %c0_i32_0 = arith.constant 0 : i32
    %c0_i32_1 = arith.constant 0 : i32
    return %c0_i32, %c0_i32_0 : i32, i32
  }
  func.func @transform_5(%arg0: i32) -> (i32, i32) {
    %c0_i32 = arith.constant 0 : i32
    %c0_i32_0 = arith.constant 0 : i32
    return %arg0, %c0_i32 : i32, i32
  }
}

</mosaic_0001>

<llo_original>
// kernel: stn_forward.7
$region0: #{stn_forward.7}
  #allocation0 [shape = 'u32[]', space=smem, size = 0x4, offset = 0x4, fixed_abs, tag = 'smem constant byte address 0x4 - core index']
  #allocation1 [shape = 'u32[144,128]{1,0:T(1,128)}', space=vmem, size = 0x12000, scoped, tag = 'internal scratch']
  %s0 = inlined_call_operand.vmem [shape: bf16[4,288,128], index: 0, kind: input, shape index: {}]
  %s1 = inlined_call_operand.vmem [shape: bf16[128,128], index: 1, kind: input, shape index: {}]
  %s2 = inlined_call_operand.vmem [shape: f32[1,128], index: 2, kind: input, shape index: {}]
  %s3 = inlined_call_operand.vmem [shape: f32[288,128], index: 3, kind: output, shape index: {}]
  %s4 = sld [smem:[#allocation0]]
  $region22: #{stn_forward.7} parent=0
    _
  %s6 = ssub.s32 1, %s4
  %s7 = scalar_select 0, %s6, %s4
  // Predicated region
  $region2: #{stn_forward.7} parent=0 // pred_check
    _
  $region3: #{stn_forward.7} parent=0 // pred_check_branch
    %9 = sbr.rel (0) target = $region5
  $region4: #{stn_forward.7} parent=0 // pred_region
    _
  $region5: #{stn_forward.7} parent=0 // pred_fallthru
    _
  // Predicated region
  $region6: #{stn_forward.7} parent=0 // pred_check
    _
  $region7: #{stn_forward.7} parent=0 // pred_check_branch
    %11 = sbr.rel (0) target = $region9
  $region8: #{stn_forward.7} parent=0 // pred_region
    _
  $region9: #{stn_forward.7} parent=0 // pred_fallthru
    _
  // Predicated region
  $region10: #{stn_forward.7} parent=0 // pred_check
    _
  $region11: #{stn_forward.7} parent=0 // pred_check_branch
    %13 = sbr.rel (0) target = $region13
  $region12: #{stn_forward.7} parent=0 // pred_region
    _
  $region13: #{stn_forward.7} parent=0 // pred_fallthru
    _
  %v15 = vld [vmem:[%s1] sm:$0xf]
  %v16 = vld [vmem:[%s1 + $0x4] sm:$0xf]
  %v17 = vld [vmem:[%s1 + $0x8] sm:$0xf]
  %v18 = vld [vmem:[%s1 + $0xc] sm:$0xf]
  %v19 = vld [vmem:[%s1 + $0x10] sm:$0xf]
  %v20 = vld [vmem:[%s1 + $0x14] sm:$0xf]
  %v21 = vld [vmem:[%s1 + $0x18] sm:$0xf]
  %v22 = vld [vmem:[%s1 + $0x1c] sm:$0xf]
  %v23 = vld [vmem:[%s1 + $0x20] sm:$0xf]
  %v24 = vld [vmem:[%s1 + $0x24] sm:$0xf]
  %v25 = vld [vmem:[%s1 + $0x28] sm:$0xf]
  %v26 = vld [vmem:[%s1 + $0x2c] sm:$0xf]
  %v27 = vld [vmem:[%s1 + $0x30] sm:$0xf]
  %v28 = vld [vmem:[%s1 + $0x34] sm:$0xf]
  %v29 = vld [vmem:[%s1 + $0x38] sm:$0xf]
  %v30 = vld [vmem:[%s1 + $0x3c] sm:$0xf]
  %v31 = vld [vmem:[%s0] sm:$0xf]
  %v32 = vld [vmem:[%s0 + $0x4] sm:$0xf]
  %v33 = vld [vmem:[%s0 + $0x8] sm:$0xf]
  %v34 = vld [vmem:[%s0 + $0xc] sm:$0xf]
  %v35 = vld [vmem:[%s0 + $0x10] sm:$0xf]
  %v36 = vld [vmem:[%s0 + $0x14] sm:$0xf]
  %v37 = vld [vmem:[%s0 + $0x18] sm:$0xf]
  %v38 = vld [vmem:[%s0 + $0x1c] sm:$0xf]
  %v39 = vld [vmem:[%s0 + $0x20] sm:$0xf]
  %v40 = vld [vmem:[%s0 + $0x24] sm:$0xf]
  %v41 = vld [vmem:[%s0 + $0x28] sm:$0xf]
  %v42 = vld [vmem:[%s0 + $0x2c] sm:$0xf]
  %v43 = vld [vmem:[%s0 + $0x30] sm:$0xf]
  %v44 = vld [vmem:[%s0 + $0x34] sm:$0xf]
  %v45 = vld [vmem:[%s0 + $0x38] sm:$0xf]
  %v46 = vld [vmem:[%s0 + $0x3c] sm:$0xf]
  %v47 = vld [vmem:[%s0 + $0x40] sm:$0xf]
  %v48 = vld [vmem:[%s0 + $0x44] sm:$0xf]
  %v49 = vld [vmem:[%s0 + $0x48] sm:$0xf]
  %v50 = vld [vmem:[%s0 + $0x4c] sm:$0xf]
  %v51 = vld [vmem:[%s0 + $0x50] sm:$0xf]
  %v52 = vld [vmem:[%s0 + $0x54] sm:$0xf]
  %v53 = vld [vmem:[%s0 + $0x58] sm:$0xf]
  %v54 = vld [vmem:[%s0 + $0x5c] sm:$0xf]
  %v55 = vld [vmem:[%s0 + $0x60] sm:$0xf]
  %v56 = vld [vmem:[%s0 + $0x64] sm:$0xf]
  %v57 = vld [vmem:[%s0 + $0x68] sm:$0xf]
  %v58 = vld [vmem:[%s0 + $0x6c] sm:$0xf]
  %v59 = vld [vmem:[%s0 + $0x70] sm:$0xf]
  %v60 = vld [vmem:[%s0 + $0x74] sm:$0xf]
  %v61 = vld [vmem:[%s0 + $0x78] sm:$0xf]
  %v62 = vld [vmem:[%s0 + $0x7c] sm:$0xf]
  %v63 = vld [vmem:[%s0 + $0x80] sm:$0xf]
  %v64 = vld [vmem:[%s0 + $0x84] sm:$0xf]
  %v65 = vld [vmem:[%s0 + $0x88] sm:$0xf]
  %v66 = vld [vmem:[%s0 + $0x8c] sm:$0xf]
  %v103 = vunpack.c.l.b16 %v31
  %v104 = vunpack.c.l.b16 %v32
  %v105 = vunpack.c.l.b16 %v33
  %v106 = vunpack.c.l.b16 %v34
  %v107 = vunpack.c.l.b16 %v35
  %v108 = vunpack.c.l.b16 %v36
  %v109 = vunpack.c.l.b16 %v37
  %v110 = vunpack.c.l.b16 %v38
  %v111 = vunpack.c.l.b16 %v39
  %v112 = vunpack.c.l.b16 %v40
  %v113 = vunpack.c.l.b16 %v41
  %v114 = vunpack.c.l.b16 %v42
  %v115 = vunpack.c.l.b16 %v43
  %v116 = vunpack.c.l.b16 %v44
  %v117 = vunpack.c.l.b16 %v45
  %v118 = vunpack.c.l.b16 %v46
  %v119 = vunpack.c.l.b16 %v47
  %v120 = vunpack.c.l.b16 %v48
  %v121 = vunpack.c.l.b16 %v49
  %v122 = vunpack.c.l.b16 %v50
  %v123 = vunpack.c.l.b16 %v51
  %v124 = vunpack.c.l.b16 %v52
  %v125 = vunpack.c.l.b16 %v53
  %v126 = vunpack.c.l.b16 %v54
  %v127 = vunpack.c.l.b16 %v55
  %v128 = vunpack.c.l.b16 %v56
  %v129 = vunpack.c.l.b16 %v57
  %v130 = vunpack.c.l.b16 %v58
  %v131 = vunpack.c.l.b16 %v59
  %v132 = vunpack.c.l.b16 %v60
  %v133 = vunpack.c.l.b16 %v61
  %v134 = vunpack.c.l.b16 %v62
  %v135 = vunpack.c.l.b16 %v63
  %v136 = vunpack.c.l.b16 %v64
  %v137 = vunpack.c.l.b16 %v65
  %v138 = vunpack.c.l.b16 %v66
  %v139 = vpack.c.b16 %v104, %v103
  %v140 = vpack.c.b16 %v106, %v105
  %v141 = vpack.c.b16 %v108, %v107
  %v142 = vpack.c.b16 %v110, %v109
  %v143 = vpack.c.b16 %v112, %v111
  %v144 = vpack.c.b16 %v114, %v113
  %v145 = vpack.c.b16 %v116, %v115
  %v146 = vpack.c.b16 %v118, %v117
  %v147 = vpack.c.b16 %v120, %v119
  %v148 = vpack.c.b16 %v122, %v121
  %v149 = vpack.c.b16 %v124, %v123
  %v150 = vpack.c.b16 %v126, %v125
  %v151 = vpack.c.b16 %v128, %v127
  %v152 = vpack.c.b16 %v130, %v129
  %v153 = vpack.c.b16 %v132, %v131
  %v154 = vpack.c.b16 %v134, %v133
  %v155 = vpack.c.b16 %v136, %v135
  %v156 = vpack.c.b16 %v138, %v137
  %v191 = vunpack.c.l.b16 %v15
  %v192 = vunpack.c.l.b16 %v16
  %v193 = vunpack.c.l.b16 %v17
  %v194 = vunpack.c.l.b16 %v18
  %v195 = vunpack.c.l.b16 %v19
  %v196 = vunpack.c.l.b16 %v20
  %v197 = vunpack.c.l.b16 %v21
  %v198 = vunpack.c.l.b16 %v22
  %v199 = vunpack.c.l.b16 %v23
  %v200 = vunpack.c.l.b16 %v24
  %v201 = vunpack.c.l.b16 %v25
  %v202 = vunpack.c.l.b16 %v26
  %v203 = vunpack.c.l.b16 %v27
  %v204 = vunpack.c.l.b16 %v28
  %v205 = vunpack.c.l.b16 %v29
  %v206 = vunpack.c.l.b16 %v30
  %v207 = vpack.c.b16 %v192, %v191
  %v208 = vpack.c.b16 %v194, %v193
  %v209 = vpack.c.b16 %v196, %v195
  %v210 = vpack.c.b16 %v198, %v197
  %v211 = vpack.c.b16 %v200, %v199
  %v212 = vpack.c.b16 %v202, %v201
  %v213 = vpack.c.b16 %v204, %v203
  %v214 = vpack.c.b16 %v206, %v205
  %223 = vmatprep.subr.bf16.mxu0 0
  %224 = vmatpush1.bf16.msra.mxu0 %v214
  %225 = vmatprep.subr.bf16.mxu0 0
  %226 = vmatpush1.bf16.msra.mxu0 %v213
  %227 = vmatprep.subr.bf16.mxu0 0
  %228 = vmatpush1.bf16.msra.mxu0 %v212
  %229 = vmatprep.subr.bf16.mxu0 0
  %230 = vmatpush1.bf16.msra.mxu0 %v211
  %231 = vmatprep.subr.bf16.mxu0 0
  %232 = vmatpush1.bf16.msra.mxu0 %v210
  %233 = vmatprep.subr.bf16.mxu0 0
  %234 = vmatpush1.bf16.msra.mxu0 %v209
  %235 = vmatprep.subr.bf16.mxu0 0
  %236 = vmatpush1.bf16.msra.mxu0 %v208
  %237 = vmatprep.subr.bf16.mxu0 0
  %238 = vmatpush1.bf16.msra.mxu0 %v207
  %239 = vmatprep.subr.bf16.mxu0 0
  %240 = vmatpush2.bf16.msra.mxu0 0
  %241 = vmatprep.subr.bf16.mxu0 0
  %242 = vmatpush2.bf16.msra.mxu0 0
  %243 = vmatprep.subr.bf16.mxu0 0
  %244 = vmatpush2.bf16.msra.mxu0 0
  %245 = vmatprep.subr.bf16.mxu0 0
  %246 = vmatpush2.bf16.msra.mxu0 0
  %247 = vmatprep.subr.bf16.mxu0 0
  %248 = vmatpush2.bf16.msra.mxu0 0
  %249 = vmatprep.subr.bf16.mxu0 0
  %250 = vmatpush2.bf16.msra.mxu0 0
  %251 = vmatprep.subr.bf16.mxu0 0
  %252 = vmatpush2.bf16.msra.mxu0 0
  %253 = vmatprep.subr.bf16.mxu0 0
  %254 = vmatpush2.bf16.msra.mxu0 0
  %255 = vmatprep.mubr.bf16.mxu0 0
  %256 = vmatmul.mubr.bf16.gmra.mxu0 %v139
  %v257 = vpop.f32.mrf.mxu0
  %v258 = vadd.f32 0.0, %v257
  %v259 = vpop.f32.mrf.mxu0
  %v260 = vpop.f32.mrf.mxu0
  %v261 = vadd.f32 0.0, %v260
  %v262 = vpop.f32.mrf.mxu0
  %263 = vmatprep.mubr.bf16.mxu0 0
  %264 = vmatmul.mubr.bf16.gmra.mxu0 %v140
  %v265 = vpop.f32.mrf.mxu0
  %v266 = vadd.f32 0.0, %v265
  %v267 = vpop.f32.mrf.mxu0
  %v268 = vpop.f32.mrf.mxu0
  %v269 = vadd.f32 0.0, %v268
  %v270 = vpop.f32.mrf.mxu0
  %271 = vmatprep.mubr.bf16.mxu0 0
  %272 = vmatmul.mubr.bf16.gmra.mxu0 %v141
  %v273 = vpop.f32.mrf.mxu0
  %v274 = vadd.f32 0.0, %v273
  %v275 = vpop.f32.mrf.mxu0
  %v276 = vpop.f32.mrf.mxu0
  %v277 = vadd.f32 0.0, %v276
  %v278 = vpop.f32.mrf.mxu0
  %279 = vmatprep.mubr.bf16.mxu0 0
  %280 = vmatmul.mubr.bf16.gmra.mxu0 %v142
  %v281 = vpop.f32.mrf.mxu0
  %v282 = vadd.f32 0.0, %v281
  %v283 = vpop.f32.mrf.mxu0
  %v284 = vpop.f32.mrf.mxu0
  %v285 = vadd.f32 0.0, %v284
  %v286 = vpop.f32.mrf.mxu0
  %287 = vmatprep.mubr.bf16.mxu0 0
  %288 = vmatmul.mubr.bf16.gmra.mxu0 %v143
  %v289 = vpop.f32.mrf.mxu0
  %v290 = vadd.f32 0.0, %v289
  %v291 = vpop.f32.mrf.mxu0
  %v292 = vpop.f32.mrf.mxu0
  %v293 = vadd.f32 0.0, %v292
  %v294 = vpop.f32.mrf.mxu0
  %295 = vmatprep.mubr.bf16.mxu0 0
  %296 = vmatmul.mubr.bf16.gmra.mxu0 %v144
  %v297 = vpop.f32.mrf.mxu0
  %v298 = vadd.f32 0.0, %v297
  %v299 = vpop.f32.mrf.mxu0
  %v300 = vpop.f32.mrf.mxu0
  %v301 = vadd.f32 0.0, %v300
  %v302 = vpop.f32.mrf.mxu0
  %303 = vmatprep.mubr.bf16.mxu0 0
  %304 = vmatmul.mubr.bf16.gmra.mxu0 %v145
  %v305 = vpop.f32.mrf.mxu0
  %v306 = vadd.f32 0.0, %v305
  %v307 = vpop.f32.mrf.mxu0
  %v308 = vpop.f32.mrf.mxu0
  %v309 = vadd.f32 0.0, %v308
  %v310 = vpop.f32.mrf.mxu0
  %311 = vmatprep.mubr.bf16.mxu0 0
  %312 = vmatmul.mubr.bf16.gmra.mxu0 %v146
  %v313 = vpop.f32.mrf.mxu0
  %v314 = vadd.f32 0.0, %v313
  %v315 = vpop.f32.mrf.mxu0
  %v316 = vpop.f32.mrf.mxu0
  %v317 = vadd.f32 0.0, %v316
  %v318 = vpop.f32.mrf.mxu0
  %319 = vmatprep.mubr.bf16.mxu0 0
  %320 = vmatmul.mubr.bf16.gmra.mxu0 %v147
  %v321 = vpop.f32.mrf.mxu0
  %v322 = vadd.f32 0.0, %v321
  %v323 = vpop.f32.mrf.mxu0
  %v324 = vpop.f32.mrf.mxu0
  %v325 = vadd.f32 0.0, %v324
  %v326 = vpop.f32.mrf.mxu0
  %327 = vmatprep.mubr.bf16.mxu0 0
  %328 = vmatmul.mubr.bf16.gmra.mxu0 %v148
  %v329 = vpop.f32.mrf.mxu0
  %v330 = vadd.f32 0.0, %v329
  %v331 = vpop.f32.mrf.mxu0
  %v332 = vpop.f32.mrf.mxu0
  %v333 = vadd.f32 0.0, %v332
  %v334 = vpop.f32.mrf.mxu0
  %335 = vmatprep.mubr.bf16.mxu0 0
  %336 = vmatmul.mubr.bf16.gmra.mxu0 %v149
  %v337 = vpop.f32.mrf.mxu0
  %v338 = vadd.f32 0.0, %v337
  %v339 = vpop.f32.mrf.mxu0
  %v340 = vpop.f32.mrf.mxu0
  %v341 = vadd.f32 0.0, %v340
  %v342 = vpop.f32.mrf.mxu0
  %343 = vmatprep.mubr.bf16.mxu0 0
  %344 = vmatmul.mubr.bf16.gmra.mxu0 %v150
  %v345 = vpop.f32.mrf.mxu0
  %v346 = vadd.f32 0.0, %v345
  %v347 = vpop.f32.mrf.mxu0
  %v348 = vpop.f32.mrf.mxu0
  %v349 = vadd.f32 0.0, %v348
  %v350 = vpop.f32.mrf.mxu0
  %351 = vmatprep.mubr.bf16.mxu0 0
  %352 = vmatmul.mubr.bf16.gmra.mxu0 %v151
  %v353 = vpop.f32.mrf.mxu0
  %v354 = vadd.f32 0.0, %v353
  %v355 = vpop.f32.mrf.mxu0
  %v356 = vpop.f32.mrf.mxu0
  %v357 = vadd.f32 0.0, %v356
  %v358 = vpop.f32.mrf.mxu0
  %359 = vmatprep.mubr.bf16.mxu0 0
  %360 = vmatmul.mubr.bf16.gmra.mxu0 %v152
  %v361 = vpop.f32.mrf.mxu0
  %v362 = vadd.f32 0.0, %v361
  %v363 = vpop.f32.mrf.mxu0
  %v364 = vpop.f32.mrf.mxu0
  %v365 = vadd.f32 0.0, %v364
  %v366 = vpop.f32.mrf.mxu0
  %367 = vmatprep.mubr.bf16.mxu0 0
  %368 = vmatmul.mubr.bf16.gmra.mxu0 %v153
  %v369 = vpop.f32.mrf.mxu0
  %v370 = vadd.f32 0.0, %v369
  %v371 = vpop.f32.mrf.mxu0
  %v372 = vpop.f32.mrf.mxu0
  %v373 = vadd.f32 0.0, %v372
  %v374 = vpop.f32.mrf.mxu0
  %375 = vmatprep.mubr.bf16.mxu0 0
  %376 = vmatmul.mubr.bf16.gmra.mxu0 %v154
  %v377 = vpop.f32.mrf.mxu0
  %v378 = vadd.f32 0.0, %v377
  %v379 = vpop.f32.mrf.mxu0
  %v380 = vpop.f32.mrf.mxu0
  %v381 = vadd.f32 0.0, %v380
  %v382 = vpop.f32.mrf.mxu0
  %383 = vmatprep.mubr.bf16.mxu0 0
  %384 = vmatmul.mubr.bf16.gmra.mxu0 %v155
  %v385 = vpop.f32.mrf.mxu0
  %v386 = vadd.f32 0.0, %v385
  %v387 = vpop.f32.mrf.mxu0
  %v388 = vpop.f32.mrf.mxu0
  %v389 = vadd.f32 0.0, %v388
  %v390 = vpop.f32.mrf.mxu0
  %391 = vmatprep.mubr.bf16.mxu0 0
  %392 = vmatmul.mubr.bf16.gmra.mxu0 %v156
  %v393 = vpop.f32.mrf.mxu0
  %v394 = vadd.f32 0.0, %v393
  %v395 = vpop.f32.mrf.mxu0
  %v396 = vpop.f32.mrf.mxu0
  %v397 = vadd.f32 0.0, %v396
  %v398 = vpop.f32.mrf.mxu0
  %399 = vdwg.mxu0
  %s400 = scalar_lea.vmem %s0, 144
  %v401 = vld [vmem:[%s400] sm:$0xf]
  %v402 = vld [vmem:[%s400 + $0x4] sm:$0xf]
  %v403 = vld [vmem:[%s400 + $0x8] sm:$0xf]
  %v404 = vld [vmem:[%s400 + $0xc] sm:$0xf]
  %v405 = vld [vmem:[%s400 + $0x10] sm:$0xf]
  %v406 = vld [vmem:[%s400 + $0x14] sm:$0xf]
  %v407 = vld [vmem:[%s400 + $0x18] sm:$0xf]
  %v408 = vld [vmem:[%s400 + $0x1c] sm:$0xf]
  %v409 = vld [vmem:[%s400 + $0x20] sm:$0xf]
  %v410 = vld [vmem:[%s400 + $0x24] sm:$0xf]
  %v411 = vld [vmem:[%s400 + $0x28] sm:$0xf]
  %v412 = vld [vmem:[%s400 + $0x2c] sm:$0xf]
  %v413 = vld [vmem:[%s400 + $0x30] sm:$0xf]
  %v414 = vld [vmem:[%s400 + $0x34] sm:$0xf]
  %v415 = vld [vmem:[%s400 + $0x38] sm:$0xf]
  %v416 = vld [vmem:[%s400 + $0x3c] sm:$0xf]
  %v417 = vld [vmem:[%s400 + $0x40] sm:$0xf]
  %v418 = vld [vmem:[%s400 + $0x44] sm:$0xf]
  %v419 = vld [vmem:[%s400 + $0x48] sm:$0xf]
  %v420 = vld [vmem:[%s400 + $0x4c] sm:$0xf]
  %v421 = vld [vmem:[%s400 + $0x50] sm:$0xf]
  %v422 = vld [vmem:[%s400 + $0x54] sm:$0xf]
  %v423 = vld [vmem:[%s400 + $0x58] sm:$0xf]
  %v424 = vld [vmem:[%s400 + $0x5c] sm:$0xf]
  %v425 = vld [vmem:[%s400 + $0x60] sm:$0xf]
  %v426 = vld [vmem:[%s400 + $0x64] sm:$0xf]
  %v427 = vld [vmem:[%s400 + $0x68] sm:$0xf]
  %v428 = vld [vmem:[%s400 + $0x6c] sm:$0xf]
  %v429 = vld [vmem:[%s400 + $0x70] sm:$0xf]
  %v430 = vld [vmem:[%s400 + $0x74] sm:$0xf]
  %v431 = vld [vmem:[%s400 + $0x78] sm:$0xf]
  %v432 = vld [vmem:[%s400 + $0x7c] sm:$0xf]
  %v433 = vld [vmem:[%s400 + $0x80] sm:$0xf]
  %v434 = vld [vmem:[%s400 + $0x84] sm:$0xf]
  %v435 = vld [vmem:[%s400 + $0x88] sm:$0xf]
  %v436 = vld [vmem:[%s400 + $0x8c] sm:$0xf]
  %v473 = vunpack.c.l.b16 %v401
  %v474 = vunpack.c.l.b16 %v402
  %v475 = vunpack.c.l.b16 %v403
  %v476 = vunpack.c.l.b16 %v404
  %v477 = vunpack.c.l.b16 %v405
  %v478 = vunpack.c.l.b16 %v406
  %v479 = vunpack.c.l.b16 %v407
  %v480 = vunpack.c.l.b16 %v408
  %v481 = vunpack.c.l.b16 %v409
  %v482 = vunpack.c.l.b16 %v410
  %v483 = vunpack.c.l.b16 %v411
  %v484 = vunpack.c.l.b16 %v412
  %v485 = vunpack.c.l.b16 %v413
  %v486 = vunpack.c.l.b16 %v414
  %v487 = vunpack.c.l.b16 %v415
  %v488 = vunpack.c.l.b16 %v416
  %v489 = vunpack.c.l.b16 %v417
  %v490 = vunpack.c.l.b16 %v418
  %v491 = vunpack.c.l.b16 %v419
  %v492 = vunpack.c.l.b16 %v420
  %v493 = vunpack.c.l.b16 %v421
  %v494 = vunpack.c.l.b16 %v422
  %v495 = vunpack.c.l.b16 %v423
  %v496 = vunpack.c.l.b16 %v424
  %v497 = vunpack.c.l.b16 %v425
  %v498 = vunpack.c.l.b16 %v426
  %v499 = vunpack.c.l.b16 %v427
  %v500 = vunpack.c.l.b16 %v428
  %v501 = vunpack.c.l.b16 %v429
  %v502 = vunpack.c.l.b16 %v430
  %v503 = vunpack.c.l.b16 %v431
  %v504 = vunpack.c.l.b16 %v432
  %v505 = vunpack.c.l.b16 %v433
  %v506 = vunpack.c.l.b16 %v434
  %v507 = vunpack.c.l.b16 %v435
  %v508 = vunpack.c.l.b16 %v436
  %v509 = vpack.c.b16 %v474, %v473
  %v510 = vpack.c.b16 %v476, %v475
  %v511 = vpack.c.b16 %v478, %v477
  %v512 = vpack.c.b16 %v480, %v479
  %v513 = vpack.c.b16 %v482, %v481
  %v514 = vpack.c.b16 %v484, %v483
  %v515 = vpack.c.b16 %v486, %v485
  %v516 = vpack.c.b16 %v488, %v487
  %v517 = vpack.c.b16 %v490, %v489
  %v518 = vpack.c.b16 %v492, %v491
  %v519 = vpack.c.b16 %v494, %v493
  %v520 = vpack.c.b16 %v496, %v495
  %v521 = vpack.c.b16 %v498, %v497
  %v522 = vpack.c.b16 %v500, %v499
  %v523 = vpack.c.b16 %v502, %v501
  %v524 = vpack.c.b16 %v504, %v503
  %v525 = vpack.c.b16 %v506, %v505
  %v526 = vpack.c.b16 %v508, %v507
  %545 = vmatprep.subr.bf16.mxu0 0
  %546 = vmatpush1.bf16.msra.mxu0 %v214
  %547 = vmatprep.subr.bf16.mxu0 0
  %548 = vmatpush1.bf16.msra.mxu0 %v213
  %549 = vmatprep.subr.bf16.mxu0 0
  %550 = vmatpush1.bf16.msra.mxu0 %v212
  %551 = vmatprep.subr.bf16.mxu0 0
  %552 = vmatpush1.bf16.msra.mxu0 %v211
  %553 = vmatprep.subr.bf16.mxu0 0
  %554 = vmatpush1.bf16.msra.mxu0 %v210
  %555 = vmatprep.subr.bf16.mxu0 0
  %556 = vmatpush1.bf16.msra.mxu0 %v209
  %557 = vmatprep.subr.bf16.mxu0 0
  %558 = vmatpush1.bf16.msra.mxu0 %v208
  %559 = vmatprep.subr.bf16.mxu0 0
  %560 = vmatpush1.bf16.msra.mxu0 %v207
  %561 = vmatprep.subr.bf16.mxu0 0
  %562 = vmatpush2.bf16.msra.mxu0 0
  %563 = vmatprep.subr.bf16.mxu0 0
  %564 = vmatpush2.bf16.msra.mxu0 0
  %565 = vmatprep.subr.bf16.mxu0 0
  %566 = vmatpush2.bf16.msra.mxu0 0
  %567 = vmatprep.subr.bf16.mxu0 0
  %568 = vmatpush2.bf16.msra.mxu0 0
  %569 = vmatprep.subr.bf16.mxu0 0
  %570 = vmatpush2.bf16.msra.mxu0 0
  %571 = vmatprep.subr.bf16.mxu0 0
  %572 = vmatpush2.bf16.msra.mxu0 0
  %573 = vmatprep.subr.bf16.mxu0 0
  %574 = vmatpush2.bf16.msra.mxu0 0
  %575 = vmatprep.subr.bf16.mxu0 0
  %576 = vmatpush2.bf16.msra.mxu0 0
  %577 = vmatprep.mubr.bf16.mxu0 0
  %578 = vmatmul.mubr.bf16.gmra.mxu0 %v509
  %v579 = vpop.f32.mrf.mxu0
  %v580 = vadd.f32 0.0, %v579
  %v581 = vpop.f32.mrf.mxu0
  %v582 = vpop.f32.mrf.mxu0
  %v583 = vadd.f32 0.0, %v582
  %v584 = vpop.f32.mrf.mxu0
  %585 = vmatprep.mubr.bf16.mxu0 0
  %586 = vmatmul.mubr.bf16.gmra.mxu0 %v510
  %v587 = vpop.f32.mrf.mxu0
  %v588 = vadd.f32 0.0, %v587
  %v589 = vpop.f32.mrf.mxu0
  %v590 = vpop.f32.mrf.mxu0
  %v591 = vadd.f32 0.0, %v590
  %v592 = vpop.f32.mrf.mxu0
  %593 = vmatprep.mubr.bf16.mxu0 0
  %594 = vmatmul.mubr.bf16.gmra.mxu0 %v511
  %v595 = vpop.f32.mrf.mxu0
  %v596 = vadd.f32 0.0, %v595
  %v597 = vpop.f32.mrf.mxu0
  %v598 = vpop.f32.mrf.mxu0
  %v599 = vadd.f32 0.0, %v598
  %v600 = vpop.f32.mrf.mxu0
  %601 = vmatprep.mubr.bf16.mxu0 0
  %602 = vmatmul.mubr.bf16.gmra.mxu0 %v512
  %v603 = vpop.f32.mrf.mxu0
  %v604 = vadd.f32 0.0, %v603
  %v605 = vpop.f32.mrf.mxu0
  %v606 = vpop.f32.mrf.mxu0
  %v607 = vadd.f32 0.0, %v606
  %v608 = vpop.f32.mrf.mxu0
  %609 = vmatprep.mubr.bf16.mxu0 0
  %610 = vmatmul.mubr.bf16.gmra.mxu0 %v513
  %v611 = vpop.f32.mrf.mxu0
  %v612 = vadd.f32 0.0, %v611
  %v613 = vpop.f32.mrf.mxu0
  %v614 = vpop.f32.mrf.mxu0
  %v615 = vadd.f32 0.0, %v614
  %v616 = vpop.f32.mrf.mxu0
  %617 = vmatprep.mubr.bf16.mxu0 0
  %618 = vmatmul.mubr.bf16.gmra.mxu0 %v514
  %v619 = vpop.f32.mrf.mxu0
  %v620 = vadd.f32 0.0, %v619
  %v621 = vpop.f32.mrf.mxu0
  %v622 = vpop.f32.mrf.mxu0
  %v623 = vadd.f32 0.0, %v622
  %v624 = vpop.f32.mrf.mxu0
  %625 = vmatprep.mubr.bf16.mxu0 0
  %626 = vmatmul.mubr.bf16.gmra.mxu0 %v515
  %v627 = vpop.f32.mrf.mxu0
  %v628 = vadd.f32 0.0, %v627
  %v629 = vpop.f32.mrf.mxu0
  %v630 = vpop.f32.mrf.mxu0
  %v631 = vadd.f32 0.0, %v630
  %v632 = vpop.f32.mrf.mxu0
  %633 = vmatprep.mubr.bf16.mxu0 0
  %634 = vmatmul.mubr.bf16.gmra.mxu0 %v516
  %v635 = vpop.f32.mrf.mxu0
  %v636 = vadd.f32 0.0, %v635
  %v637 = vpop.f32.mrf.mxu0
  %v638 = vpop.f32.mrf.mxu0
  %v639 = vadd.f32 0.0, %v638
  %v640 = vpop.f32.mrf.mxu0
  %641 = vmatprep.mubr.bf16.mxu0 0
  %642 = vmatmul.mubr.bf16.gmra.mxu0 %v517
  %v643 = vpop.f32.mrf.mxu0
  %v644 = vadd.f32 0.0, %v643
  %v645 = vpop.f32.mrf.mxu0
  %v646 = vpop.f32.mrf.mxu0
  %v647 = vadd.f32 0.0, %v646
  %v648 = vpop.f32.mrf.mxu0
  %649 = vmatprep.mubr.bf16.mxu0 0
  %650 = vmatmul.mubr.bf16.gmra.mxu0 %v518
  %v651 = vpop.f32.mrf.mxu0
  %v652 = vadd.f32 0.0, %v651
  %v653 = vpop.f32.mrf.mxu0
  %v654 = vpop.f32.mrf.mxu0
  %v655 = vadd.f32 0.0, %v654
  %v656 = vpop.f32.mrf.mxu0
  %657 = vmatprep.mubr.bf16.mxu0 0
  %658 = vmatmul.mubr.bf16.gmra.mxu0 %v519
  %v659 = vpop.f32.mrf.mxu0
  %v660 = vadd.f32 0.0, %v659
  %v661 = vpop.f32.mrf.mxu0
  %v662 = vpop.f32.mrf.mxu0
  %v663 = vadd.f32 0.0, %v662
  %v664 = vpop.f32.mrf.mxu0
  %665 = vmatprep.mubr.bf16.mxu0 0
  %666 = vmatmul.mubr.bf16.gmra.mxu0 %v520
  %v667 = vpop.f32.mrf.mxu0
  %v668 = vadd.f32 0.0, %v667
  %v669 = vpop.f32.mrf.mxu0
  %v670 = vpop.f32.mrf.mxu0
  %v671 = vadd.f32 0.0, %v670
  %v672 = vpop.f32.mrf.mxu0
  %673 = vmatprep.mubr.bf16.mxu0 0
  %674 = vmatmul.mubr.bf16.gmra.mxu0 %v521
  %v675 = vpop.f32.mrf.mxu0
  %v676 = vadd.f32 0.0, %v675
  %v677 = vpop.f32.mrf.mxu0
  %v678 = vpop.f32.mrf.mxu0
  %v679 = vadd.f32 0.0, %v678
  %v680 = vpop.f32.mrf.mxu0
  %681 = vmatprep.mubr.bf16.mxu0 0
  %682 = vmatmul.mubr.bf16.gmra.mxu0 %v522
  %v683 = vpop.f32.mrf.mxu0
  %v684 = vadd.f32 0.0, %v683
  %v685 = vpop.f32.mrf.mxu0
  %v686 = vpop.f32.mrf.mxu0
  %v687 = vadd.f32 0.0, %v686
  %v688 = vpop.f32.mrf.mxu0
  %689 = vmatprep.mubr.bf16.mxu0 0
  %690 = vmatmul.mubr.bf16.gmra.mxu0 %v523
  %v691 = vpop.f32.mrf.mxu0
  %v692 = vadd.f32 0.0, %v691
  %v693 = vpop.f32.mrf.mxu0
  %v694 = vpop.f32.mrf.mxu0
  %v695 = vadd.f32 0.0, %v694
  %v696 = vpop.f32.mrf.mxu0
  %697 = vmatprep.mubr.bf16.mxu0 0
  %698 = vmatmul.mubr.bf16.gmra.mxu0 %v524
  %v699 = vpop.f32.mrf.mxu0
  %v700 = vadd.f32 0.0, %v699
  %v701 = vpop.f32.mrf.mxu0
  %v702 = vpop.f32.mrf.mxu0
  %v703 = vadd.f32 0.0, %v702
  %v704 = vpop.f32.mrf.mxu0
  %705 = vmatprep.mubr.bf16.mxu0 0
  %706 = vmatmul.mubr.bf16.gmra.mxu0 %v525
  %v707 = vpop.f32.mrf.mxu0
  %v708 = vadd.f32 0.0, %v707
  %v709 = vpop.f32.mrf.mxu0
  %v710 = vpop.f32.mrf.mxu0
  %v711 = vadd.f32 0.0, %v710
  %v712 = vpop.f32.mrf.mxu0
  %713 = vmatprep.mubr.bf16.mxu0 0
  %714 = vmatmul.mubr.bf16.gmra.mxu0 %v526
  %v715 = vpop.f32.mrf.mxu0
  %v716 = vadd.f32 0.0, %v715
  %v717 = vpop.f32.mrf.mxu0
  %v718 = vpop.f32.mrf.mxu0
  %v719 = vadd.f32 0.0, %v718
  %v720 = vpop.f32.mrf.mxu0
  %721 = vdwg.mxu0
  %v722 = vmax.f32 %v258, %v580
  %v723 = vmax.f32 %v261, %v583
  %v724 = vmax.f32 %v266, %v588
  %v725 = vmax.f32 %v269, %v591
  %v726 = vmax.f32 %v274, %v596
  %v727 = vmax.f32 %v277, %v599
  %v728 = vmax.f32 %v282, %v604
  %v729 = vmax.f32 %v285, %v607
  %v730 = vmax.f32 %v290, %v612
  %v731 = vmax.f32 %v293, %v615
  %v732 = vmax.f32 %v298, %v620
  %v733 = vmax.f32 %v301, %v623
  %v734 = vmax.f32 %v306, %v628
  %v735 = vmax.f32 %v309, %v631
  %v736 = vmax.f32 %v314, %v636
  %v737 = vmax.f32 %v317, %v639
  %v738 = vmax.f32 %v322, %v644
  %v739 = vmax.f32 %v325, %v647
  %v740 = vmax.f32 %v330, %v652
  %v741 = vmax.f32 %v333, %v655
  %v742 = vmax.f32 %v338, %v660
  %v743 = vmax.f32 %v341, %v663
  %v744 = vmax.f32 %v346, %v668
  %v745 = vmax.f32 %v349, %v671
  %v746 = vmax.f32 %v354, %v676
  %v747 = vmax.f32 %v357, %v679
  %v748 = vmax.f32 %v362, %v684
  %v749 = vmax.f32 %v365, %v687
  %v750 = vmax.f32 %v370, %v692
  %v751 = vmax.f32 %v373, %v695
  %v752 = vmax.f32 %v378, %v700
  %v753 = vmax.f32 %v381, %v703
  %v754 = vmax.f32 %v386, %v708
  %v755 = vmax.f32 %v389, %v711
  %v756 = vmax.f32 %v394, %v716
  %v757 = vmax.f32 %v397, %v719
  %s758 = scalar_lea.vmem %s0, 288
  %v759 = vld [vmem:[%s758] sm:$0xf]
  %v760 = vld [vmem:[%s758 + $0x4] sm:$0xf]
  %v761 = vld [vmem:[%s758 + $0x8] sm:$0xf]
  %v762 = vld [vmem:[%s758 + $0xc] sm:$0xf]
  %v763 = vld [vmem:[%s758 + $0x10] sm:$0xf]
  %v764 = vld [vmem:[%s758 + $0x14] sm:$0xf]
  %v765 = vld [vmem:[%s758 + $0x18] sm:$0xf]
  %v766 = vld [vmem:[%s758 + $0x1c] sm:$0xf]
  %v767 = vld [vmem:[%s758 + $0x20] sm:$0xf]
  %v768 = vld [vmem:[%s758 + $0x24] sm:$0xf]
  %v769 = vld [vmem:[%s758 + $0x28] sm:$0xf]
  %v770 = vld [vmem:[%s758 + $0x2c] sm:$0xf]
  %v771 = vld [vmem:[%s758 + $0x30] sm:$0xf]
  %v772 = vld [vmem:[%s758 + $0x34] sm:$0xf]
  %v773 = vld [vmem:[%s758 + $0x38] sm:$0xf]
  %v774 = vld [vmem:[%s758 + $0x3c] sm:$0xf]
  %v775 = vld [vmem:[%s758 + $0x40] sm:$0xf]
  %v776 = vld [vmem:[%s758 + $0x44] sm:$0xf]
  %v777 = vld [vmem:[%s758 + $0x48] sm:$0xf]
  %v778 = vld [vmem:[%s758 + $0x4c] sm:$0xf]
  %v779 = vld [vmem:[%s758 + $0x50] sm:$0xf]
  %v780 = vld [vmem:[%s758 + $0x54] sm:$0xf]
  %v781 = vld [vmem:[%s758 + $0x58] sm:$0xf]
  %v782 = vld [vmem:[%s758 + $0x5c] sm:$0xf]
  %v783 = vld [vmem:[%s758 + $0x60] sm:$0xf]
  %v784 = vld [vmem:[%s758 + $0x64] sm:$0xf]
  %v785 = vld [vmem:[%s758 + $0x68] sm:$0xf]
  %v786 = vld [vmem:[%s758 + $0x6c] sm:$0xf]
  %v787 = vld [vmem:[%s758 + $0x70] sm:$0xf]
  %v788 = vld [vmem:[%s758 + $0x74] sm:$0xf]
  %v789 = vld [vmem:[%s758 + $0x78] sm:$0xf]
  %v790 = vld [vmem:[%s758 + $0x7c] sm:$0xf]
  %v791 = vld [vmem:[%s758 + $0x80] sm:$0xf]
  %v792 = vld [vmem:[%s758 + $0x84] sm:$0xf]
  %v793 = vld [vmem:[%s758 + $0x88] sm:$0xf]
  %v794 = vld [vmem:[%s758 + $0x8c] sm:$0xf]
  %v831 = vunpack.c.l.b16 %v759
  %v832 = vunpack.c.l.b16 %v760
  %v833 = vunpack.c.l.b16 %v761
  %v834 = vunpack.c.l.b16 %v762
  %v835 = vunpack.c.l.b16 %v763
  %v836 = vunpack.c.l.b16 %v764
  %v837 = vunpack.c.l.b16 %v765
  %v838 = vunpack.c.l.b16 %v766
  %v839 = vunpack.c.l.b16 %v767
  %v840 = vunpack.c.l.b16 %v768
  %v841 = vunpack.c.l.b16 %v769
  %v842 = vunpack.c.l.b16 %v770
  %v843 = vunpack.c.l.b16 %v771
  %v844 = vunpack.c.l.b16 %v772
  %v845 = vunpack.c.l.b16 %v773
  %v846 = vunpack.c.l.b16 %v774
  %v847 = vunpack.c.l.b16 %v775
  %v848 = vunpack.c.l.b16 %v776
  %v849 = vunpack.c.l.b16 %v777
  %v850 = vunpack.c.l.b16 %v778
  %v851 = vunpack.c.l.b16 %v779
  %v852 = vunpack.c.l.b16 %v780
  %v853 = vunpack.c.l.b16 %v781
  %v854 = vunpack.c.l.b16 %v782
  %v855 = vunpack.c.l.b16 %v783
  %v856 = vunpack.c.l.b16 %v784
  %v857 = vunpack.c.l.b16 %v785
  %v858 = vunpack.c.l.b16 %v786
  %v859 = vunpack.c.l.b16 %v787
  %v860 = vunpack.c.l.b16 %v788
  %v861 = vunpack.c.l.b16 %v789
  %v862 = vunpack.c.l.b16 %v790
  %v863 = vunpack.c.l.b16 %v791
  %v864 = vunpack.c.l.b16 %v792
  %v865 = vunpack.c.l.b16 %v793
  %v866 = vunpack.c.l.b16 %v794
  %v867 = vpack.c.b16 %v832, %v831
  %v868 = vpack.c.b16 %v834, %v833
  %v869 = vpack.c.b16 %v836, %v835
  %v870 = vpack.c.b16 %v838, %v837
  %v871 = vpack.c.b16 %v840, %v839
  %v872 = vpack.c.b16 %v842, %v841
  %v873 = vpack.c.b16 %v844, %v843
  %v874 = vpack.c.b16 %v846, %v845
  %v875 = vpack.c.b16 %v848, %v847
  %v876 = vpack.c.b16 %v850, %v849
  %v877 = vpack.c.b16 %v852, %v851
  %v878 = vpack.c.b16 %v854, %v853
  %v879 = vpack.c.b16 %v856, %v855
  %v880 = vpack.c.b16 %v858, %v857
  %v881 = vpack.c.b16 %v860, %v859
  %v882 = vpack.c.b16 %v862, %v861
  %v883 = vpack.c.b16 %v864, %v863
  %v884 = vpack.c.b16 %v866, %v865
  %903 = vmatprep.subr.bf16.mxu0 0
  %904 = vmatpush1.bf16.msra.mxu0 %v214
  %905 = vmatprep.subr.bf16.mxu0 0
  %906 = vmatpush1.bf16.msra.mxu0 %v213
  %907 = vmatprep.subr.bf16.mxu0 0
  %908 = vmatpush1.bf16.msra.mxu0 %v212
  %909 = vmatprep.subr.bf16.mxu0 0
  %910 = vmatpush1.bf16.msra.mxu0 %v211
  %911 = vmatprep.subr.bf16.mxu0 0
  %912 = vmatpush1.bf16.msra.mxu0 %v210
  %913 = vmatprep.subr.bf16.mxu0 0
  %914 = vmatpush1.bf16.msra.mxu0 %v209
  %915 = vmatprep.subr.bf16.mxu0 0
  %916 = vmatpush1.bf16.msra.mxu0 %v208
  %917 = vmatprep.subr.bf16.mxu0 0
  %918 = vmatpush1.bf16.msra.mxu0 %v207
  %919 = vmatprep.subr.bf16.mxu0 0
  %920 = vmatpush2.bf16.msra.mxu0 0
  %921 = vmatprep.subr.bf16.mxu0 0
  %922 = vmatpush2.bf16.msra.mxu0 0
  %923 = vmatprep.subr.bf16.mxu0 0
  %924 = vmatpush2.bf16.msra.mxu0 0
  %925 = vmatprep.subr.bf16.mxu0 0
  %926 = vmatpush2.bf16.msra.mxu0 0
  %927 = vmatprep.subr.bf16.mxu0 0
  %928 = vmatpush2.bf16.msra.mxu0 0
  %929 = vmatprep.subr.bf16.mxu0 0
  %930 = vmatpush2.bf16.msra.mxu0 0
  %931 = vmatprep.subr.bf16.mxu0 0
  %932 = vmatpush2.bf16.msra.mxu0 0
  %933 = vmatprep.subr.bf16.mxu0 0
  %934 = vmatpush2.bf16.msra.mxu0 0
  %935 = vmatprep.mubr.bf16.mxu0 0
  %936 = vmatmul.mubr.bf16.gmra.mxu0 %v867
  %v937 = vpop.f32.mrf.mxu0
  %v938 = vadd.f32 0.0, %v937
  %v939 = vpop.f32.mrf.mxu0
  %v940 = vpop.f32.mrf.mxu0
  %v941 = vadd.f32 0.0, %v940
  %v942 = vpop.f32.mrf.mxu0
  %943 = vmatprep.mubr.bf16.mxu0 0
  %944 = vmatmul.mubr.bf16.gmra.mxu0 %v868
  %v945 = vpop.f32.mrf.mxu0
  %v946 = vadd.f32 0.0, %v945
  %v947 = vpop.f32.mrf.mxu0
  %v948 = vpop.f32.mrf.mxu0
  %v949 = vadd.f32 0.0, %v948
  %v950 = vpop.f32.mrf.mxu0
  %951 = vmatprep.mubr.bf16.mxu0 0
  %952 = vmatmul.mubr.bf16.gmra.mxu0 %v869
  %v953 = vpop.f32.mrf.mxu0
  %v954 = vadd.f32 0.0, %v953
  %v955 = vpop.f32.mrf.mxu0
  %v956 = vpop.f32.mrf.mxu0
  %v957 = vadd.f32 0.0, %v956
  %v958 = vpop.f32.mrf.mxu0
  %959 = vmatprep.mubr.bf16.mxu0 0
  %960 = vmatmul.mubr.bf16.gmra.mxu0 %v870
  %v961 = vpop.f32.mrf.mxu0
  %v962 = vadd.f32 0.0, %v961
  %v963 = vpop.f32.mrf.mxu0
  %v964 = vpop.f32.mrf.mxu0
  %v965 = vadd.f32 0.0, %v964
  %v966 = vpop.f32.mrf.mxu0
  %967 = vmatprep.mubr.bf16.mxu0 0
  %968 = vmatmul.mubr.bf16.gmra.mxu0 %v871
  %v969 = vpop.f32.mrf.mxu0
  %v970 = vadd.f32 0.0, %v969
  %v971 = vpop.f32.mrf.mxu0
  %v972 = vpop.f32.mrf.mxu0
  %v973 = vadd.f32 0.0, %v972
  %v974 = vpop.f32.mrf.mxu0
  %975 = vmatprep.mubr.bf16.mxu0 0
  %976 = vmatmul.mubr.bf16.gmra.mxu0 %v872
  %v977 = vpop.f32.mrf.mxu0
  %v978 = vadd.f32 0.0, %v977
  %v979 = vpop.f32.mrf.mxu0
  %v980 = vpop.f32.mrf.mxu0
  %v981 = vadd.f32 0.0, %v980
  %v982 = vpop.f32.mrf.mxu0
  %983 = vmatprep.mubr.bf16.mxu0 0
  %984 = vmatmul.mubr.bf16.gmra.mxu0 %v873
  %v985 = vpop.f32.mrf.mxu0
  %v986 = vadd.f32 0.0, %v985
  %v987 = vpop.f32.mrf.mxu0
  %v988 = vpop.f32.mrf.mxu0
  %v989 = vadd.f32 0.0, %v988
  %v990 = vpop.f32.mrf.mxu0
  %991 = vmatprep.mubr.bf16.mxu0 0
  %992 = vmatmul.mubr.bf16.gmra.mxu0 %v874
  %v993 = vpop.f32.mrf.mxu0
  %v994 = vadd.f32 0.0, %v993
  %v995 = vpop.f32.mrf.mxu0
  %v996 = vpop.f32.mrf.mxu0
  %v997 = vadd.f32 0.0, %v996
  %v998 = vpop.f32.mrf.mxu0
  %999 = vmatprep.mubr.bf16.mxu0 0
  %1000 = vmatmul.mubr.bf16.gmra.mxu0 %v875
  %v1001 = vpop.f32.mrf.mxu0
  %v1002 = vadd.f32 0.0, %v1001
  %v1003 = vpop.f32.mrf.mxu0
  %v1004 = vpop.f32.mrf.mxu0
  %v1005 = vadd.f32 0.0, %v1004
  %v1006 = vpop.f32.mrf.mxu0
  %1007 = vmatprep.mubr.bf16.mxu0 0
  %1008 = vmatmul.mubr.bf16.gmra.mxu0 %v876
  %v1009 = vpop.f32.mrf.mxu0
  %v1010 = vadd.f32 0.0, %v1009
  %v1011 = vpop.f32.mrf.mxu0
  %v1012 = vpop.f32.mrf.mxu0
  %v1013 = vadd.f32 0.0, %v1012
  %v1014 = vpop.f32.mrf.mxu0
  %1015 = vmatprep.mubr.bf16.mxu0 0
  %1016 = vmatmul.mubr.bf16.gmra.mxu0 %v877
  %v1017 = vpop.f32.mrf.mxu0
  %v1018 = vadd.f32 0.0, %v1017
  %v1019 = vpop.f32.mrf.mxu0
  %v1020 = vpop.f32.mrf.mxu0
  %v1021 = vadd.f32 0.0, %v1020
  %v1022 = vpop.f32.mrf.mxu0
  %1023 = vmatprep.mubr.bf16.mxu0 0
  %1024 = vmatmul.mubr.bf16.gmra.mxu0 %v878
  %v1025 = vpop.f32.mrf.mxu0
  %v1026 = vadd.f32 0.0, %v1025
  %v1027 = vpop.f32.mrf.mxu0
  %v1028 = vpop.f32.mrf.mxu0
  %v1029 = vadd.f32 0.0, %v1028
  %v1030 = vpop.f32.mrf.mxu0
  %1031 = vmatprep.mubr.bf16.mxu0 0
  %1032 = vmatmul.mubr.bf16.gmra.mxu0 %v879
  %v1033 = vpop.f32.mrf.mxu0
  %v1034 = vadd.f32 0.0, %v1033
  %v1035 = vpop.f32.mrf.mxu0
  %v1036 = vpop.f32.mrf.mxu0
  %v1037 = vadd.f32 0.0, %v1036
  %v1038 = vpop.f32.mrf.mxu0
  %1039 = vmatprep.mubr.bf16.mxu0 0
  %1040 = vmatmul.mubr.bf16.gmra.mxu0 %v880
  %v1041 = vpop.f32.mrf.mxu0
  %v1042 = vadd.f32 0.0, %v1041
  %v1043 = vpop.f32.mrf.mxu0
  %v1044 = vpop.f32.mrf.mxu0
  %v1045 = vadd.f32 0.0, %v1044
  %v1046 = vpop.f32.mrf.mxu0
  %1047 = vmatprep.mubr.bf16.mxu0 0
  %1048 = vmatmul.mubr.bf16.gmra.mxu0 %v881
  %v1049 = vpop.f32.mrf.mxu0
  %v1050 = vadd.f32 0.0, %v1049
  %v1051 = vpop.f32.mrf.mxu0
  %v1052 = vpop.f32.mrf.mxu0
  %v1053 = vadd.f32 0.0, %v1052
  %v1054 = vpop.f32.mrf.mxu0
  %1055 = vmatprep.mubr.bf16.mxu0 0
  %1056 = vmatmul.mubr.bf16.gmra.mxu0 %v882
  %v1057 = vpop.f32.mrf.mxu0
  %v1058 = vadd.f32 0.0, %v1057
  %v1059 = vpop.f32.mrf.mxu0
  %v1060 = vpop.f32.mrf.mxu0
  %v1061 = vadd.f32 0.0, %v1060
  %v1062 = vpop.f32.mrf.mxu0
  %1063 = vmatprep.mubr.bf16.mxu0 0
  %1064 = vmatmul.mubr.bf16.gmra.mxu0 %v883
  %v1065 = vpop.f32.mrf.mxu0
  %v1066 = vadd.f32 0.0, %v1065
  %v1067 = vpop.f32.mrf.mxu0
  %v1068 = vpop.f32.mrf.mxu0
  %v1069 = vadd.f32 0.0, %v1068
  %v1070 = vpop.f32.mrf.mxu0
  %1071 = vmatprep.mubr.bf16.mxu0 0
  %1072 = vmatmul.mubr.bf16.gmra.mxu0 %v884
  %v1073 = vpop.f32.mrf.mxu0
  %v1074 = vadd.f32 0.0, %v1073
  %v1075 = vpop.f32.mrf.mxu0
  %v1076 = vpop.f32.mrf.mxu0
  %v1077 = vadd.f32 0.0, %v1076
  %v1078 = vpop.f32.mrf.mxu0
  %1079 = vdwg.mxu0
  %v1080 = vmax.f32 %v722, %v938
  %v1081 = vmax.f32 %v723, %v941
  %v1082 = vmax.f32 %v724, %v946
  %v1083 = vmax.f32 %v725, %v949
  %v1084 = vmax.f32 %v726, %v954
  %v1085 = vmax.f32 %v727, %v957
  %v1086 = vmax.f32 %v728, %v962
  %v1087 = vmax.f32 %v729, %v965
  %v1088 = vmax.f32 %v730, %v970
  %v1089 = vmax.f32 %v731, %v973
  %v1090 = vmax.f32 %v732, %v978
  %v1091 = vmax.f32 %v733, %v981
  %v1092 = vmax.f32 %v734, %v986
  %v1093 = vmax.f32 %v735, %v989
  %v1094 = vmax.f32 %v736, %v994
  %v1095 = vmax.f32 %v737, %v997
  %v1096 = vmax.f32 %v738, %v1002
  %v1097 = vmax.f32 %v739, %v1005
  %v1098 = vmax.f32 %v740, %v1010
  %v1099 = vmax.f32 %v741, %v1013
  %v1100 = vmax.f32 %v742, %v1018
  %v1101 = vmax.f32 %v743, %v1021
  %v1102 = vmax.f32 %v744, %v1026
  %v1103 = vmax.f32 %v745, %v1029
  %v1104 = vmax.f32 %v746, %v1034
  %v1105 = vmax.f32 %v747, %v1037
  %v1106 = vmax.f32 %v748, %v1042
  %v1107 = vmax.f32 %v749, %v1045
  %v1108 = vmax.f32 %v750, %v1050
  %v1109 = vmax.f32 %v751, %v1053
  %v1110 = vmax.f32 %v752, %v1058
  %v1111 = vmax.f32 %v753, %v1061
  %v1112 = vmax.f32 %v754, %v1066
  %v1113 = vmax.f32 %v755, %v1069
  %v1114 = vmax.f32 %v756, %v1074
  %v1115 = vmax.f32 %v757, %v1077
  %s1116 = scalar_lea.vmem %s0, 432
  %v1117 = vld [vmem:[%s1116] sm:$0xf]
  %v1118 = vld [vmem:[%s1116 + $0x4] sm:$0xf]
  %v1119 = vld [vmem:[%s1116 + $0x8] sm:$0xf]
  %v1120 = vld [vmem:[%s1116 + $0xc] sm:$0xf]
  %v1121 = vld [vmem:[%s1116 + $0x10] sm:$0xf]
  %v1122 = vld [vmem:[%s1116 + $0x14] sm:$0xf]
  %v1123 = vld [vmem:[%s1116 + $0x18] sm:$0xf]
  %v1124 = vld [vmem:[%s1116 + $0x1c] sm:$0xf]
  %v1125 = vld [vmem:[%s1116 + $0x20] sm:$0xf]
  %v1126 = vld [vmem:[%s1116 + $0x24] sm:$0xf]
  %v1127 = vld [vmem:[%s1116 + $0x28] sm:$0xf]
  %v1128 = vld [vmem:[%s1116 + $0x2c] sm:$0xf]
  %v1129 = vld [vmem:[%s1116 + $0x30] sm:$0xf]
  %v1130 = vld [vmem:[%s1116 + $0x34] sm:$0xf]
  %v1131 = vld [vmem:[%s1116 + $0x38] sm:$0xf]
  %v1132 = vld [vmem:[%s1116 + $0x3c] sm:$0xf]
  %v1133 = vld [vmem:[%s1116 + $0x40] sm:$0xf]
  %v1134 = vld [vmem:[%s1116 + $0x44] sm:$0xf]
  %v1135 = vld [vmem:[%s1116 + $0x48] sm:$0xf]
  %v1136 = vld [vmem:[%s1116 + $0x4c] sm:$0xf]
  %v1137 = vld [vmem:[%s1116 + $0x50] sm:$0xf]
  %v1138 = vld [vmem:[%s1116 + $0x54] sm:$0xf]
  %v1139 = vld [vmem:[%s1116 + $0x58] sm:$0xf]
  %v1140 = vld [vmem:[%s1116 + $0x5c] sm:$0xf]
  %v1141 = vld [vmem:[%s1116 + $0x60] sm:$0xf]
  %v1142 = vld [vmem:[%s1116 + $0x64] sm:$0xf]
  %v1143 = vld [vmem:[%s1116 + $0x68] sm:$0xf]
  %v1144 = vld [vmem:[%s1116 + $0x6c] sm:$0xf]
  %v1145 = vld [vmem:[%s1116 + $0x70] sm:$0xf]
  %v1146 = vld [vmem:[%s1116 + $0x74] sm:$0xf]
  %v1147 = vld [vmem:[%s1116 + $0x78] sm:$0xf]
  %v1148 = vld [vmem:[%s1116 + $0x7c] sm:$0xf]
  %v1149 = vld [vmem:[%s1116 + $0x80] sm:$0xf]
  %v1150 = vld [vmem:[%s1116 + $0x84] sm:$0xf]
  %v1151 = vld [vmem:[%s1116 + $0x88] sm:$0xf]
  %v1152 = vld [vmem:[%s1116 + $0x8c] sm:$0xf]
  %v1189 = vunpack.c.l.b16 %v1117
  %v1190 = vunpack.c.l.b16 %v1118
  %v1191 = vunpack.c.l.b16 %v1119
  %v1192 = vunpack.c.l.b16 %v1120
  %v1193 = vunpack.c.l.b16 %v1121
  %v1194 = vunpack.c.l.b16 %v1122
  %v1195 = vunpack.c.l.b16 %v1123
  %v1196 = vunpack.c.l.b16 %v1124
  %v1197 = vunpack.c.l.b16 %v1125
  %v1198 = vunpack.c.l.b16 %v1126
  %v1199 = vunpack.c.l.b16 %v1127
  %v1200 = vunpack.c.l.b16 %v1128
  %v1201 = vunpack.c.l.b16 %v1129
  %v1202 = vunpack.c.l.b16 %v1130
  %v1203 = vunpack.c.l.b16 %v1131
  %v1204 = vunpack.c.l.b16 %v1132
  %v1205 = vunpack.c.l.b16 %v1133
  %v1206 = vunpack.c.l.b16 %v1134
  %v1207 = vunpack.c.l.b16 %v1135
  %v1208 = vunpack.c.l.b16 %v1136
  %v1209 = vunpack.c.l.b16 %v1137
  %v1210 = vunpack.c.l.b16 %v1138
  %v1211 = vunpack.c.l.b16 %v1139
  %v1212 = vunpack.c.l.b16 %v1140
  %v1213 = vunpack.c.l.b16 %v1141
  %v1214 = vunpack.c.l.b16 %v1142
  %v1215 = vunpack.c.l.b16 %v1143
  %v1216 = vunpack.c.l.b16 %v1144
  %v1217 = vunpack.c.l.b16 %v1145
  %v1218 = vunpack.c.l.b16 %v1146
  %v1219 = vunpack.c.l.b16 %v1147
  %v1220 = vunpack.c.l.b16 %v1148
  %v1221 = vunpack.c.l.b16 %v1149
  %v1222 = vunpack.c.l.b16 %v1150
  %v1223 = vunpack.c.l.b16 %v1151
  %v1224 = vunpack.c.l.b16 %v1152
  %v1225 = vpack.c.b16 %v1190, %v1189
  %v1226 = vpack.c.b16 %v1192, %v1191
  %v1227 = vpack.c.b16 %v1194, %v1193
  %v1228 = vpack.c.b16 %v1196, %v1195
  %v1229 = vpack.c.b16 %v1198, %v1197
  %v1230 = vpack.c.b16 %v1200, %v1199
  %v1231 = vpack.c.b16 %v1202, %v1201
  %v1232 = vpack.c.b16 %v1204, %v1203
  %v1233 = vpack.c.b16 %v1206, %v1205
  %v1234 = vpack.c.b16 %v1208, %v1207
  %v1235 = vpack.c.b16 %v1210, %v1209
  %v1236 = vpack.c.b16 %v1212, %v1211
  %v1237 = vpack.c.b16 %v1214, %v1213
  %v1238 = vpack.c.b16 %v1216, %v1215
  %v1239 = vpack.c.b16 %v1218, %v1217
  %v1240 = vpack.c.b16 %v1220, %v1219
  %v1241 = vpack.c.b16 %v1222, %v1221
  %v1242 = vpack.c.b16 %v1224, %v1223
  %1261 = vmatprep.subr.bf16.mxu0 0
  %1262 = vmatpush1.bf16.msra.mxu0 %v214
  %1263 = vmatprep.subr.bf16.mxu0 0
  %1264 = vmatpush1.bf16.msra.mxu0 %v213
  %1265 = vmatprep.subr.bf16.mxu0 0
  %1266 = vmatpush1.bf16.msra.mxu0 %v212
  %1267 = vmatprep.subr.bf16.mxu0 0
  %1268 = vmatpush1.bf16.msra.mxu0 %v211
  %1269 = vmatprep.subr.bf16.mxu0 0
  %1270 = vmatpush1.bf16.msra.mxu0 %v210
  %1271 = vmatprep.subr.bf16.mxu0 0
  %1272 = vmatpush1.bf16.msra.mxu0 %v209
  %1273 = vmatprep.subr.bf16.mxu0 0
  %1274 = vmatpush1.bf16.msra.mxu0 %v208
  %1275 = vmatprep.subr.bf16.mxu0 0
  %1276 = vmatpush1.bf16.msra.mxu0 %v207
  %1277 = vmatprep.subr.bf16.mxu0 0
  %1278 = vmatpush2.bf16.msra.mxu0 0
  %1279 = vmatprep.subr.bf16.mxu0 0
  %1280 = vmatpush2.bf16.msra.mxu0 0
  %1281 = vmatprep.subr.bf16.mxu0 0
  %1282 = vmatpush2.bf16.msra.mxu0 0
  %1283 = vmatprep.subr.bf16.mxu0 0
  %1284 = vmatpush2.bf16.msra.mxu0 0
  %1285 = vmatprep.subr.bf16.mxu0 0
  %1286 = vmatpush2.bf16.msra.mxu0 0
  %1287 = vmatprep.subr.bf16.mxu0 0
  %1288 = vmatpush2.bf16.msra.mxu0 0
  %1289 = vmatprep.subr.bf16.mxu0 0
  %1290 = vmatpush2.bf16.msra.mxu0 0
  %1291 = vmatprep.subr.bf16.mxu0 0
  %1292 = vmatpush2.bf16.msra.mxu0 0
  %1293 = vmatprep.mubr.bf16.mxu0 0
  %1294 = vmatmul.mubr.bf16.gmra.mxu0 %v1225
  %v1295 = vpop.f32.mrf.mxu0
  %v1296 = vadd.f32 0.0, %v1295
  %v1297 = vpop.f32.mrf.mxu0
  %v1298 = vpop.f32.mrf.mxu0
  %v1299 = vadd.f32 0.0, %v1298
  %v1300 = vpop.f32.mrf.mxu0
  %1301 = vmatprep.mubr.bf16.mxu0 0
  %1302 = vmatmul.mubr.bf16.gmra.mxu0 %v1226
  %v1303 = vpop.f32.mrf.mxu0
  %v1304 = vadd.f32 0.0, %v1303
  %v1305 = vpop.f32.mrf.mxu0
  %v1306 = vpop.f32.mrf.mxu0
  %v1307 = vadd.f32 0.0, %v1306
  %v1308 = vpop.f32.mrf.mxu0
  %1309 = vmatprep.mubr.bf16.mxu0 0
  %1310 = vmatmul.mubr.bf16.gmra.mxu0 %v1227
  %v1311 = vpop.f32.mrf.mxu0
  %v1312 = vadd.f32 0.0, %v1311
  %v1313 = vpop.f32.mrf.mxu0
  %v1314 = vpop.f32.mrf.mxu0
  %v1315 = vadd.f32 0.0, %v1314
  %v1316 = vpop.f32.mrf.mxu0
  %1317 = vmatprep.mubr.bf16.mxu0 0
  %1318 = vmatmul.mubr.bf16.gmra.mxu0 %v1228
  %v1319 = vpop.f32.mrf.mxu0
  %v1320 = vadd.f32 0.0, %v1319
  %v1321 = vpop.f32.mrf.mxu0
  %v1322 = vpop.f32.mrf.mxu0
  %v1323 = vadd.f32 0.0, %v1322
  %v1324 = vpop.f32.mrf.mxu0
  %1325 = vmatprep.mubr.bf16.mxu0 0
  %1326 = vmatmul.mubr.bf16.gmra.mxu0 %v1229
  %v1327 = vpop.f32.mrf.mxu0
  %v1328 = vadd.f32 0.0, %v1327
  %v1329 = vpop.f32.mrf.mxu0
  %v1330 = vpop.f32.mrf.mxu0
  %v1331 = vadd.f32 0.0, %v1330
  %v1332 = vpop.f32.mrf.mxu0
  %1333 = vmatprep.mubr.bf16.mxu0 0
  %1334 = vmatmul.mubr.bf16.gmra.mxu0 %v1230
  %v1335 = vpop.f32.mrf.mxu0
  %v1336 = vadd.f32 0.0, %v1335
  %v1337 = vpop.f32.mrf.mxu0
  %v1338 = vpop.f32.mrf.mxu0
  %v1339 = vadd.f32 0.0, %v1338
  %v1340 = vpop.f32.mrf.mxu0
  %1341 = vmatprep.mubr.bf16.mxu0 0
  %1342 = vmatmul.mubr.bf16.gmra.mxu0 %v1231
  %v1343 = vpop.f32.mrf.mxu0
  %v1344 = vadd.f32 0.0, %v1343
  %v1345 = vpop.f32.mrf.mxu0
  %v1346 = vpop.f32.mrf.mxu0
  %v1347 = vadd.f32 0.0, %v1346
  %v1348 = vpop.f32.mrf.mxu0
  %1349 = vmatprep.mubr.bf16.mxu0 0
  %1350 = vmatmul.mubr.bf16.gmra.mxu0 %v1232
  %v1351 = vpop.f32.mrf.mxu0
  %v1352 = vadd.f32 0.0, %v1351
  %v1353 = vpop.f32.mrf.mxu0
  %v1354 = vpop.f32.mrf.mxu0
  %v1355 = vadd.f32 0.0, %v1354
  %v1356 = vpop.f32.mrf.mxu0
  %1357 = vmatprep.mubr.bf16.mxu0 0
  %1358 = vmatmul.mubr.bf16.gmra.mxu0 %v1233
  %v1359 = vpop.f32.mrf.mxu0
  %v1360 = vadd.f32 0.0, %v1359
  %v1361 = vpop.f32.mrf.mxu0
  %v1362 = vpop.f32.mrf.mxu0
  %v1363 = vadd.f32 0.0, %v1362
  %v1364 = vpop.f32.mrf.mxu0
  %1365 = vmatprep.mubr.bf16.mxu0 0
  %1366 = vmatmul.mubr.bf16.gmra.mxu0 %v1234
  %v1367 = vpop.f32.mrf.mxu0
  %v1368 = vadd.f32 0.0, %v1367
  %v1369 = vpop.f32.mrf.mxu0
  %v1370 = vpop.f32.mrf.mxu0
  %v1371 = vadd.f32 0.0, %v1370
  %v1372 = vpop.f32.mrf.mxu0
  %1373 = vmatprep.mubr.bf16.mxu0 0
  %1374 = vmatmul.mubr.bf16.gmra.mxu0 %v1235
  %v1375 = vpop.f32.mrf.mxu0
  %v1376 = vadd.f32 0.0, %v1375
  %v1377 = vpop.f32.mrf.mxu0
  %v1378 = vpop.f32.mrf.mxu0
  %v1379 = vadd.f32 0.0, %v1378
  %v1380 = vpop.f32.mrf.mxu0
  %1381 = vmatprep.mubr.bf16.mxu0 0
  %1382 = vmatmul.mubr.bf16.gmra.mxu0 %v1236
  %v1383 = vpop.f32.mrf.mxu0
  %v1384 = vadd.f32 0.0, %v1383
  %v1385 = vpop.f32.mrf.mxu0
  %v1386 = vpop.f32.mrf.mxu0
  %v1387 = vadd.f32 0.0, %v1386
  %v1388 = vpop.f32.mrf.mxu0
  %1389 = vmatprep.mubr.bf16.mxu0 0
  %1390 = vmatmul.mubr.bf16.gmra.mxu0 %v1237
  %v1391 = vpop.f32.mrf.mxu0
  %v1392 = vadd.f32 0.0, %v1391
  %v1393 = vpop.f32.mrf.mxu0
  %v1394 = vpop.f32.mrf.mxu0
  %v1395 = vadd.f32 0.0, %v1394
  %v1396 = vpop.f32.mrf.mxu0
  %1397 = vmatprep.mubr.bf16.mxu0 0
  %1398 = vmatmul.mubr.bf16.gmra.mxu0 %v1238
  %v1399 = vpop.f32.mrf.mxu0
  %v1400 = vadd.f32 0.0, %v1399
  %v1401 = vpop.f32.mrf.mxu0
  %v1402 = vpop.f32.mrf.mxu0
  %v1403 = vadd.f32 0.0, %v1402
  %v1404 = vpop.f32.mrf.mxu0
  %1405 = vmatprep.mubr.bf16.mxu0 0
  %1406 = vmatmul.mubr.bf16.gmra.mxu0 %v1239
  %v1407 = vpop.f32.mrf.mxu0
  %v1408 = vadd.f32 0.0, %v1407
  %v1409 = vpop.f32.mrf.mxu0
  %v1410 = vpop.f32.mrf.mxu0
  %v1411 = vadd.f32 0.0, %v1410
  %v1412 = vpop.f32.mrf.mxu0
  %1413 = vmatprep.mubr.bf16.mxu0 0
  %1414 = vmatmul.mubr.bf16.gmra.mxu0 %v1240
  %v1415 = vpop.f32.mrf.mxu0
  %v1416 = vadd.f32 0.0, %v1415
  %v1417 = vpop.f32.mrf.mxu0
  %v1418 = vpop.f32.mrf.mxu0
  %v1419 = vadd.f32 0.0, %v1418
  %v1420 = vpop.f32.mrf.mxu0
  %1421 = vmatprep.mubr.bf16.mxu0 0
  %1422 = vmatmul.mubr.bf16.gmra.mxu0 %v1241
  %v1423 = vpop.f32.mrf.mxu0
  %v1424 = vadd.f32 0.0, %v1423
  %v1425 = vpop.f32.mrf.mxu0
  %v1426 = vpop.f32.mrf.mxu0
  %v1427 = vadd.f32 0.0, %v1426
  %v1428 = vpop.f32.mrf.mxu0
  %1429 = vmatprep.mubr.bf16.mxu0 0
  %1430 = vmatmul.mubr.bf16.gmra.mxu0 %v1242
  %v1431 = vpop.f32.mrf.mxu0
  %v1432 = vadd.f32 0.0, %v1431
  %v1433 = vpop.f32.mrf.mxu0
  %v1434 = vpop.f32.mrf.mxu0
  %v1435 = vadd.f32 0.0, %v1434
  %v1436 = vpop.f32.mrf.mxu0
  %1437 = vdwg.mxu0
  %v1438 = vmax.f32 %v1080, %v1296
  %v1439 = vmax.f32 %v1081, %v1299
  %v1440 = vmax.f32 %v1082, %v1304
  %v1441 = vmax.f32 %v1083, %v1307
  %v1442 = vmax.f32 %v1084, %v1312
  %v1443 = vmax.f32 %v1085, %v1315
  %v1444 = vmax.f32 %v1086, %v1320
  %v1445 = vmax.f32 %v1087, %v1323
  %v1446 = vmax.f32 %v1088, %v1328
  %v1447 = vmax.f32 %v1089, %v1331
  %v1448 = vmax.f32 %v1090, %v1336
  %v1449 = vmax.f32 %v1091, %v1339
  %v1450 = vmax.f32 %v1092, %v1344
  %v1451 = vmax.f32 %v1093, %v1347
  %v1452 = vmax.f32 %v1094, %v1352
  %v1453 = vmax.f32 %v1095, %v1355
  %v1454 = vmax.f32 %v1096, %v1360
  %v1455 = vmax.f32 %v1097, %v1363
  %v1456 = vmax.f32 %v1098, %v1368
  %v1457 = vmax.f32 %v1099, %v1371
  %v1458 = vmax.f32 %v1100, %v1376
  %v1459 = vmax.f32 %v1101, %v1379
  %v1460 = vmax.f32 %v1102, %v1384
  %v1461 = vmax.f32 %v1103, %v1387
  %v1462 = vmax.f32 %v1104, %v1392
  %v1463 = vmax.f32 %v1105, %v1395
  %v1464 = vmax.f32 %v1106, %v1400
  %v1465 = vmax.f32 %v1107, %v1403
  %v1466 = vmax.f32 %v1108, %v1408
  %v1467 = vmax.f32 %v1109, %v1411
  %v1468 = vmax.f32 %v1110, %v1416
  %v1469 = vmax.f32 %v1111, %v1419
  %v1470 = vmax.f32 %v1112, %v1424
  %v1471 = vmax.f32 %v1113, %v1427
  %v1472 = vmax.f32 %v1114, %v1432
  %v1473 = vmax.f32 %v1115, %v1435
  %v1474 = vld [vmem:[%s2] sm:$0x1]
  %v1476 = vlaneseq
  %v1477 = vshrl.u32 %v1476, 7
  %v1478 = vsub.s32 0, %v1477
  %v1479 = vrot.slane %v1474, %v1478
  %v1481 = vadd.f32 %v1438, %v1479
  %v1482 = vadd.f32 %v1439, %v1479
  %v1483 = vadd.f32 %v1440, %v1479
  %v1484 = vadd.f32 %v1441, %v1479
  %v1485 = vadd.f32 %v1442, %v1479
  %v1486 = vadd.f32 %v1443, %v1479
  %v1487 = vadd.f32 %v1444, %v1479
  %v1488 = vadd.f32 %v1445, %v1479
  %v1489 = vadd.f32 %v1446, %v1479
  %v1490 = vadd.f32 %v1447, %v1479
  %v1491 = vadd.f32 %v1448, %v1479
  %v1492 = vadd.f32 %v1449, %v1479
  %v1493 = vadd.f32 %v1450, %v1479
  %v1494 = vadd.f32 %v1451, %v1479
  %v1495 = vadd.f32 %v1452, %v1479
  %v1496 = vadd.f32 %v1453, %v1479
  %v1497 = vadd.f32 %v1454, %v1479
  %v1498 = vadd.f32 %v1455, %v1479
  %v1499 = vadd.f32 %v1456, %v1479
  %v1500 = vadd.f32 %v1457, %v1479
  %v1501 = vadd.f32 %v1458, %v1479
  %v1502 = vadd.f32 %v1459, %v1479
  %v1503 = vadd.f32 %v1460, %v1479
  %v1504 = vadd.f32 %v1461, %v1479
  %v1505 = vadd.f32 %v1462, %v1479
  %v1506 = vadd.f32 %v1463, %v1479
  %v1507 = vadd.f32 %v1464, %v1479
  %v1508 = vadd.f32 %v1465, %v1479
  %v1509 = vadd.f32 %v1466, %v1479
  %v1510 = vadd.f32 %v1467, %v1479
  %v1511 = vadd.f32 %v1468, %v1479
  %v1512 = vadd.f32 %v1469, %v1479
  %v1513 = vadd.f32 %v1470, %v1479
  %v1514 = vadd.f32 %v1471, %v1479
  %v1515 = vadd.f32 %v1472, %v1479
  %v1516 = vadd.f32 %v1473, %v1479
  %v1517 = vmax.f32 %v1481, 0.0
  %v1518 = vmax.f32 %v1482, 0.0
  %v1519 = vmax.f32 %v1483, 0.0
  %v1520 = vmax.f32 %v1484, 0.0
  %v1521 = vmax.f32 %v1485, 0.0
  %v1522 = vmax.f32 %v1486, 0.0
  %v1523 = vmax.f32 %v1487, 0.0
  %v1524 = vmax.f32 %v1488, 0.0
  %v1525 = vmax.f32 %v1489, 0.0
  %v1526 = vmax.f32 %v1490, 0.0
  %v1527 = vmax.f32 %v1491, 0.0
  %v1528 = vmax.f32 %v1492, 0.0
  %v1529 = vmax.f32 %v1493, 0.0
  %v1530 = vmax.f32 %v1494, 0.0
  %v1531 = vmax.f32 %v1495, 0.0
  %v1532 = vmax.f32 %v1496, 0.0
  %v1533 = vmax.f32 %v1497, 0.0
  %v1534 = vmax.f32 %v1498, 0.0
  %v1535 = vmax.f32 %v1499, 0.0
  %v1536 = vmax.f32 %v1500, 0.0
  %v1537 = vmax.f32 %v1501, 0.0
  %v1538 = vmax.f32 %v1502, 0.0
  %v1539 = vmax.f32 %v1503, 0.0
  %v1540 = vmax.f32 %v1504, 0.0
  %v1541 = vmax.f32 %v1505, 0.0
  %v1542 = vmax.f32 %v1506, 0.0
  %v1543 = vmax.f32 %v1507, 0.0
  %v1544 = vmax.f32 %v1508, 0.0
  %v1545 = vmax.f32 %v1509, 0.0
  %v1546 = vmax.f32 %v1510, 0.0
  %v1547 = vmax.f32 %v1511, 0.0
  %v1548 = vmax.f32 %v1512, 0.0
  %v1549 = vmax.f32 %v1513, 0.0
  %v1550 = vmax.f32 %v1514, 0.0
  %v1551 = vmax.f32 %v1515, 0.0
  %v1552 = vmax.f32 %v1516, 0.0
  %1553 = vst [vmem:[%s3] sm:$0xff] %v1517
  %1554 = vst [vmem:[%s3 + $0x8] sm:$0xff] %v1518
  %1555 = vst [vmem:[%s3 + $0x10] sm:$0xff] %v1519
  %1556 = vst [vmem:[%s3 + $0x18] sm:$0xff] %v1520
  %1557 = vst [vmem:[%s3 + $0x20] sm:$0xff] %v1521
  %1558 = vst [vmem:[%s3 + $0x28] sm:$0xff] %v1522
  %1559 = vst [vmem:[%s3 + $0x30] sm:$0xff] %v1523
  %1560 = vst [vmem:[%s3 + $0x38] sm:$0xff] %v1524
  %1561 = vst [vmem:[%s3 + $0x40] sm:$0xff] %v1525
  %1562 = vst [vmem:[%s3 + $0x48] sm:$0xff] %v1526
  %1563 = vst [vmem:[%s3 + $0x50] sm:$0xff] %v1527
  %1564 = vst [vmem:[%s3 + $0x58] sm:$0xff] %v1528
  %1565 = vst [vmem:[%s3 + $0x60] sm:$0xff] %v1529
  %1566 = vst [vmem:[%s3 + $0x68] sm:$0xff] %v1530
  %1567 = vst [vmem:[%s3 + $0x70] sm:$0xff] %v1531
  %1568 = vst [vmem:[%s3 + $0x78] sm:$0xff] %v1532
  %1569 = vst [vmem:[%s3 + $0x80] sm:$0xff] %v1533
  %1570 = vst [vmem:[%s3 + $0x88] sm:$0xff] %v1534
  %1571 = vst [vmem:[%s3 + $0x90] sm:$0xff] %v1535
  %1572 = vst [vmem:[%s3 + $0x98] sm:$0xff] %v1536
  %1573 = vst [vmem:[%s3 + $0xa0] sm:$0xff] %v1537
  %1574 = vst [vmem:[%s3 + $0xa8] sm:$0xff] %v1538
  %1575 = vst [vmem:[%s3 + $0xb0] sm:$0xff] %v1539
  %1576 = vst [vmem:[%s3 + $0xb8] sm:$0xff] %v1540
  %1577 = vst [vmem:[%s3 + $0xc0] sm:$0xff] %v1541
  %1578 = vst [vmem:[%s3 + $0xc8] sm:$0xff] %v1542
  %1579 = vst [vmem:[%s3 + $0xd0] sm:$0xff] %v1543
  %1580 = vst [vmem:[%s3 + $0xd8] sm:$0xff] %v1544
  %1581 = vst [vmem:[%s3 + $0xe0] sm:$0xff] %v1545
  %1582 = vst [vmem:[%s3 + $0xe8] sm:$0xff] %v1546
  %1583 = vst [vmem:[%s3 + $0xf0] sm:$0xff] %v1547
  %1584 = vst [vmem:[%s3 + $0xf8] sm:$0xff] %v1548
  %1585 = vst [vmem:[%s3 + $0x100] sm:$0xff] %v1549
  %1586 = vst [vmem:[%s3 + $0x108] sm:$0xff] %v1550
  %1587 = vst [vmem:[%s3 + $0x110] sm:$0xff] %v1551
  %1588 = vst [vmem:[%s3 + $0x118] sm:$0xff] %v1552
  // Predicated region
  $region14: #{stn_forward.7} parent=0 // pred_check
    _
  $region15: #{stn_forward.7} parent=0 // pred_check_branch
    %1590 = sbr.rel (0) target = $region17
  $region16: #{stn_forward.7} parent=0 // pred_region
    _
  $region17: #{stn_forward.7} parent=0 // pred_fallthru
    _
  // Predicated region
  $region18: #{stn_forward.7} parent=0 // pred_check
    _
  $region19: #{stn_forward.7} parent=0 // pred_check_branch
    %1592 = sbr.rel (0) target = $region21
  $region20: #{stn_forward.7} parent=0 // pred_region
    _
  $region21: #{stn_forward.7} parent=0 // pred_fallthru
    _

// kernel: stn_forward.8
$region0: #{stn_forward.8}
  #allocation0 [shape = 'u32[]', space=smem, size = 0x4, offset = 0x4, fixed_abs, tag = 'smem constant byte address 0x4 - core index']
  #allocation1 [shape = 'u32[144,128]{1,0:T(1,128)}', space=vmem, size = 0x12000, scoped, tag = 'internal scratch']
  %s0 = inlined_call_operand.vmem [shape: bf16[4,32,256], index: 0, kind: input, shape index: {}]
  %s1 = inlined_call_operand.vmem [shape: bf16[256,128], index: 1, kind: input, shape index: {}]
  %s2 = inlined_call_operand.vmem [shape: f32[1,128], index: 2, kind: input, shape index: {}]
  %s3 = inlined_call_operand.vmem [shape: f32[32,128], index: 3, kind: output, shape index: {}]
  %s4 = sld [smem:[#allocation0]]
  $region22: #{stn_forward.8} parent=0
    _
  %s6 = ssub.s32 1, %s4
  %s7 = scalar_select 0, %s6, %s4
  // Predicated region
  $region2: #{stn_forward.8} parent=0 // pred_check
    _
  $region3: #{stn_forward.8} parent=0 // pred_check_branch
    %9 = sbr.rel (0) target = $region5
  $region4: #{stn_forward.8} parent=0 // pred_region
    _
  $region5: #{stn_forward.8} parent=0 // pred_fallthru
    _
  // Predicated region
  $region6: #{stn_forward.8} parent=0 // pred_check
    _
  $region7: #{stn_forward.8} parent=0 // pred_check_branch
    %11 = sbr.rel (0) target = $region9
  $region8: #{stn_forward.8} parent=0 // pred_region
    _
  $region9: #{stn_forward.8} parent=0 // pred_fallthru
    _
  // Predicated region
  $region10: #{stn_forward.8} parent=0 // pred_check
    _
  $region11: #{stn_forward.8} parent=0 // pred_check_branch
    %13 = sbr.rel (0) target = $region13
  $region12: #{stn_forward.8} parent=0 // pred_region
    _
  $region13: #{stn_forward.8} parent=0 // pred_fallthru
    _
  %v15 = vld [vmem:[%s1] sm:$0xf]
  %v16 = vld [vmem:[%s1 + $0x4] sm:$0xf]
  %v17 = vld [vmem:[%s1 + $0x8] sm:$0xf]
  %v18 = vld [vmem:[%s1 + $0xc] sm:$0xf]
  %v19 = vld [vmem:[%s1 + $0x10] sm:$0xf]
  %v20 = vld [vmem:[%s1 + $0x14] sm:$0xf]
  %v21 = vld [vmem:[%s1 + $0x18] sm:$0xf]
  %v22 = vld [vmem:[%s1 + $0x1c] sm:$0xf]
  %v23 = vld [vmem:[%s1 + $0x20] sm:$0xf]
  %v24 = vld [vmem:[%s1 + $0x24] sm:$0xf]
  %v25 = vld [vmem:[%s1 + $0x28] sm:$0xf]
  %v26 = vld [vmem:[%s1 + $0x2c] sm:$0xf]
  %v27 = vld [vmem:[%s1 + $0x30] sm:$0xf]
  %v28 = vld [vmem:[%s1 + $0x34] sm:$0xf]
  %v29 = vld [vmem:[%s1 + $0x38] sm:$0xf]
  %v30 = vld [vmem:[%s1 + $0x3c] sm:$0xf]
  %v31 = vld [vmem:[%s1 + $0x40] sm:$0xf]
  %v32 = vld [vmem:[%s1 + $0x44] sm:$0xf]
  %v33 = vld [vmem:[%s1 + $0x48] sm:$0xf]
  %v34 = vld [vmem:[%s1 + $0x4c] sm:$0xf]
  %v35 = vld [vmem:[%s1 + $0x50] sm:$0xf]
  %v36 = vld [vmem:[%s1 + $0x54] sm:$0xf]
  %v37 = vld [vmem:[%s1 + $0x58] sm:$0xf]
  %v38 = vld [vmem:[%s1 + $0x5c] sm:$0xf]
  %v39 = vld [vmem:[%s1 + $0x60] sm:$0xf]
  %v40 = vld [vmem:[%s1 + $0x64] sm:$0xf]
  %v41 = vld [vmem:[%s1 + $0x68] sm:$0xf]
  %v42 = vld [vmem:[%s1 + $0x6c] sm:$0xf]
  %v43 = vld [vmem:[%s1 + $0x70] sm:$0xf]
  %v44 = vld [vmem:[%s1 + $0x74] sm:$0xf]
  %v45 = vld [vmem:[%s1 + $0x78] sm:$0xf]
  %v46 = vld [vmem:[%s1 + $0x7c] sm:$0xf]
  %v47 = vld [vmem:[%s0] sm:$0xff]
  %v48 = vld [vmem:[%s0 + $0x8] sm:$0xff]
  %v49 = vld [vmem:[%s0 + $0x10] sm:$0xff]
  %v50 = vld [vmem:[%s0 + $0x18] sm:$0xff]
  %v55 = vunpack.c.l.b16 %v47
  %v56 = vunpack.c.h.b16 %v47
  %v57 = vunpack.c.l.b16 %v48
  %v58 = vunpack.c.h.b16 %v48
  %v59 = vunpack.c.l.b16 %v49
  %v60 = vunpack.c.h.b16 %v49
  %v61 = vunpack.c.l.b16 %v50
  %v62 = vunpack.c.h.b16 %v50
  %v63 = vpack.c.b16 %v57, %v55
  %v64 = vpack.c.b16 %v58, %v56
  %v65 = vpack.c.b16 %v61, %v59
  %v66 = vpack.c.b16 %v62, %v60
  %v103 = vunpack.c.l.b16 %v15
  %v104 = vunpack.c.l.b16 %v16
  %v105 = vunpack.c.l.b16 %v17
  %v106 = vunpack.c.l.b16 %v18
  %v107 = vunpack.c.l.b16 %v19
  %v108 = vunpack.c.l.b16 %v20
  %v109 = vunpack.c.l.b16 %v21
  %v110 = vunpack.c.l.b16 %v22
  %v111 = vunpack.c.l.b16 %v23
  %v112 = vunpack.c.l.b16 %v24
  %v113 = vunpack.c.l.b16 %v25
  %v114 = vunpack.c.l.b16 %v26
  %v115 = vunpack.c.l.b16 %v27
  %v116 = vunpack.c.l.b16 %v28
  %v117 = vunpack.c.l.b16 %v29
  %v118 = vunpack.c.l.b16 %v30
  %v119 = vunpack.c.l.b16 %v31
  %v120 = vunpack.c.l.b16 %v32
  %v121 = vunpack.c.l.b16 %v33
  %v122 = vunpack.c.l.b16 %v34
  %v123 = vunpack.c.l.b16 %v35
  %v124 = vunpack.c.l.b16 %v36
  %v125 = vunpack.c.l.b16 %v37
  %v126 = vunpack.c.l.b16 %v38
  %v127 = vunpack.c.l.b16 %v39
  %v128 = vunpack.c.l.b16 %v40
  %v129 = vunpack.c.l.b16 %v41
  %v130 = vunpack.c.l.b16 %v42
  %v131 = vunpack.c.l.b16 %v43
  %v132 = vunpack.c.l.b16 %v44
  %v133 = vunpack.c.l.b16 %v45
  %v134 = vunpack.c.l.b16 %v46
  %v135 = vpack.c.b16 %v104, %v103
  %v136 = vpack.c.b16 %v106, %v105
  %v137 = vpack.c.b16 %v108, %v107
  %v138 = vpack.c.b16 %v110, %v109
  %v139 = vpack.c.b16 %v112, %v111
  %v140 = vpack.c.b16 %v114, %v113
  %v141 = vpack.c.b16 %v116, %v115
  %v142 = vpack.c.b16 %v118, %v117
  %v143 = vpack.c.b16 %v120, %v119
  %v144 = vpack.c.b16 %v122, %v121
  %v145 = vpack.c.b16 %v124, %v123
  %v146 = vpack.c.b16 %v126, %v125
  %v147 = vpack.c.b16 %v128, %v127
  %v148 = vpack.c.b16 %v130, %v129
  %v149 = vpack.c.b16 %v132, %v131
  %v150 = vpack.c.b16 %v134, %v133
  %167 = vmatprep.subr.bf16.mxu0 0
  %168 = vmatpush1.bf16.msra.mxu0 %v142
  %169 = vmatprep.subr.bf16.mxu0 0
  %170 = vmatpush1.bf16.msra.mxu0 %v141
  %171 = vmatprep.subr.bf16.mxu0 0
  %172 = vmatpush1.bf16.msra.mxu0 %v140
  %173 = vmatprep.subr.bf16.mxu0 0
  %174 = vmatpush1.bf16.msra.mxu0 %v139
  %175 = vmatprep.subr.bf16.mxu0 0
  %176 = vmatpush1.bf16.msra.mxu0 %v138
  %177 = vmatprep.subr.bf16.mxu0 0
  %178 = vmatpush1.bf16.msra.mxu0 %v137
  %179 = vmatprep.subr.bf16.mxu0 0
  %180 = vmatpush1.bf16.msra.mxu0 %v136
  %181 = vmatprep.subr.bf16.mxu0 0
  %182 = vmatpush1.bf16.msra.mxu0 %v135
  %183 = vmatprep.subr.bf16.mxu0 0
  %184 = vmatpush2.bf16.msra.mxu0 %v150
  %185 = vmatprep.subr.bf16.mxu0 0
  %186 = vmatpush2.bf16.msra.mxu0 %v149
  %187 = vmatprep.subr.bf16.mxu0 0
  %188 = vmatpush2.bf16.msra.mxu0 %v148
  %189 = vmatprep.subr.bf16.mxu0 0
  %190 = vmatpush2.bf16.msra.mxu0 %v147
  %191 = vmatprep.subr.bf16.mxu0 0
  %192 = vmatpush2.bf16.msra.mxu0 %v146
  %193 = vmatprep.subr.bf16.mxu0 0
  %194 = vmatpush2.bf16.msra.mxu0 %v145
  %195 = vmatprep.subr.bf16.mxu0 0
  %196 = vmatpush2.bf16.msra.mxu0 %v144
  %197 = vmatprep.subr.bf16.mxu0 0
  %198 = vmatpush2.bf16.msra.mxu0 %v143
  %199 = vmatprep.mubr.bf16.mxu0 %v64
  %200 = vmatmul.mubr.bf16.gmra.mxu0 %v63
  %v201 = vpop.f32.mrf.mxu0
  %v202 = vadd.f32 0.0, %v201
  %v203 = vpop.f32.mrf.mxu0
  %v204 = vpop.f32.mrf.mxu0
  %v205 = vadd.f32 0.0, %v204
  %v206 = vpop.f32.mrf.mxu0
  %207 = vmatprep.mubr.bf16.mxu0 %v66
  %208 = vmatmul.mubr.bf16.gmra.mxu0 %v65
  %v209 = vpop.f32.mrf.mxu0
  %v210 = vadd.f32 0.0, %v209
  %v211 = vpop.f32.mrf.mxu0
  %v212 = vpop.f32.mrf.mxu0
  %v213 = vadd.f32 0.0, %v212
  %v214 = vpop.f32.mrf.mxu0
  %215 = vdwg.mxu0
  %s216 = scalar_lea.vmem %s0, 32
  %v217 = vld [vmem:[%s216] sm:$0xff]
  %v218 = vld [vmem:[%s216 + $0x8] sm:$0xff]
  %v219 = vld [vmem:[%s216 + $0x10] sm:$0xff]
  %v220 = vld [vmem:[%s216 + $0x18] sm:$0xff]
  %v225 = vunpack.c.l.b16 %v217
  %v226 = vunpack.c.h.b16 %v217
  %v227 = vunpack.c.l.b16 %v218
  %v228 = vunpack.c.h.b16 %v218
  %v229 = vunpack.c.l.b16 %v219
  %v230 = vunpack.c.h.b16 %v219
  %v231 = vunpack.c.l.b16 %v220
  %v232 = vunpack.c.h.b16 %v220
  %v233 = vpack.c.b16 %v227, %v225
  %v234 = vpack.c.b16 %v228, %v226
  %v235 = vpack.c.b16 %v231, %v229
  %v236 = vpack.c.b16 %v232, %v230
  %241 = vmatprep.subr.bf16.mxu0 0
  %242 = vmatpush1.bf16.msra.mxu0 %v142
  %243 = vmatprep.subr.bf16.mxu0 0
  %244 = vmatpush1.bf16.msra.mxu0 %v141
  %245 = vmatprep.subr.bf16.mxu0 0
  %246 = vmatpush1.bf16.msra.mxu0 %v140
  %247 = vmatprep.subr.bf16.mxu0 0
  %248 = vmatpush1.bf16.msra.mxu0 %v139
  %249 = vmatprep.subr.bf16.mxu0 0
  %250 = vmatpush1.bf16.msra.mxu0 %v138
  %251 = vmatprep.subr.bf16.mxu0 0
  %252 = vmatpush1.bf16.msra.mxu0 %v137
  %253 = vmatprep.subr.bf16.mxu0 0
  %254 = vmatpush1.bf16.msra.mxu0 %v136
  %255 = vmatprep.subr.bf16.mxu0 0
  %256 = vmatpush1.bf16.msra.mxu0 %v135
  %257 = vmatprep.subr.bf16.mxu0 0
  %258 = vmatpush2.bf16.msra.mxu0 %v150
  %259 = vmatprep.subr.bf16.mxu0 0
  %260 = vmatpush2.bf16.msra.mxu0 %v149
  %261 = vmatprep.subr.bf16.mxu0 0
  %262 = vmatpush2.bf16.msra.mxu0 %v148
  %263 = vmatprep.subr.bf16.mxu0 0
  %264 = vmatpush2.bf16.msra.mxu0 %v147
  %265 = vmatprep.subr.bf16.mxu0 0
  %266 = vmatpush2.bf16.msra.mxu0 %v146
  %267 = vmatprep.subr.bf16.mxu0 0
  %268 = vmatpush2.bf16.msra.mxu0 %v145
  %269 = vmatprep.subr.bf16.mxu0 0
  %270 = vmatpush2.bf16.msra.mxu0 %v144
  %271 = vmatprep.subr.bf16.mxu0 0
  %272 = vmatpush2.bf16.msra.mxu0 %v143
  %273 = vmatprep.mubr.bf16.mxu0 %v234
  %274 = vmatmul.mubr.bf16.gmra.mxu0 %v233
  %v275 = vpop.f32.mrf.mxu0
  %v276 = vadd.f32 0.0, %v275
  %v277 = vpop.f32.mrf.mxu0
  %v278 = vpop.f32.mrf.mxu0
  %v279 = vadd.f32 0.0, %v278
  %v280 = vpop.f32.mrf.mxu0
  %281 = vmatprep.mubr.bf16.mxu0 %v236
  %282 = vmatmul.mubr.bf16.gmra.mxu0 %v235
  %v283 = vpop.f32.mrf.mxu0
  %v284 = vadd.f32 0.0, %v283
  %v285 = vpop.f32.mrf.mxu0
  %v286 = vpop.f32.mrf.mxu0
  %v287 = vadd.f32 0.0, %v286
  %v288 = vpop.f32.mrf.mxu0
  %289 = vdwg.mxu0
  %v290 = vmax.f32 %v202, %v276
  %v291 = vmax.f32 %v205, %v279
  %v292 = vmax.f32 %v210, %v284
  %v293 = vmax.f32 %v213, %v287
  %s294 = scalar_lea.vmem %s0, 64
  %v295 = vld [vmem:[%s294] sm:$0xff]
  %v296 = vld [vmem:[%s294 + $0x8] sm:$0xff]
  %v297 = vld [vmem:[%s294 + $0x10] sm:$0xff]
  %v298 = vld [vmem:[%s294 + $0x18] sm:$0xff]
  %v303 = vunpack.c.l.b16 %v295
  %v304 = vunpack.c.h.b16 %v295
  %v305 = vunpack.c.l.b16 %v296
  %v306 = vunpack.c.h.b16 %v296
  %v307 = vunpack.c.l.b16 %v297
  %v308 = vunpack.c.h.b16 %v297
  %v309 = vunpack.c.l.b16 %v298
  %v310 = vunpack.c.h.b16 %v298
  %v311 = vpack.c.b16 %v305, %v303
  %v312 = vpack.c.b16 %v306, %v304
  %v313 = vpack.c.b16 %v309, %v307
  %v314 = vpack.c.b16 %v310, %v308
  %319 = vmatprep.subr.bf16.mxu0 0
  %320 = vmatpush1.bf16.msra.mxu0 %v142
  %321 = vmatprep.subr.bf16.mxu0 0
  %322 = vmatpush1.bf16.msra.mxu0 %v141
  %323 = vmatprep.subr.bf16.mxu0 0
  %324 = vmatpush1.bf16.msra.mxu0 %v140
  %325 = vmatprep.subr.bf16.mxu0 0
  %326 = vmatpush1.bf16.msra.mxu0 %v139
  %327 = vmatprep.subr.bf16.mxu0 0
  %328 = vmatpush1.bf16.msra.mxu0 %v138
  %329 = vmatprep.subr.bf16.mxu0 0
  %330 = vmatpush1.bf16.msra.mxu0 %v137
  %331 = vmatprep.subr.bf16.mxu0 0
  %332 = vmatpush1.bf16.msra.mxu0 %v136
  %333 = vmatprep.subr.bf16.mxu0 0
  %334 = vmatpush1.bf16.msra.mxu0 %v135
  %335 = vmatprep.subr.bf16.mxu0 0
  %336 = vmatpush2.bf16.msra.mxu0 %v150
  %337 = vmatprep.subr.bf16.mxu0 0
  %338 = vmatpush2.bf16.msra.mxu0 %v149
  %339 = vmatprep.subr.bf16.mxu0 0
  %340 = vmatpush2.bf16.msra.mxu0 %v148
  %341 = vmatprep.subr.bf16.mxu0 0
  %342 = vmatpush2.bf16.msra.mxu0 %v147
  %343 = vmatprep.subr.bf16.mxu0 0
  %344 = vmatpush2.bf16.msra.mxu0 %v146
  %345 = vmatprep.subr.bf16.mxu0 0
  %346 = vmatpush2.bf16.msra.mxu0 %v145
  %347 = vmatprep.subr.bf16.mxu0 0
  %348 = vmatpush2.bf16.msra.mxu0 %v144
  %349 = vmatprep.subr.bf16.mxu0 0
  %350 = vmatpush2.bf16.msra.mxu0 %v143
  %351 = vmatprep.mubr.bf16.mxu0 %v312
  %352 = vmatmul.mubr.bf16.gmra.mxu0 %v311
  %v353 = vpop.f32.mrf.mxu0
  %v354 = vadd.f32 0.0, %v353
  %v355 = vpop.f32.mrf.mxu0
  %v356 = vpop.f32.mrf.mxu0
  %v357 = vadd.f32 0.0, %v356
  %v358 = vpop.f32.mrf.mxu0
  %359 = vmatprep.mubr.bf16.mxu0 %v314
  %360 = vmatmul.mubr.bf16.gmra.mxu0 %v313
  %v361 = vpop.f32.mrf.mxu0
  %v362 = vadd.f32 0.0, %v361
  %v363 = vpop.f32.mrf.mxu0
  %v364 = vpop.f32.mrf.mxu0
  %v365 = vadd.f32 0.0, %v364
  %v366 = vpop.f32.mrf.mxu0
  %367 = vdwg.mxu0
  %v368 = vmax.f32 %v290, %v354
  %v369 = vmax.f32 %v291, %v357
  %v370 = vmax.f32 %v292, %v362
  %v371 = vmax.f32 %v293, %v365
  %s372 = scalar_lea.vmem %s0, 96
  %v373 = vld [vmem:[%s372] sm:$0xff]
  %v374 = vld [vmem:[%s372 + $0x8] sm:$0xff]
  %v375 = vld [vmem:[%s372 + $0x10] sm:$0xff]
  %v376 = vld [vmem:[%s372 + $0x18] sm:$0xff]
  %v381 = vunpack.c.l.b16 %v373
  %v382 = vunpack.c.h.b16 %v373
  %v383 = vunpack.c.l.b16 %v374
  %v384 = vunpack.c.h.b16 %v374
  %v385 = vunpack.c.l.b16 %v375
  %v386 = vunpack.c.h.b16 %v375
  %v387 = vunpack.c.l.b16 %v376
  %v388 = vunpack.c.h.b16 %v376
  %v389 = vpack.c.b16 %v383, %v381
  %v390 = vpack.c.b16 %v384, %v382
  %v391 = vpack.c.b16 %v387, %v385
  %v392 = vpack.c.b16 %v388, %v386
  %397 = vmatprep.subr.bf16.mxu0 0
  %398 = vmatpush1.bf16.msra.mxu0 %v142
  %399 = vmatprep.subr.bf16.mxu0 0
  %400 = vmatpush1.bf16.msra.mxu0 %v141
  %401 = vmatprep.subr.bf16.mxu0 0
  %402 = vmatpush1.bf16.msra.mxu0 %v140
  %403 = vmatprep.subr.bf16.mxu0 0
  %404 = vmatpush1.bf16.msra.mxu0 %v139
  %405 = vmatprep.subr.bf16.mxu0 0
  %406 = vmatpush1.bf16.msra.mxu0 %v138
  %407 = vmatprep.subr.bf16.mxu0 0
  %408 = vmatpush1.bf16.msra.mxu0 %v137
  %409 = vmatprep.subr.bf16.mxu0 0
  %410 = vmatpush1.bf16.msra.mxu0 %v136
  %411 = vmatprep.subr.bf16.mxu0 0
  %412 = vmatpush1.bf16.msra.mxu0 %v135
  %413 = vmatprep.subr.bf16.mxu0 0
  %414 = vmatpush2.bf16.msra.mxu0 %v150
  %415 = vmatprep.subr.bf16.mxu0 0
  %416 = vmatpush2.bf16.msra.mxu0 %v149
  %417 = vmatprep.subr.bf16.mxu0 0
  %418 = vmatpush2.bf16.msra.mxu0 %v148
  %419 = vmatprep.subr.bf16.mxu0 0
  %420 = vmatpush2.bf16.msra.mxu0 %v147
  %421 = vmatprep.subr.bf16.mxu0 0
  %422 = vmatpush2.bf16.msra.mxu0 %v146
  %423 = vmatprep.subr.bf16.mxu0 0
  %424 = vmatpush2.bf16.msra.mxu0 %v145
  %425 = vmatprep.subr.bf16.mxu0 0
  %426 = vmatpush2.bf16.msra.mxu0 %v144
  %427 = vmatprep.subr.bf16.mxu0 0
  %428 = vmatpush2.bf16.msra.mxu0 %v143
  %429 = vmatprep.mubr.bf16.mxu0 %v390
  %430 = vmatmul.mubr.bf16.gmra.mxu0 %v389
  %v431 = vpop.f32.mrf.mxu0
  %v432 = vadd.f32 0.0, %v431
  %v433 = vpop.f32.mrf.mxu0
  %v434 = vpop.f32.mrf.mxu0
  %v435 = vadd.f32 0.0, %v434
  %v436 = vpop.f32.mrf.mxu0
  %437 = vmatprep.mubr.bf16.mxu0 %v392
  %438 = vmatmul.mubr.bf16.gmra.mxu0 %v391
  %v439 = vpop.f32.mrf.mxu0
  %v440 = vadd.f32 0.0, %v439
  %v441 = vpop.f32.mrf.mxu0
  %v442 = vpop.f32.mrf.mxu0
  %v443 = vadd.f32 0.0, %v442
  %v444 = vpop.f32.mrf.mxu0
  %445 = vdwg.mxu0
  %v446 = vmax.f32 %v368, %v432
  %v447 = vmax.f32 %v369, %v435
  %v448 = vmax.f32 %v370, %v440
  %v449 = vmax.f32 %v371, %v443
  %v450 = vld [vmem:[%s2] sm:$0x1]
  %v452 = vlaneseq
  %v453 = vshrl.u32 %v452, 7
  %v454 = vsub.s32 0, %v453
  %v455 = vrot.slane %v450, %v454
  %v457 = vadd.f32 %v446, %v455
  %v458 = vadd.f32 %v447, %v455
  %v459 = vadd.f32 %v448, %v455
  %v460 = vadd.f32 %v449, %v455
  %v461 = vmax.f32 %v457, 0.0
  %v462 = vmax.f32 %v458, 0.0
  %v463 = vmax.f32 %v459, 0.0
  %v464 = vmax.f32 %v460, 0.0
  %465 = vst [vmem:[%s3] sm:$0xff] %v461
  %466 = vst [vmem:[%s3 + $0x8] sm:$0xff] %v462
  %467 = vst [vmem:[%s3 + $0x10] sm:$0xff] %v463
  %468 = vst [vmem:[%s3 + $0x18] sm:$0xff] %v464
  // Predicated region
  $region14: #{stn_forward.8} parent=0 // pred_check
    _
  $region15: #{stn_forward.8} parent=0 // pred_check_branch
    %470 = sbr.rel (0) target = $region17
  $region16: #{stn_forward.8} parent=0 // pred_region
    _
  $region17: #{stn_forward.8} parent=0 // pred_fallthru
    _
  // Predicated region
  $region18: #{stn_forward.8} parent=0 // pred_check
    _
  $region19: #{stn_forward.8} parent=0 // pred_check_branch
    %472 = sbr.rel (0) target = $region21
  $region20: #{stn_forward.8} parent=0 // pred_region
    _
  $region21: #{stn_forward.8} parent=0 // pred_fallthru
    _

// kernel: stn_forward.9
$region0: #{stn_forward.9}
  #allocation0 [shape = 'u32[]', space=smem, size = 0x4, offset = 0x4, fixed_abs, tag = 'smem constant byte address 0x4 - core index']
  #allocation1 [shape = 'u32[144,128]{1,0:T(1,128)}', space=vmem, size = 0x12000, scoped, tag = 'internal scratch']
  %s0 = inlined_call_operand.vmem [shape: bf16[8,320], index: 0, kind: input, shape index: {}]
  %s1 = inlined_call_operand.vmem [shape: bf16[320,128], index: 1, kind: input, shape index: {}]
  %s2 = inlined_call_operand.vmem [shape: f32[1,128], index: 2, kind: input, shape index: {}]
  %s3 = inlined_call_operand.vmem [shape: bf16[128,128], index: 3, kind: input, shape index: {}]
  %s4 = inlined_call_operand.vmem [shape: f32[1,128], index: 4, kind: input, shape index: {}]
  %s5 = inlined_call_operand.vmem [shape: f32[8,128], index: 5, kind: output, shape index: {}]
  %s6 = sld [smem:[#allocation0]]
  $region30: #{stn_forward.9} parent=0
    _
  %s8 = ssub.s32 1, %s6
  %s9 = scalar_select 0, %s8, %s6
  // Predicated region
  $region2: #{stn_forward.9} parent=0 // pred_check
    _
  $region3: #{stn_forward.9} parent=0 // pred_check_branch
    %11 = sbr.rel (0) target = $region5
  $region4: #{stn_forward.9} parent=0 // pred_region
    _
  $region5: #{stn_forward.9} parent=0 // pred_fallthru
    _
  // Predicated region
  $region6: #{stn_forward.9} parent=0 // pred_check
    _
  $region7: #{stn_forward.9} parent=0 // pred_check_branch
    %13 = sbr.rel (0) target = $region9
  $region8: #{stn_forward.9} parent=0 // pred_region
    _
  $region9: #{stn_forward.9} parent=0 // pred_fallthru
    _
  // Predicated region
  $region10: #{stn_forward.9} parent=0 // pred_check
    _
  $region11: #{stn_forward.9} parent=0 // pred_check_branch
    %15 = sbr.rel (0) target = $region13
  $region12: #{stn_forward.9} parent=0 // pred_region
    _
  $region13: #{stn_forward.9} parent=0 // pred_fallthru
    _
  // Predicated region
  $region14: #{stn_forward.9} parent=0 // pred_check
    _
  $region15: #{stn_forward.9} parent=0 // pred_check_branch
    %17 = sbr.rel (0) target = $region17
  $region16: #{stn_forward.9} parent=0 // pred_region
    _
  $region17: #{stn_forward.9} parent=0 // pred_fallthru
    _
  // Predicated region
  $region18: #{stn_forward.9} parent=0 // pred_check
    _
  $region19: #{stn_forward.9} parent=0 // pred_check_branch
    %19 = sbr.rel (0) target = $region21
  $region20: #{stn_forward.9} parent=0 // pred_region
    _
  $region21: #{stn_forward.9} parent=0 // pred_fallthru
    _
  %v21 = vld [vmem:[%s0] sm:$0xff]
  %v22 = vld [vmem:[%s0 + $0x8] sm:$0xf]
  %v23 = vld [vmem:[%s1] sm:$0xf]
  %v24 = vld [vmem:[%s1 + $0x4] sm:$0xf]
  %v25 = vld [vmem:[%s1 + $0x8] sm:$0xf]
  %v26 = vld [vmem:[%s1 + $0xc] sm:$0xf]
  %v27 = vld [vmem:[%s1 + $0x10] sm:$0xf]
  %v28 = vld [vmem:[%s1 + $0x14] sm:$0xf]
  %v29 = vld [vmem:[%s1 + $0x18] sm:$0xf]
  %v30 = vld [vmem:[%s1 + $0x1c] sm:$0xf]
  %v31 = vld [vmem:[%s1 + $0x20] sm:$0xf]
  %v32 = vld [vmem:[%s1 + $0x24] sm:$0xf]
  %v33 = vld [vmem:[%s1 + $0x28] sm:$0xf]
  %v34 = vld [vmem:[%s1 + $0x2c] sm:$0xf]
  %v35 = vld [vmem:[%s1 + $0x30] sm:$0xf]
  %v36 = vld [vmem:[%s1 + $0x34] sm:$0xf]
  %v37 = vld [vmem:[%s1 + $0x38] sm:$0xf]
  %v38 = vld [vmem:[%s1 + $0x3c] sm:$0xf]
  %v39 = vld [vmem:[%s1 + $0x40] sm:$0xf]
  %v40 = vld [vmem:[%s1 + $0x44] sm:$0xf]
  %v41 = vld [vmem:[%s1 + $0x48] sm:$0xf]
  %v42 = vld [vmem:[%s1 + $0x4c] sm:$0xf]
  %v43 = vld [vmem:[%s1 + $0x50] sm:$0xf]
  %v44 = vld [vmem:[%s1 + $0x54] sm:$0xf]
  %v45 = vld [vmem:[%s1 + $0x58] sm:$0xf]
  %v46 = vld [vmem:[%s1 + $0x5c] sm:$0xf]
  %v47 = vld [vmem:[%s1 + $0x60] sm:$0xf]
  %v48 = vld [vmem:[%s1 + $0x64] sm:$0xf]
  %v49 = vld [vmem:[%s1 + $0x68] sm:$0xf]
  %v50 = vld [vmem:[%s1 + $0x6c] sm:$0xf]
  %v51 = vld [vmem:[%s1 + $0x70] sm:$0xf]
  %v52 = vld [vmem:[%s1 + $0x74] sm:$0xf]
  %v53 = vld [vmem:[%s1 + $0x78] sm:$0xf]
  %v54 = vld [vmem:[%s1 + $0x7c] sm:$0xf]
  %v55 = vld [vmem:[%s1 + $0x80] sm:$0xf]
  %v56 = vld [vmem:[%s1 + $0x84] sm:$0xf]
  %v57 = vld [vmem:[%s1 + $0x88] sm:$0xf]
  %v58 = vld [vmem:[%s1 + $0x8c] sm:$0xf]
  %v59 = vld [vmem:[%s1 + $0x90] sm:$0xf]
  %v60 = vld [vmem:[%s1 + $0x94] sm:$0xf]
  %v61 = vld [vmem:[%s1 + $0x98] sm:$0xf]
  %v62 = vld [vmem:[%s1 + $0x9c] sm:$0xf]
  %v63 = vld [vmem:[%s2] sm:$0x1]
  %v65 = vlaneseq
  %v66 = vshrl.u32 %v65, 7
  %v67 = vsub.s32 0, %v66
  %v68 = vrot.slane %v63, %v67
  %v72 = vunpack.c.l.b16 %v21
  %v73 = vunpack.c.h.b16 %v21
  %v74 = vunpack.c.l.b16 %v22
  %v75 = vpack.c.b16 %v72, %v72
  %v76 = vpack.c.b16 %v73, %v73
  %v77 = vpack.c.b16 %v74, %v74
  %v120 = vunpack.c.l.b16 %v23
  %v121 = vunpack.c.l.b16 %v24
  %v122 = vunpack.c.l.b16 %v25
  %v123 = vunpack.c.l.b16 %v26
  %v124 = vunpack.c.l.b16 %v27
  %v125 = vunpack.c.l.b16 %v28
  %v126 = vunpack.c.l.b16 %v29
  %v127 = vunpack.c.l.b16 %v30
  %v128 = vunpack.c.l.b16 %v31
  %v129 = vunpack.c.l.b16 %v32
  %v130 = vunpack.c.l.b16 %v33
  %v131 = vunpack.c.l.b16 %v34
  %v132 = vunpack.c.l.b16 %v35
  %v133 = vunpack.c.l.b16 %v36
  %v134 = vunpack.c.l.b16 %v37
  %v135 = vunpack.c.l.b16 %v38
  %v136 = vunpack.c.l.b16 %v39
  %v137 = vunpack.c.l.b16 %v40
  %v138 = vunpack.c.l.b16 %v41
  %v139 = vunpack.c.l.b16 %v42
  %v140 = vunpack.c.l.b16 %v43
  %v141 = vunpack.c.l.b16 %v44
  %v142 = vunpack.c.l.b16 %v45
  %v143 = vunpack.c.l.b16 %v46
  %v144 = vunpack.c.l.b16 %v47
  %v145 = vunpack.c.l.b16 %v48
  %v146 = vunpack.c.l.b16 %v49
  %v147 = vunpack.c.l.b16 %v50
  %v148 = vunpack.c.l.b16 %v51
  %v149 = vunpack.c.l.b16 %v52
  %v150 = vunpack.c.l.b16 %v53
  %v151 = vunpack.c.l.b16 %v54
  %v152 = vunpack.c.l.b16 %v55
  %v153 = vunpack.c.l.b16 %v56
  %v154 = vunpack.c.l.b16 %v57
  %v155 = vunpack.c.l.b16 %v58
  %v156 = vunpack.c.l.b16 %v59
  %v157 = vunpack.c.l.b16 %v60
  %v158 = vunpack.c.l.b16 %v61
  %v159 = vunpack.c.l.b16 %v62
  %v160 = vpack.c.b16 %v121, %v120
  %v161 = vpack.c.b16 %v123, %v122
  %v162 = vpack.c.b16 %v125, %v124
  %v163 = vpack.c.b16 %v127, %v126
  %v164 = vpack.c.b16 %v129, %v128
  %v165 = vpack.c.b16 %v131, %v130
  %v166 = vpack.c.b16 %v133, %v132
  %v167 = vpack.c.b16 %v135, %v134
  %v168 = vpack.c.b16 %v137, %v136
  %v169 = vpack.c.b16 %v139, %v138
  %v170 = vpack.c.b16 %v141, %v140
  %v171 = vpack.c.b16 %v143, %v142
  %v172 = vpack.c.b16 %v145, %v144
  %v173 = vpack.c.b16 %v147, %v146
  %v174 = vpack.c.b16 %v149, %v148
  %v175 = vpack.c.b16 %v151, %v150
  %v176 = vpack.c.b16 %v153, %v152
  %v177 = vpack.c.b16 %v155, %v154
  %v178 = vpack.c.b16 %v157, %v156
  %v179 = vpack.c.b16 %v159, %v158
  %vm200 = vcmask 523264
  %v202 = vsel %vm200, %v77, 0
  %204 = vmatprep.subr.bf16.mxu0 0
  %205 = vmatpush1.bf16.msra.mxu0 %v167
  %206 = vmatprep.subr.bf16.mxu0 0
  %207 = vmatpush1.bf16.msra.mxu0 %v166
  %208 = vmatprep.subr.bf16.mxu0 0
  %209 = vmatpush1.bf16.msra.mxu0 %v165
  %210 = vmatprep.subr.bf16.mxu0 0
  %211 = vmatpush1.bf16.msra.mxu0 %v164
  %212 = vmatprep.subr.bf16.mxu0 0
  %213 = vmatpush1.bf16.msra.mxu0 %v163
  %214 = vmatprep.subr.bf16.mxu0 0
  %215 = vmatpush1.bf16.msra.mxu0 %v162
  %216 = vmatprep.subr.bf16.mxu0 0
  %217 = vmatpush1.bf16.msra.mxu0 %v161
  %218 = vmatprep.subr.bf16.mxu0 0
  %219 = vmatpush1.bf16.msra.mxu0 %v160
  %220 = vmatprep.subr.bf16.mxu0 0
  %221 = vmatpush2.bf16.msra.mxu0 %v175
  %222 = vmatprep.subr.bf16.mxu0 0
  %223 = vmatpush2.bf16.msra.mxu0 %v174
  %224 = vmatprep.subr.bf16.mxu0 0
  %225 = vmatpush2.bf16.msra.mxu0 %v173
  %226 = vmatprep.subr.bf16.mxu0 0
  %227 = vmatpush2.bf16.msra.mxu0 %v172
  %228 = vmatprep.subr.bf16.mxu0 0
  %229 = vmatpush2.bf16.msra.mxu0 %v171
  %230 = vmatprep.subr.bf16.mxu0 0
  %231 = vmatpush2.bf16.msra.mxu0 %v170
  %232 = vmatprep.subr.bf16.mxu0 0
  %233 = vmatpush2.bf16.msra.mxu0 %v169
  %234 = vmatprep.subr.bf16.mxu0 0
  %235 = vmatpush2.bf16.msra.mxu0 %v168
  %236 = vmatprep.mubr.bf16.mxu0 %v76
  %237 = vmatmul.mubr.bf16.gmra.mxu0 %v75
  %v238 = vpop.f32.mrf.mxu0
  %v239 = vadd.f32 %v68, %v238
  %v240 = vpop.f32.mrf.mxu0
  %v241 = vpop.f32.mrf.mxu0
  %v242 = vpop.f32.mrf.mxu0
  %243 = vdwg.mxu0
  %244 = vmatprep.subr.bf16.mxu0 0
  %245 = vmatpush1.bf16.msra.mxu0 0
  %246 = vmatprep.subr.bf16.mxu0 0
  %247 = vmatpush1.bf16.msra.mxu0 0
  %248 = vmatprep.subr.bf16.mxu0 0
  %249 = vmatpush1.bf16.msra.mxu0 0
  %250 = vmatprep.subr.bf16.mxu0 0
  %251 = vmatpush1.bf16.msra.mxu0 0
  %252 = vmatprep.subr.bf16.mxu0 0
  %253 = vmatpush1.bf16.msra.mxu0 %v179
  %254 = vmatprep.subr.bf16.mxu0 0
  %255 = vmatpush1.bf16.msra.mxu0 %v178
  %256 = vmatprep.subr.bf16.mxu0 0
  %257 = vmatpush1.bf16.msra.mxu0 %v177
  %258 = vmatprep.subr.bf16.mxu0 0
  %259 = vmatpush1.bf16.msra.mxu0 %v176
  %260 = vmatprep.subr.bf16.mxu0 0
  %261 = vmatpush2.bf16.msra.mxu0 0
  %262 = vmatprep.subr.bf16.mxu0 0
  %263 = vmatpush2.bf16.msra.mxu0 0
  %264 = vmatprep.subr.bf16.mxu0 0
  %265 = vmatpush2.bf16.msra.mxu0 0
  %266 = vmatprep.subr.bf16.mxu0 0
  %267 = vmatpush2.bf16.msra.mxu0 0
  %268 = vmatprep.subr.bf16.mxu0 0
  %269 = vmatpush2.bf16.msra.mxu0 0
  %270 = vmatprep.subr.bf16.mxu0 0
  %271 = vmatpush2.bf16.msra.mxu0 0
  %272 = vmatprep.subr.bf16.mxu0 0
  %273 = vmatpush2.bf16.msra.mxu0 0
  %274 = vmatprep.subr.bf16.mxu0 0
  %275 = vmatpush2.bf16.msra.mxu0 0
  %276 = vmatprep.mubr.bf16.mxu0 0
  %277 = vmatmul.mubr.bf16.gmra.mxu0 %v202
  %v278 = vpop.f32.mrf.mxu0
  %v279 = vadd.f32 %v239, %v278
  %v280 = vpop.f32.mrf.mxu0
  %v281 = vpop.f32.mrf.mxu0
  %v282 = vpop.f32.mrf.mxu0
  %283 = vdwg.mxu0
  %v284 = vmax.f32 %v279, 0.0
  %v285 = vpack.c.bf16 %v284, %v284
  %v286 = vld [vmem:[%s3] sm:$0xf]
  %v287 = vld [vmem:[%s3 + $0x4] sm:$0xf]
  %v288 = vld [vmem:[%s3 + $0x8] sm:$0xf]
  %v289 = vld [vmem:[%s3 + $0xc] sm:$0xf]
  %v290 = vld [vmem:[%s3 + $0x10] sm:$0xf]
  %v291 = vld [vmem:[%s3 + $0x14] sm:$0xf]
  %v292 = vld [vmem:[%s3 + $0x18] sm:$0xf]
  %v293 = vld [vmem:[%s3 + $0x1c] sm:$0xf]
  %v294 = vld [vmem:[%s3 + $0x20] sm:$0xf]
  %v295 = vld [vmem:[%s3 + $0x24] sm:$0xf]
  %v296 = vld [vmem:[%s3 + $0x28] sm:$0xf]
  %v297 = vld [vmem:[%s3 + $0x2c] sm:$0xf]
  %v298 = vld [vmem:[%s3 + $0x30] sm:$0xf]
  %v299 = vld [vmem:[%s3 + $0x34] sm:$0xf]
  %v300 = vld [vmem:[%s3 + $0x38] sm:$0xf]
  %v301 = vld [vmem:[%s3 + $0x3c] sm:$0xf]
  %v302 = vld [vmem:[%s4] sm:$0x1]
  %v304 = vlaneseq
  %v305 = vshrl.u32 %v304, 7
  %v306 = vsub.s32 0, %v305
  %v307 = vrot.slane %v302, %v306
  %v325 = vunpack.c.l.b16 %v286
  %v326 = vunpack.c.l.b16 %v287
  %v327 = vunpack.c.l.b16 %v288
  %v328 = vunpack.c.l.b16 %v289
  %v329 = vunpack.c.l.b16 %v290
  %v330 = vunpack.c.l.b16 %v291
  %v331 = vunpack.c.l.b16 %v292
  %v332 = vunpack.c.l.b16 %v293
  %v333 = vunpack.c.l.b16 %v294
  %v334 = vunpack.c.l.b16 %v295
  %v335 = vunpack.c.l.b16 %v296
  %v336 = vunpack.c.l.b16 %v297
  %v337 = vunpack.c.l.b16 %v298
  %v338 = vunpack.c.l.b16 %v299
  %v339 = vunpack.c.l.b16 %v300
  %v340 = vunpack.c.l.b16 %v301
  %v341 = vpack.c.b16 %v326, %v325
  %v342 = vpack.c.b16 %v328, %v327
  %v343 = vpack.c.b16 %v330, %v329
  %v344 = vpack.c.b16 %v332, %v331
  %v345 = vpack.c.b16 %v334, %v333
  %v346 = vpack.c.b16 %v336, %v335
  %v347 = vpack.c.b16 %v338, %v337
  %v348 = vpack.c.b16 %v340, %v339
  %357 = vmatprep.subr.bf16.mxu0 0
  %358 = vmatpush1.bf16.msra.mxu0 %v348
  %359 = vmatprep.subr.bf16.mxu0 0
  %360 = vmatpush1.bf16.msra.mxu0 %v347
  %361 = vmatprep.subr.bf16.mxu0 0
  %362 = vmatpush1.bf16.msra.mxu0 %v346
  %363 = vmatprep.subr.bf16.mxu0 0
  %364 = vmatpush1.bf16.msra.mxu0 %v345
  %365 = vmatprep.subr.bf16.mxu0 0
  %366 = vmatpush1.bf16.msra.mxu0 %v344
  %367 = vmatprep.subr.bf16.mxu0 0
  %368 = vmatpush1.bf16.msra.mxu0 %v343
  %369 = vmatprep.subr.bf16.mxu0 0
  %370 = vmatpush1.bf16.msra.mxu0 %v342
  %371 = vmatprep.subr.bf16.mxu0 0
  %372 = vmatpush1.bf16.msra.mxu0 %v341
  %373 = vmatprep.subr.bf16.mxu0 0
  %374 = vmatpush2.bf16.msra.mxu0 0
  %375 = vmatprep.subr.bf16.mxu0 0
  %376 = vmatpush2.bf16.msra.mxu0 0
  %377 = vmatprep.subr.bf16.mxu0 0
  %378 = vmatpush2.bf16.msra.mxu0 0
  %379 = vmatprep.subr.bf16.mxu0 0
  %380 = vmatpush2.bf16.msra.mxu0 0
  %381 = vmatprep.subr.bf16.mxu0 0
  %382 = vmatpush2.bf16.msra.mxu0 0
  %383 = vmatprep.subr.bf16.mxu0 0
  %384 = vmatpush2.bf16.msra.mxu0 0
  %385 = vmatprep.subr.bf16.mxu0 0
  %386 = vmatpush2.bf16.msra.mxu0 0
  %387 = vmatprep.subr.bf16.mxu0 0
  %388 = vmatpush2.bf16.msra.mxu0 0
  %389 = vmatprep.mubr.bf16.mxu0 0
  %390 = vmatmul.mubr.bf16.gmra.mxu0 %v285
  %v391 = vpop.f32.mrf.mxu0
  %v392 = vadd.f32 %v307, %v391
  %v393 = vpop.f32.mrf.mxu0
  %v394 = vpop.f32.mrf.mxu0
  %v395 = vpop.f32.mrf.mxu0
  %396 = vdwg.mxu0
  %v397 = vtanh.pop %v392
  %398 = vst [vmem:[%s5] sm:$0xff] %v397
  // Predicated region
  $region22: #{stn_forward.9} parent=0 // pred_check
    _
  $region23: #{stn_forward.9} parent=0 // pred_check_branch
    %400 = sbr.rel (0) target = $region25
  $region24: #{stn_forward.9} parent=0 // pred_region
    _
  $region25: #{stn_forward.9} parent=0 // pred_fallthru
    _
  // Predicated region
  $region26: #{stn_forward.9} parent=0 // pred_check
    _
  $region27: #{stn_forward.9} parent=0 // pred_check_branch
    %402 = sbr.rel (0) target = $region29
  $region28: #{stn_forward.9} parent=0 // pred_region
    _
  $region29: #{stn_forward.9} parent=0 // pred_fallthru
    _

// kernel: stn_forward.10
$region0: #{stn_forward.10}
  #allocation0 [shape = 'u32[]', space=smem, size = 0x4, offset = 0x4, fixed_abs, tag = 'smem constant byte address 0x4 - core index']
  #allocation1 [shape = 'u32[144,128]{1,0:T(1,128)}', space=vmem, size = 0x12000, scoped, tag = 'internal scratch']
  %s0 = inlined_call_operand.vmem [shape: f32[16,784], index: 0, kind: input, shape index: {}]
  %s1 = inlined_call_operand.vmem [shape: f32[2,2,16], index: 1, kind: input, shape index: {}]
  %s2 = inlined_call_operand.vmem [shape: f32[2,28,28], index: 2, kind: input, shape index: {}]
  %s3 = inlined_call_operand.vmem [shape: f32[2,1,784], index: 3, kind: output, shape index: {}]
  %s4 = sld [smem:[#allocation0]]
  $region45: #{stn_forward.10} parent=0
    _
  %s6 = ssub.s32 1, %s4
  %s7 = scalar_select 0, %s6, %s4
  loop: start=0, step=1, limit=4
  $region2: #{stn_forward.10} parent=0 // loop_pre_header
    _
  $region3: #{stn_forward.10} parent=0 // loop_header
    %s9 = sphi 0, %s13
    %p10 = scmp.ge.s32.totalorder %s9, 4
    %s17 = sphi 0, %s17
    %s19 = sphi 0, %s17
    %s20 = sphi 0, %s19
    %s34 = sphi 0, %s20
    %s40 = sphi 0, %s42
    %s43 = sphi 0, %s40
    %s44 = sphi 0, %s43
    %s60 = sphi 0, %s44
    %s66 = sphi 0, %s68
    %s69 = sphi 0, %s66
    %s70 = sphi 0, %s69
    %s86 = sphi 0, %s70
    %s92 = sphi 0, %s94
    %s95 = sphi 0, %s92
    %s96 = sphi 0, %s95
    %s112 = sphi 0, %s96
  $region4: #{stn_forward.10} parent=0 // loop_header_branch
    %12 = sbr.rel (%p10) target = $region8
  $region5: #{stn_forward.10} parent=0 // loop_body
    %s14 = ssub.s32 %s9, 1
    %s15 = ssub.s32 %s9, 2
    %s16 = sadd.s32 %s9, 1
    %s18 = sadd.s32 %s17, 1
    %p21 = scmp.eq.s32.totalorder %s9, 1
    %p22 = scmp.ne.s32.totalorder %s17, %s19
    %p23 = scmp.eq.s32.totalorder %s9, 0
    %p24 = por %p22, %p23
    %p25 = scmp.ne.s32.totalorder %s17, %s19
    %p26 = scmp.eq.s32.totalorder %s14, 1
    %p27 = por %p25, %p26
    %p28 = scmp.ne.s32.totalorder %s19, %s20
    %p29 = scmp.eq.s32.totalorder %s14, 0
    %p30 = por %p28, %p29
    %p31 = scmp.ne.s32.totalorder %s19, %s20
    %p32 = scmp.eq.s32.totalorder %s15, 1
    %p33 = por %p31, %p32
    %p35 = scmp.ne.s32.totalorder %s20, %s34
    %p36 = scmp.eq.s32.totalorder %s15, 0
    %p37 = por %p35, %p36
    %s38 = ssub.s32 %s9, %s16
    %p39 = scmp.eq.s32.totalorder %s38, 0
    %s41 = sadd.s32 %s40, 1
    %s42 = scalar_select %p39, %s40, %s41
    %p45 = pneg %p39
    %p46 = scmp.eq.s32.totalorder %s9, 1
    %p47 = por %p45, %p46
    %p48 = scmp.ne.s32.totalorder %s40, %s43
    %p49 = scmp.eq.s32.totalorder %s9, 0
    %p50 = por %p48, %p49
    %p51 = scmp.ne.s32.totalorder %s40, %s43
    %p52 = scmp.eq.s32.totalorder %s14, 1
    %p53 = por %p51, %p52
    %p54 = scmp.ne.s32.totalorder %s43, %s44
    %p55 = scmp.eq.s32.totalorder %s14, 0
    %p56 = por %p54, %p55
    %p57 = scmp.ne.s32.totalorder %s43, %s44
    %p58 = scmp.eq.s32.totalorder %s15, 1
    %p59 = por %p57, %p58
    %p61 = scmp.ne.s32.totalorder %s44, %s60
    %p62 = scmp.eq.s32.totalorder %s15, 0
    %p63 = por %p61, %p62
    %s64 = ssub.s32 %s9, %s16
    %p65 = scmp.eq.s32.totalorder %s64, 0
    %s67 = sadd.s32 %s66, 1
    %s68 = scalar_select %p65, %s66, %s67
    %p71 = pneg %p65
    %p72 = scmp.eq.s32.totalorder %s9, 1
    %p73 = por %p71, %p72
    %p74 = scmp.ne.s32.totalorder %s66, %s69
    %p75 = scmp.eq.s32.totalorder %s9, 0
    %p76 = por %p74, %p75
    %p77 = scmp.ne.s32.totalorder %s66, %s69
    %p78 = scmp.eq.s32.totalorder %s14, 1
    %p79 = por %p77, %p78
    %p80 = scmp.ne.s32.totalorder %s69, %s70
    %p81 = scmp.eq.s32.totalorder %s14, 0
    %p82 = por %p80, %p81
    %p83 = scmp.ne.s32.totalorder %s69, %s70
    %p84 = scmp.eq.s32.totalorder %s15, 1
    %p85 = por %p83, %p84
    %p87 = scmp.ne.s32.totalorder %s70, %s86
    %p88 = scmp.eq.s32.totalorder %s15, 0
    %p89 = por %p87, %p88
    %s90 = ssub.s32 %s9, %s16
    %p91 = scmp.eq.s32.totalorder %s90, 0
    %s93 = sadd.s32 %s92, 1
    %s94 = scalar_select %p91, %s92, %s93
    %p97 = pneg %p91
    %p98 = scmp.eq.s32.totalorder %s9, 1
    %p99 = por %p97, %p98
    %p100 = scmp.ne.s32.totalorder %s92, %s95
    %p101 = scmp.eq.s32.totalorder %s9, 0
    %p102 = por %p100, %p101
    %p103 = scmp.ne.s32.totalorder %s92, %s95
    %p104 = scmp.eq.s32.totalorder %s14, 1
    %p105 = por %p103, %p104
    %p106 = scmp.ne.s32.totalorder %s95, %s96
    %p107 = scmp.eq.s32.totalorder %s14, 0
    %p108 = por %p106, %p107
    %p109 = scmp.ne.s32.totalorder %s95, %s96
    %p110 = scmp.eq.s32.totalorder %s15, 1
    %p111 = por %p109, %p110
    %p113 = scmp.ne.s32.totalorder %s96, %s112
    %p114 = scmp.eq.s32.totalorder %s15, 0
    %p115 = por %p113, %p114
    %p116 = scmp.le.s32.totalorder 1, %s9
    %p117 = scmp.lt.s32.totalorder %s9, 3
    %p118 = pnand %p116, %p117
    %p119 = pneg %p118
    // Predicated region
    $region9: #{stn_forward.10} parent=5 // pred_check
      _
    $region10: #{stn_forward.10} parent=5 // pred_check_branch
      %121 = sbr.rel (%p118) target = $region12
    $region11: #{stn_forward.10} parent=5 // pred_region
      %s122 = ssub.s32 %s9, 1
      // Predicated region
      $region13: #{stn_forward.10} parent=11 // pred_check
        %p123 = pneg %p30
      $region14: #{stn_forward.10} parent=11 // pred_check_branch
        %125 = sbr.rel (%p123) target = $region16
      $region15: #{stn_forward.10} parent=11 // pred_region
        _
      $region16: #{stn_forward.10} parent=11 // pred_fallthru
        _
    $region12: #{stn_forward.10} parent=5 // pred_fallthru
      _
    %p126 = scmp.lt.s32.totalorder %s9, 2
    // Predicated region
    $region17: #{stn_forward.10} parent=5 // pred_check
      %p127 = pneg %p126
    $region18: #{stn_forward.10} parent=5 // pred_check_branch
      %129 = sbr.rel (%p127) target = $region20
    $region19: #{stn_forward.10} parent=5 // pred_region
      // Predicated region
      $region21: #{stn_forward.10} parent=19 // pred_check
        %p130 = pneg %p50
      $region22: #{stn_forward.10} parent=19 // pred_check_branch
        %132 = sbr.rel (%p130) target = $region24
      $region23: #{stn_forward.10} parent=19 // pred_region
        %p133 = scmp.lt.s32.totalorder %s9, 1
        %s134 = scalar_select %p133, %s9, 1
        %s135 = smul.addr %s134, 2
        %s136 = scalar_lea.vmem %s1, %s135
      $region24: #{stn_forward.10} parent=19 // pred_fallthru
        _
      // Predicated region
      $region25: #{stn_forward.10} parent=19 // pred_check
        %p137 = pneg %p76
      $region26: #{stn_forward.10} parent=19 // pred_check_branch
        %139 = sbr.rel (%p137) target = $region28
      $region27: #{stn_forward.10} parent=19 // pred_region
        %p140 = scmp.lt.s32.totalorder %s9, 1
        %s141 = scalar_select %p140, %s9, 1
        %s142 = smul.addr %s141, 4
        %s143 = smul.addr %s142, 8
        %s144 = scalar_lea.vmem %s2, %s143
      $region28: #{stn_forward.10} parent=19 // pred_fallthru
        _
    $region20: #{stn_forward.10} parent=5 // pred_fallthru
      _
    %p145 = scmp.le.s32.totalorder 1, %s9
    %p146 = scmp.lt.s32.totalorder %s9, 3
    %p147 = pnand %p145, %p146
    %p148 = pneg %p147
    // Predicated region
    $region29: #{stn_forward.10} parent=5 // pred_check
      _
    $region30: #{stn_forward.10} parent=5 // pred_check_branch
      %150 = sbr.rel (%p147) target = $region32
    $region31: #{stn_forward.10} parent=5 // pred_region
      %s151 = ssub.s32 %s9, 1
      %p152 = pneg %p30
      %p153 = pneg %p27
      %p154 = scmp.lt.s32.totalorder %s14, 1
      %s155 = scalar_select %p154, %s14, 1
      %s156 = smul.addr %s155, 2
      %s157 = scalar_lea.vmem %s1, %s156
      %p158 = pneg %p56
      %p159 = pneg %p53
      %p160 = scmp.lt.s32.totalorder %s14, 1
      %s161 = scalar_select %p160, %s14, 1
      %s162 = smul.addr %s161, 4
      %s163 = smul.addr %s162, 8
      %s164 = scalar_lea.vmem %s2, %s163
      %p165 = pneg %p82
      %p166 = pneg %p79
      %p167 = pneg %p108
      %p168 = pneg %p105
      %p169 = scmp.lt.s32.totalorder %s14, 1
      %s170 = scalar_select %p169, %s14, 1
      %s171 = smul.addr %s170, 7
      %s172 = scalar_lea.vmem %s3, %s171
      %p173 = scmp.lt.s32.totalorder %s14, 1
      %s174 = scalar_select %p173, %s14, 1
      %s175 = smul.addr %s174, 2
      %s176 = scalar_lea.vmem %s1, %s175
      %p177 = scmp.lt.s32.totalorder %s14, 1
      %s178 = scalar_select %p177, %s14, 1
      %s179 = smul.addr %s178, 4
      %s180 = smul.addr %s179, 8
      %s181 = scalar_lea.vmem %s2, %s180
      %p182 = scmp.lt.s32.totalorder %s14, 1
      %s183 = scalar_select %p182, %s14, 1
      %s184 = smul.addr %s183, 7
      %s185 = scalar_lea.vmem %s3, %s184
      %v186 = vld [vmem:[%s176] sm:$0x3]
      %v187 = vld [vmem:[%s0] sm:$0xff]
      %v188 = vld [vmem:[%s0 + $0x8] sm:$0xff]
      %v189 = vld [vmem:[%s0 + $0x10] sm:$0xff]
      %v190 = vld [vmem:[%s0 + $0x18] sm:$0xff]
      %v191 = vld [vmem:[%s0 + $0x20] sm:$0xff]
      %v192 = vld [vmem:[%s0 + $0x28] sm:$0xff]
      %v193 = vld [vmem:[%s0 + $0x30] sm:$0xff]
      %v194 = vld [vmem:[%s0 + $0x38] sm:$0xff]
      %v195 = vld [vmem:[%s0 + $0x40] sm:$0xff]
      %v196 = vld [vmem:[%s0 + $0x48] sm:$0xff]
      %v197 = vld [vmem:[%s0 + $0x50] sm:$0xff]
      %v198 = vld [vmem:[%s0 + $0x58] sm:$0xff]
      %v199 = vld [vmem:[%s0 + $0x60] sm:$0xff]
      %v200 = vld [vmem:[%s0 + $0x68] sm:$0xff]
      %vm201 = vcmask 130048
      %v203 = vsel %vm201, %v186, 0
      %205 = vmatprep.subr.mxu0 0.0
      %206 = vmatpush1.msra.mxu0 0.0
      %207 = vmatprep.subr.mxu0 0.0
      %208 = vmatpush1.msra.mxu0 0.0
      %209 = vmatprep.subr.mxu0 0.0
      %210 = vmatpush1.msra.mxu0 0.0
      %211 = vmatprep.subr.mxu0 0.0
      %212 = vmatpush1.msra.mxu0 0.0
      %213 = vmatprep.subr.mxu0 0.0
      %214 = vmatpush1.msra.mxu0 0.0
      %215 = vmatprep.subr.mxu0 0.0
      %216 = vmatpush1.msra.mxu0 0.0
      %217 = vmatprep.subr.mxu0 0.0
      %218 = vmatpush1.msra.mxu0 0.0
      %219 = vmatprep.subr.mxu0 0.0
      %220 = vmatpush1.msra.mxu0 0.0
      %221 = vmatprep.subr.mxu0 0.0
      %222 = vmatpush1.msra.mxu0 0.0
      %223 = vmatprep.subr.mxu0 0.0
      %224 = vmatpush1.msra.mxu0 0.0
      %225 = vmatprep.subr.mxu0 0.0
      %226 = vmatpush1.msra.mxu0 0.0
      %227 = vmatprep.subr.mxu0 0.0
      %228 = vmatpush1.msra.mxu0 0.0
      %229 = vmatprep.subr.mxu0 0.0
      %230 = vmatpush1.msra.mxu0 0.0
      %231 = vmatprep.subr.mxu0 0.0
      %232 = vmatpush1.msra.mxu0 0.0
      %233 = vmatprep.subr.mxu0 %v195
      %234 = vmatpush1.msra.mxu0 %v194
      %235 = vmatprep.subr.mxu0 %v188
      %236 = vmatpush1.msra.mxu0 %v187
      %237 = vmatprep.subr.mxu0 0.0
      %238 = vmatpush2.msra.mxu0 0.0
      %239 = vmatprep.subr.mxu0 0.0
      %240 = vmatpush2.msra.mxu0 0.0
      %241 = vmatprep.subr.mxu0 0.0
      %242 = vmatpush2.msra.mxu0 0.0
      %243 = vmatprep.subr.mxu0 0.0
      %244 = vmatpush2.msra.mxu0 0.0
      %245 = vmatprep.subr.mxu0 0.0
      %246 = vmatpush2.msra.mxu0 0.0
      %247 = vmatprep.subr.mxu0 0.0
      %248 = vmatpush2.msra.mxu0 0.0
      %249 = vmatprep.subr.mxu0 0.0
      %250 = vmatpush2.msra.mxu0 0.0
      %251 = vmatprep.subr.mxu0 0.0
      %252 = vmatpush2.msra.mxu0 0.0
      %253 = vmatprep.subr.mxu0 0.0
      %254 = vmatpush2.msra.mxu0 0.0
      %255 = vmatprep.subr.mxu0 0.0
      %256 = vmatpush2.msra.mxu0 0.0
      %257 = vmatprep.subr.mxu0 0.0
      %258 = vmatpush2.msra.mxu0 0.0
      %259 = vmatprep.subr.mxu0 0.0
      %260 = vmatpush2.msra.mxu0 0.0
      %261 = vmatprep.subr.mxu0 0.0
      %262 = vmatpush2.msra.mxu0 0.0
      %263 = vmatprep.subr.mxu0 0.0
      %264 = vmatpush2.msra.mxu0 0.0
      %265 = vmatprep.subr.mxu0 0.0
      %266 = vmatpush2.msra.mxu0 0.0
      %267 = vmatprep.subr.mxu0 0.0
      %268 = vmatpush2.msra.mxu0 0.0
      %269 = vmatprep.mubr.f32.mxu0 0.0
      %270 = vmatmul.mubr.f32.gmra.mxu0 %v203
      %v271 = vpop.f32.mrf.mxu0
      %v272 = vadd.f32 0.0, %v271
      %v273 = vpop.f32.mrf.mxu0
      %v274 = vadd.f32 0.0, %v273
      %275 = vdwg.mxu0
      %276 = vmatprep.subr.mxu0 0.0
      %277 = vmatpush1.msra.mxu0 0.0
      %278 = vmatprep.subr.mxu0 0.0
      %279 = vmatpush1.msra.mxu0 0.0
      %280 = vmatprep.subr.mxu0 0.0
      %281 = vmatpush1.msra.mxu0 0.0
      %282 = vmatprep.subr.mxu0 0.0
      %283 = vmatpush1.msra.mxu0 0.0
      %284 = vmatprep.subr.mxu0 0.0
      %285 = vmatpush1.msra.mxu0 0.0
      %286 = vmatprep.subr.mxu0 0.0
      %287 = vmatpush1.msra.mxu0 0.0
      %288 = vmatprep.subr.mxu0 0.0
      %289 = vmatpush1.msra.mxu0 0.0
      %290 = vmatprep.subr.mxu0 0.0
      %291 = vmatpush1.msra.mxu0 0.0
      %292 = vmatprep.subr.mxu0 0.0
      %293 = vmatpush1.msra.mxu0 0.0
      %294 = vmatprep.subr.mxu0 0.0
      %295 = vmatpush1.msra.mxu0 0.0
      %296 = vmatprep.subr.mxu0 0.0
      %297 = vmatpush1.msra.mxu0 0.0
      %298 = vmatprep.subr.mxu0 0.0
      %299 = vmatpush1.msra.mxu0 0.0
      %300 = vmatprep.subr.mxu0 0.0
      %301 = vmatpush1.msra.mxu0 0.0
      %302 = vmatprep.subr.mxu0 0.0
      %303 = vmatpush1.msra.mxu0 0.0
      %304 = vmatprep.subr.mxu0 %v197
      %305 = vmatpush1.msra.mxu0 %v196
      %306 = vmatprep.subr.mxu0 %v190
      %307 = vmatpush1.msra.mxu0 %v189
      %308 = vmatprep.subr.mxu0 0.0
      %309 = vmatpush2.msra.mxu0 0.0
      %310 = vmatprep.subr.mxu0 0.0
      %311 = vmatpush2.msra.mxu0 0.0
      %312 = vmatprep.subr.mxu0 0.0
      %313 = vmatpush2.msra.mxu0 0.0
      %314 = vmatprep.subr.mxu0 0.0
      %315 = vmatpush2.msra.mxu0 0.0
      %316 = vmatprep.subr.mxu0 0.0
      %317 = vmatpush2.msra.mxu0 0.0
      %318 = vmatprep.subr.mxu0 0.0
      %319 = vmatpush2.msra.mxu0 0.0
      %320 = vmatprep.subr.mxu0 0.0
      %321 = vmatpush2.msra.mxu0 0.0
      %322 = vmatprep.subr.mxu0 0.0
      %323 = vmatpush2.msra.mxu0 0.0
      %324 = vmatprep.subr.mxu0 0.0
      %325 = vmatpush2.msra.mxu0 0.0
      %326 = vmatprep.subr.mxu0 0.0
      %327 = vmatpush2.msra.mxu0 0.0
      %328 = vmatprep.subr.mxu0 0.0
      %329 = vmatpush2.msra.mxu0 0.0
      %330 = vmatprep.subr.mxu0 0.0
      %331 = vmatpush2.msra.mxu0 0.0
      %332 = vmatprep.subr.mxu0 0.0
      %333 = vmatpush2.msra.mxu0 0.0
      %334 = vmatprep.subr.mxu0 0.0
      %335 = vmatpush2.msra.mxu0 0.0
      %336 = vmatprep.subr.mxu0 0.0
      %337 = vmatpush2.msra.mxu0 0.0
      %338 = vmatprep.subr.mxu0 0.0
      %339 = vmatpush2.msra.mxu0 0.0
      %340 = vmatprep.mubr.f32.mxu0 0.0
      %341 = vmatmul.mubr.f32.gmra.mxu0 %v203
      %v342 = vpop.f32.mrf.mxu0
      %v343 = vadd.f32 0.0, %v342
      %v344 = vpop.f32.mrf.mxu0
      %v345 = vadd.f32 0.0, %v344
      %346 = vdwg.mxu0
      %347 = vmatprep.subr.mxu0 0.0
      %348 = vmatpush1.msra.mxu0 0.0
      %349 = vmatprep.subr.mxu0 0.0
      %350 = vmatpush1.msra.mxu0 0.0
      %351 = vmatprep.subr.mxu0 0.0
      %352 = vmatpush1.msra.mxu0 0.0
      %353 = vmatprep.subr.mxu0 0.0
      %354 = vmatpush1.msra.mxu0 0.0
      %355 = vmatprep.subr.mxu0 0.0
      %356 = vmatpush1.msra.mxu0 0.0
      %357 = vmatprep.subr.mxu0 0.0
      %358 = vmatpush1.msra.mxu0 0.0
      %359 = vmatprep.subr.mxu0 0.0
      %360 = vmatpush1.msra.mxu0 0.0
      %361 = vmatprep.subr.mxu0 0.0
      %362 = vmatpush1.msra.mxu0 0.0
      %363 = vmatprep.subr.mxu0 0.0
      %364 = vmatpush1.msra.mxu0 0.0
      %365 = vmatprep.subr.mxu0 0.0
      %366 = vmatpush1.msra.mxu0 0.0
      %367 = vmatprep.subr.mxu0 0.0
      %368 = vmatpush1.msra.mxu0 0.0
      %369 = vmatprep.subr.mxu0 0.0
      %370 = vmatpush1.msra.mxu0 0.0
      %371 = vmatprep.subr.mxu0 0.0
      %372 = vmatpush1.msra.mxu0 0.0
      %373 = vmatprep.subr.mxu0 0.0
      %374 = vmatpush1.msra.mxu0 0.0
      %375 = vmatprep.subr.mxu0 %v199
      %376 = vmatpush1.msra.mxu0 %v198
      %377 = vmatprep.subr.mxu0 %v192
      %378 = vmatpush1.msra.mxu0 %v191
      %379 = vmatprep.subr.mxu0 0.0
      %380 = vmatpush2.msra.mxu0 0.0
      %381 = vmatprep.subr.mxu0 0.0
      %382 = vmatpush2.msra.mxu0 0.0
      %383 = vmatprep.subr.mxu0 0.0
      %384 = vmatpush2.msra.mxu0 0.0
      %385 = vmatprep.subr.mxu0 0.0
      %386 = vmatpush2.msra.mxu0 0.0
      %387 = vmatprep.subr.mxu0 0.0
      %388 = vmatpush2.msra.mxu0 0.0
      %389 = vmatprep.subr.mxu0 0.0
      %390 = vmatpush2.msra.mxu0 0.0
      %391 = vmatprep.subr.mxu0 0.0
      %392 = vmatpush2.msra.mxu0 0.0
      %393 = vmatprep.subr.mxu0 0.0
      %394 = vmatpush2.msra.mxu0 0.0
      %395 = vmatprep.subr.mxu0 0.0
      %396 = vmatpush2.msra.mxu0 0.0
      %397 = vmatprep.subr.mxu0 0.0
      %398 = vmatpush2.msra.mxu0 0.0
      %399 = vmatprep.subr.mxu0 0.0
      %400 = vmatpush2.msra.mxu0 0.0
      %401 = vmatprep.subr.mxu0 0.0
      %402 = vmatpush2.msra.mxu0 0.0
      %403 = vmatprep.subr.mxu0 0.0
      %404 = vmatpush2.msra.mxu0 0.0
      %405 = vmatprep.subr.mxu0 0.0
      %406 = vmatpush2.msra.mxu0 0.0
      %407 = vmatprep.subr.mxu0 0.0
      %408 = vmatpush2.msra.mxu0 0.0
      %409 = vmatprep.subr.mxu0 0.0
      %410 = vmatpush2.msra.mxu0 0.0
      %411 = vmatprep.mubr.f32.mxu0 0.0
      %412 = vmatmul.mubr.f32.gmra.mxu0 %v203
      %v413 = vpop.f32.mrf.mxu0
      %v414 = vadd.f32 0.0, %v413
      %v415 = vpop.f32.mrf.mxu0
      %v416 = vadd.f32 0.0, %v415
      %417 = vdwg.mxu0
      %418 = vmatprep.subr.mxu0 0.0
      %419 = vmatpush1.msra.mxu0 0.0
      %420 = vmatprep.subr.mxu0 0.0
      %421 = vmatpush1.msra.mxu0 0.0
      %422 = vmatprep.subr.mxu0 0.0
      %423 = vmatpush1.msra.mxu0 0.0
      %424 = vmatprep.subr.mxu0 0.0
      %425 = vmatpush1.msra.mxu0 0.0
      %426 = vmatprep.subr.mxu0 0.0
      %427 = vmatpush1.msra.mxu0 0.0
      %428 = vmatprep.subr.mxu0 0.0
      %429 = vmatpush1.msra.mxu0 0.0
      %430 = vmatprep.subr.mxu0 0.0
      %431 = vmatpush1.msra.mxu0 0.0
      %432 = vmatprep.subr.mxu0 0.0
      %433 = vmatpush1.msra.mxu0 0.0
      %434 = vmatprep.subr.mxu0 0.0
      %435 = vmatpush1.msra.mxu0 0.0
      %436 = vmatprep.subr.mxu0 0.0
      %437 = vmatpush1.msra.mxu0 0.0
      %438 = vmatprep.subr.mxu0 0.0
      %439 = vmatpush1.msra.mxu0 0.0
      %440 = vmatprep.subr.mxu0 0.0
      %441 = vmatpush1.msra.mxu0 0.0
      %442 = vmatprep.subr.mxu0 0.0
      %443 = vmatpush1.msra.mxu0 0.0
      %444 = vmatprep.subr.mxu0 0.0
      %445 = vmatpush1.msra.mxu0 0.0
      %446 = vmatprep.subr.mxu0 0.0
      %447 = vmatpush1.msra.mxu0 %v200
      %448 = vmatprep.subr.mxu0 0.0
      %449 = vmatpush1.msra.mxu0 %v193
      %450 = vmatprep.subr.mxu0 0.0
      %451 = vmatpush2.msra.mxu0 0.0
      %452 = vmatprep.subr.mxu0 0.0
      %453 = vmatpush2.msra.mxu0 0.0
      %454 = vmatprep.subr.mxu0 0.0
      %455 = vmatpush2.msra.mxu0 0.0
      %456 = vmatprep.subr.mxu0 0.0
      %457 = vmatpush2.msra.mxu0 0.0
      %458 = vmatprep.subr.mxu0 0.0
      %459 = vmatpush2.msra.mxu0 0.0
      %460 = vmatprep.subr.mxu0 0.0
      %461 = vmatpush2.msra.mxu0 0.0
      %462 = vmatprep.subr.mxu0 0.0
      %463 = vmatpush2.msra.mxu0 0.0
      %464 = vmatprep.subr.mxu0 0.0
      %465 = vmatpush2.msra.mxu0 0.0
      %466 = vmatprep.subr.mxu0 0.0
      %467 = vmatpush2.msra.mxu0 0.0
      %468 = vmatprep.subr.mxu0 0.0
      %469 = vmatpush2.msra.mxu0 0.0
      %470 = vmatprep.subr.mxu0 0.0
      %471 = vmatpush2.msra.mxu0 0.0
      %472 = vmatprep.subr.mxu0 0.0
      %473 = vmatpush2.msra.mxu0 0.0
      %474 = vmatprep.subr.mxu0 0.0
      %475 = vmatpush2.msra.mxu0 0.0
      %476 = vmatprep.subr.mxu0 0.0
      %477 = vmatpush2.msra.mxu0 0.0
      %478 = vmatprep.subr.mxu0 0.0
      %479 = vmatpush2.msra.mxu0 0.0
      %480 = vmatprep.subr.mxu0 0.0
      %481 = vmatpush2.msra.mxu0 0.0
      %482 = vmatprep.mubr.f32.mxu0 0.0
      %483 = vmatmul.mubr.f32.gmra.mxu0 %v203
      %v484 = vpop.f32.mrf.mxu0
      %v485 = vadd.f32 0.0, %v484
      %v486 = vpop.f32.mrf.mxu0
      %487 = vdwg.mxu0
      %v488 = vadd.f32 %v272, 1.0
      %v489 = vadd.f32 %v274, 1.0
      %v490 = vadd.f32 %v343, 1.0
      %v491 = vadd.f32 %v345, 1.0
      %v492 = vadd.f32 %v414, 1.0
      %v493 = vadd.f32 %v416, 1.0
      %v494 = vadd.f32 %v485, 1.0
      %v495 = vmul.f32 %v488, 13.5
      %v496 = vmul.f32 %v489, 13.5
      %v497 = vmul.f32 %v490, 13.5
      %v498 = vmul.f32 %v491, 13.5
      %v499 = vmul.f32 %v492, 13.5
      %v500 = vmul.f32 %v493, 13.5
      %v501 = vmul.f32 %v494, 13.5
      %v502 = vlaneseq
      %v503 = vshrl.u32 %v502, 7
      %v504 = vadd.s32 %v503, 8
      %v505 = vadd.s32 %v503, 16
      %v506 = vadd.s32 %v503, 24
      %v507 = vcvt.s32.f32 %v503
      %v508 = vcvt.s32.f32 %v504
      %v509 = vcvt.s32.f32 %v505
      %v510 = vcvt.s32.f32 %v506
      %v511 = vlaneseq
      %v512 = vshrl.u32 %v511, 7
      %v513 = vsub.s32 1, %v512
      %v514 = vrot.slane %v495, %v513
      %v515 = vlaneseq
      %v516 = vshrl.u32 %v515, 7
      %v517 = vsub.s32 1, %v516
      %v518 = vrot.slane %v496, %v517
      %v519 = vlaneseq
      %v520 = vshrl.u32 %v519, 7
      %v521 = vsub.s32 1, %v520
      %v522 = vrot.slane %v497, %v521
      %v523 = vlaneseq
      %v524 = vshrl.u32 %v523, 7
      %v525 = vsub.s32 1, %v524
      %v526 = vrot.slane %v498, %v525
      %v527 = vlaneseq
      %v528 = vshrl.u32 %v527, 7
      %v529 = vsub.s32 1, %v528
      %v530 = vrot.slane %v499, %v529
      %v531 = vlaneseq
      %v532 = vshrl.u32 %v531, 7
      %v533 = vsub.s32 1, %v532
      %v534 = vrot.slane %v500, %v533
      %v535 = vlaneseq
      %v536 = vshrl.u32 %v535, 7
      %v537 = vsub.s32 1, %v536
      %v538 = vrot.slane %v501, %v537
      %v539 = vsub.f32 %v514, %v507
      %v540 = vsub.f32 %v518, %v507
      %v541 = vsub.f32 %v522, %v507
      %v542 = vsub.f32 %v526, %v507
      %v543 = vsub.f32 %v530, %v507
      %v544 = vsub.f32 %v534, %v507
      %v545 = vsub.f32 %v538, %v507
      %v546 = vsub.f32 %v514, %v508
      %v547 = vsub.f32 %v518, %v508
      %v548 = vsub.f32 %v522, %v508
      %v549 = vsub.f32 %v526, %v508
      %v550 = vsub.f32 %v530, %v508
      %v551 = vsub.f32 %v534, %v508
      %v552 = vsub.f32 %v538, %v508
      %v553 = vsub.f32 %v514, %v509
      %v554 = vsub.f32 %v518, %v509
      %v555 = vsub.f32 %v522, %v509
      %v556 = vsub.f32 %v526, %v509
      %v557 = vsub.f32 %v530, %v509
      %v558 = vsub.f32 %v534, %v509
      %v559 = vsub.f32 %v538, %v509
      %v560 = vsub.f32 %v514, %v510
      %v561 = vsub.f32 %v518, %v510
      %v562 = vsub.f32 %v522, %v510
      %v563 = vsub.f32 %v526, %v510
      %v564 = vsub.f32 %v530, %v510
      %v565 = vsub.f32 %v534, %v510
      %v566 = vsub.f32 %v538, %v510
      %v567 = vand.u32 2147483647, %v539
      %v568 = vand.u32 2147483647, %v540
      %v569 = vand.u32 2147483647, %v541
      %v570 = vand.u32 2147483647, %v542
      %v571 = vand.u32 2147483647, %v543
      %v572 = vand.u32 2147483647, %v544
      %v573 = vand.u32 2147483647, %v545
      %v574 = vand.u32 2147483647, %v546
      %v575 = vand.u32 2147483647, %v547
      %v576 = vand.u32 2147483647, %v548
      %v577 = vand.u32 2147483647, %v549
      %v578 = vand.u32 2147483647, %v550
      %v579 = vand.u32 2147483647, %v551
      %v580 = vand.u32 2147483647, %v552
      %v581 = vand.u32 2147483647, %v553
      %v582 = vand.u32 2147483647, %v554
      %v583 = vand.u32 2147483647, %v555
      %v584 = vand.u32 2147483647, %v556
      %v585 = vand.u32 2147483647, %v557
      %v586 = vand.u32 2147483647, %v558
      %v587 = vand.u32 2147483647, %v559
      %v588 = vand.u32 2147483647, %v560
      %v589 = vand.u32 2147483647, %v561
      %v590 = vand.u32 2147483647, %v562
      %v591 = vand.u32 2147483647, %v563
      %v592 = vand.u32 2147483647, %v564
      %v593 = vand.u32 2147483647, %v565
      %v594 = vand.u32 2147483647, %v566
      %v595 = vsub.f32 1.0, %v567
      %v596 = vsub.f32 1.0, %v568
      %v597 = vsub.f32 1.0, %v569
      %v598 = vsub.f32 1.0, %v570
      %v599 = vsub.f32 1.0, %v571
      %v600 = vsub.f32 1.0, %v572
      %v601 = vsub.f32 1.0, %v573
      %v602 = vsub.f32 1.0, %v574
      %v603 = vsub.f32 1.0, %v575
      %v604 = vsub.f32 1.0, %v576
      %v605 = vsub.f32 1.0, %v577
      %v606 = vsub.f32 1.0, %v578
      %v607 = vsub.f32 1.0, %v579
      %v608 = vsub.f32 1.0, %v580
      %v609 = vsub.f32 1.0, %v581
      %v610 = vsub.f32 1.0, %v582
      %v611 = vsub.f32 1.0, %v583
      %v612 = vsub.f32 1.0, %v584
      %v613 = vsub.f32 1.0, %v585
      %v614 = vsub.f32 1.0, %v586
      %v615 = vsub.f32 1.0, %v587
      %v616 = vsub.f32 1.0, %v588
      %v617 = vsub.f32 1.0, %v589
      %v618 = vsub.f32 1.0, %v590
      %v619 = vsub.f32 1.0, %v591
      %v620 = vsub.f32 1.0, %v592
      %v621 = vsub.f32 1.0, %v593
      %v622 = vsub.f32 1.0, %v594
      %v623 = vmax.f32 %v595, 0.0
      %v624 = vmax.f32 %v596, 0.0
      %v625 = vmax.f32 %v597, 0.0
      %v626 = vmax.f32 %v598, 0.0
      %v627 = vmax.f32 %v599, 0.0
      %v628 = vmax.f32 %v600, 0.0
      %v629 = vmax.f32 %v601, 0.0
      %v630 = vmax.f32 %v602, 0.0
      %v631 = vmax.f32 %v603, 0.0
      %v632 = vmax.f32 %v604, 0.0
      %v633 = vmax.f32 %v605, 0.0
      %v634 = vmax.f32 %v606, 0.0
      %v635 = vmax.f32 %v607, 0.0
      %v636 = vmax.f32 %v608, 0.0
      %v637 = vmax.f32 %v609, 0.0
      %v638 = vmax.f32 %v610, 0.0
      %v639 = vmax.f32 %v611, 0.0
      %v640 = vmax.f32 %v612, 0.0
      %v641 = vmax.f32 %v613, 0.0
      %v642 = vmax.f32 %v614, 0.0
      %v643 = vmax.f32 %v615, 0.0
      %v644 = vmax.f32 %v616, 0.0
      %v645 = vmax.f32 %v617, 0.0
      %v646 = vmax.f32 %v618, 0.0
      %v647 = vmax.f32 %v619, 0.0
      %v648 = vmax.f32 %v620, 0.0
      %v649 = vmax.f32 %v621, 0.0
      %v650 = vmax.f32 %v622, 0.0
      %v651 = vlaneseq
      %v652 = vshrl.u32 %v651, 7
      %v653 = vsub.s32 0, %v652
      %v654 = vrot.slane %v495, %v653
      %v655 = vlaneseq
      %v656 = vshrl.u32 %v655, 7
      %v657 = vsub.s32 0, %v656
      %v658 = vrot.slane %v496, %v657
      %v659 = vlaneseq
      %v660 = vshrl.u32 %v659, 7
      %v661 = vsub.s32 0, %v660
      %v662 = vrot.slane %v497, %v661
      %v663 = vlaneseq
      %v664 = vshrl.u32 %v663, 7
      %v665 = vsub.s32 0, %v664
      %v666 = vrot.slane %v498, %v665
      %v667 = vlaneseq
      %v668 = vshrl.u32 %v667, 7
      %v669 = vsub.s32 0, %v668
      %v670 = vrot.slane %v499, %v669
      %v671 = vlaneseq
      %v672 = vshrl.u32 %v671, 7
      %v673 = vsub.s32 0, %v672
      %v674 = vrot.slane %v500, %v673
      %v675 = vlaneseq
      %v676 = vshrl.u32 %v675, 7
      %v677 = vsub.s32 0, %v676
      %v678 = vrot.slane %v501, %v677
      %v679 = vsub.f32 %v654, %v507
      %v680 = vsub.f32 %v658, %v507
      %v681 = vsub.f32 %v662, %v507
      %v682 = vsub.f32 %v666, %v507
      %v683 = vsub.f32 %v670, %v507
      %v684 = vsub.f32 %v674, %v507
      %v685 = vsub.f32 %v678, %v507
      %v686 = vsub.f32 %v654, %v508
      %v687 = vsub.f32 %v658, %v508
      %v688 = vsub.f32 %v662, %v508
      %v689 = vsub.f32 %v666, %v508
      %v690 = vsub.f32 %v670, %v508
      %v691 = vsub.f32 %v674, %v508
      %v692 = vsub.f32 %v678, %v508
      %v693 = vsub.f32 %v654, %v509
      %v694 = vsub.f32 %v658, %v509
      %v695 = vsub.f32 %v662, %v509
      %v696 = vsub.f32 %v666, %v509
      %v697 = vsub.f32 %v670, %v509
      %v698 = vsub.f32 %v674, %v509
      %v699 = vsub.f32 %v678, %v509
      %v700 = vsub.f32 %v654, %v510
      %v701 = vsub.f32 %v658, %v510
      %v702 = vsub.f32 %v662, %v510
      %v703 = vsub.f32 %v666, %v510
      %v704 = vsub.f32 %v670, %v510
      %v705 = vsub.f32 %v674, %v510
      %v706 = vsub.f32 %v678, %v510
      %v707 = vand.u32 2147483647, %v679
      %v708 = vand.u32 2147483647, %v680
      %v709 = vand.u32 2147483647, %v681
      %v710 = vand.u32 2147483647, %v682
      %v711 = vand.u32 2147483647, %v683
      %v712 = vand.u32 2147483647, %v684
      %v713 = vand.u32 2147483647, %v685
      %v714 = vand.u32 2147483647, %v686
      %v715 = vand.u32 2147483647, %v687
      %v716 = vand.u32 2147483647, %v688
      %v717 = vand.u32 2147483647, %v689
      %v718 = vand.u32 2147483647, %v690
      %v719 = vand.u32 2147483647, %v691
      %v720 = vand.u32 2147483647, %v692
      %v721 = vand.u32 2147483647, %v693
      %v722 = vand.u32 2147483647, %v694
      %v723 = vand.u32 2147483647, %v695
      %v724 = vand.u32 2147483647, %v696
      %v725 = vand.u32 2147483647, %v697
      %v726 = vand.u32 2147483647, %v698
      %v727 = vand.u32 2147483647, %v699
      %v728 = vand.u32 2147483647, %v700
      %v729 = vand.u32 2147483647, %v701
      %v730 = vand.u32 2147483647, %v702
      %v731 = vand.u32 2147483647, %v703
      %v732 = vand.u32 2147483647, %v704
      %v733 = vand.u32 2147483647, %v705
      %v734 = vand.u32 2147483647, %v706
      %v735 = vsub.f32 1.0, %v707
      %v736 = vsub.f32 1.0, %v708
      %v737 = vsub.f32 1.0, %v709
      %v738 = vsub.f32 1.0, %v710
      %v739 = vsub.f32 1.0, %v711
      %v740 = vsub.f32 1.0, %v712
      %v741 = vsub.f32 1.0, %v713
      %v742 = vsub.f32 1.0, %v714
      %v743 = vsub.f32 1.0, %v715
      %v744 = vsub.f32 1.0, %v716
      %v745 = vsub.f32 1.0, %v717
      %v746 = vsub.f32 1.0, %v718
      %v747 = vsub.f32 1.0, %v719
      %v748 = vsub.f32 1.0, %v720
      %v749 = vsub.f32 1.0, %v721
      %v750 = vsub.f32 1.0, %v722
      %v751 = vsub.f32 1.0, %v723
      %v752 = vsub.f32 1.0, %v724
      %v753 = vsub.f32 1.0, %v725
      %v754 = vsub.f32 1.0, %v726
      %v755 = vsub.f32 1.0, %v727
      %v756 = vsub.f32 1.0, %v728
      %v757 = vsub.f32 1.0, %v729
      %v758 = vsub.f32 1.0, %v730
      %v759 = vsub.f32 1.0, %v731
      %v760 = vsub.f32 1.0, %v732
      %v761 = vsub.f32 1.0, %v733
      %v762 = vsub.f32 1.0, %v734
      %v763 = vmax.f32 %v735, 0.0
      %v764 = vmax.f32 %v736, 0.0
      %v765 = vmax.f32 %v737, 0.0
      %v766 = vmax.f32 %v738, 0.0
      %v767 = vmax.f32 %v739, 0.0
      %v768 = vmax.f32 %v740, 0.0
      %v769 = vmax.f32 %v741, 0.0
      %v770 = vmax.f32 %v742, 0.0
      %v771 = vmax.f32 %v743, 0.0
      %v772 = vmax.f32 %v744, 0.0
      %v773 = vmax.f32 %v745, 0.0
      %v774 = vmax.f32 %v746, 0.0
      %v775 = vmax.f32 %v747, 0.0
      %v776 = vmax.f32 %v748, 0.0
      %v777 = vmax.f32 %v749, 0.0
      %v778 = vmax.f32 %v750, 0.0
      %v779 = vmax.f32 %v751, 0.0
      %v780 = vmax.f32 %v752, 0.0
      %v781 = vmax.f32 %v753, 0.0
      %v782 = vmax.f32 %v754, 0.0
      %v783 = vmax.f32 %v755, 0.0
      %v784 = vmax.f32 %v756, 0.0
      %v785 = vmax.f32 %v757, 0.0
      %v786 = vmax.f32 %v758, 0.0
      %v787 = vmax.f32 %v759, 0.0
      %v788 = vmax.f32 %v760, 0.0
      %v789 = vmax.f32 %v761, 0.0
      %v790 = vmax.f32 %v762, 0.0
      %v791 = vld [vmem:[%s181] sm:$0xff]
      %v792 = vld [vmem:[%s181 + $0x8] sm:$0xff]
      %v793 = vld [vmem:[%s181 + $0x10] sm:$0xff]
      %v794 = vld [vmem:[%s181 + $0x18] sm:$0xf]
      %vm795 = vcmask 228352
      %v797 = vsel %vm795, %v791, 0
      %v800 = vsel %vm795, %v792, 0
      %v803 = vsel %vm795, %v793, 0
      %v806 = vsel %vm795, %v794, 0
      %vm808 = vcmask 1043456
      %v810 = vsel %vm808, %v644, 0
      %v813 = vsel %vm808, %v645, 0
      %v816 = vsel %vm808, %v646, 0
      %v819 = vsel %vm808, %v647, 0
      %v822 = vsel %vm808, %v648, 0
      %v825 = vsel %vm808, %v649, 0
      %v828 = vsel %vm808, %v650, 0
      %830 = vmatprep.subr.mxu0 0.0
      %831 = vmatpush1.msra.mxu0 0.0
      %832 = vmatprep.subr.mxu0 0.0
      %833 = vmatpush1.msra.mxu0 0.0
      %834 = vmatprep.subr.mxu0 0.0
      %835 = vmatpush1.msra.mxu0 0.0
      %836 = vmatprep.subr.mxu0 0.0
      %837 = vmatpush1.msra.mxu0 0.0
      %838 = vmatprep.subr.mxu0 0.0
      %839 = vmatpush1.msra.mxu0 0.0
      %840 = vmatprep.subr.mxu0 0.0
      %841 = vmatpush1.msra.mxu0 0.0
      %842 = vmatprep.subr.mxu0 0.0
      %843 = vmatpush1.msra.mxu0 0.0
      %844 = vmatprep.subr.mxu0 0.0
      %845 = vmatpush1.msra.mxu0 0.0
      %846 = vmatprep.subr.mxu0 0.0
      %847 = vmatpush1.msra.mxu0 0.0
      %848 = vmatprep.subr.mxu0 0.0
      %849 = vmatpush1.msra.mxu0 0.0
      %850 = vmatprep.subr.mxu0 0.0
      %851 = vmatpush1.msra.mxu0 0.0
      %852 = vmatprep.subr.mxu0 0.0
      %853 = vmatpush1.msra.mxu0 0.0
      %854 = vmatprep.subr.mxu0 %v813
      %855 = vmatpush1.msra.mxu0 %v810
      %856 = vmatprep.subr.mxu0 %v638
      %857 = vmatpush1.msra.mxu0 %v637
      %858 = vmatprep.subr.mxu0 %v631
      %859 = vmatpush1.msra.mxu0 %v630
      %860 = vmatprep.subr.mxu0 %v624
      %861 = vmatpush1.msra.mxu0 %v623
      %862 = vmatprep.subr.mxu0 0.0
      %863 = vmatpush2.msra.mxu0 0.0
      %864 = vmatprep.subr.mxu0 0.0
      %865 = vmatpush2.msra.mxu0 0.0
      %866 = vmatprep.subr.mxu0 0.0
      %867 = vmatpush2.msra.mxu0 0.0
      %868 = vmatprep.subr.mxu0 0.0
      %869 = vmatpush2.msra.mxu0 0.0
      %870 = vmatprep.subr.mxu0 0.0
      %871 = vmatpush2.msra.mxu0 0.0
      %872 = vmatprep.subr.mxu0 0.0
      %873 = vmatpush2.msra.mxu0 0.0
      %874 = vmatprep.subr.mxu0 0.0
      %875 = vmatpush2.msra.mxu0 0.0
      %876 = vmatprep.subr.mxu0 0.0
      %877 = vmatpush2.msra.mxu0 0.0
      %878 = vmatprep.subr.mxu0 0.0
      %879 = vmatpush2.msra.mxu0 0.0
      %880 = vmatprep.subr.mxu0 0.0
      %881 = vmatpush2.msra.mxu0 0.0
      %882 = vmatprep.subr.mxu0 0.0
      %883 = vmatpush2.msra.mxu0 0.0
      %884 = vmatprep.subr.mxu0 0.0
      %885 = vmatpush2.msra.mxu0 0.0
      %886 = vmatprep.subr.mxu0 0.0
      %887 = vmatpush2.msra.mxu0 0.0
      %888 = vmatprep.subr.mxu0 0.0
      %889 = vmatpush2.msra.mxu0 0.0
      %890 = vmatprep.subr.mxu0 0.0
      %891 = vmatpush2.msra.mxu0 0.0
      %892 = vmatprep.subr.mxu0 0.0
      %893 = vmatpush2.msra.mxu0 0.0
      %894 = vmatprep.mubr.f32.mxu0 0.0
      %895 = vmatmul.mubr.f32.gmra.mxu0 %v797
      %v896 = vpop.f32.mrf.mxu0
      %v897 = vadd.f32 0.0, %v896
      %v898 = vpop.f32.mrf.mxu0
      %v899 = vadd.f32 0.0, %v898
      %900 = vmatprep.mubr.f32.mxu0 0.0
      %901 = vmatmul.mubr.f32.gmra.mxu0 %v800
      %v902 = vpop.f32.mrf.mxu0
      %v903 = vadd.f32 0.0, %v902
      %v904 = vpop.f32.mrf.mxu0
      %v905 = vadd.f32 0.0, %v904
      %906 = vmatprep.mubr.f32.mxu0 0.0
      %907 = vmatmul.mubr.f32.gmra.mxu0 %v803
      %v908 = vpop.f32.mrf.mxu0
      %v909 = vadd.f32 0.0, %v908
      %v910 = vpop.f32.mrf.mxu0
      %v911 = vadd.f32 0.0, %v910
      %912 = vmatprep.mubr.f32.mxu0 0.0
      %913 = vmatmul.mubr.f32.gmra.mxu0 %v806
      %v914 = vpop.f32.mrf.mxu0
      %v915 = vadd.f32 0.0, %v914
      %v916 = vpop.f32.mrf.mxu0
      %v917 = vadd.f32 0.0, %v916
      %918 = vdwg.mxu0
      %919 = vmatprep.subr.mxu0 0.0
      %920 = vmatpush1.msra.mxu0 0.0
      %921 = vmatprep.subr.mxu0 0.0
      %922 = vmatpush1.msra.mxu0 0.0
      %923 = vmatprep.subr.mxu0 0.0
      %924 = vmatpush1.msra.mxu0 0.0
      %925 = vmatprep.subr.mxu0 0.0
      %926 = vmatpush1.msra.mxu0 0.0
      %927 = vmatprep.subr.mxu0 0.0
      %928 = vmatpush1.msra.mxu0 0.0
      %929 = vmatprep.subr.mxu0 0.0
      %930 = vmatpush1.msra.mxu0 0.0
      %931 = vmatprep.subr.mxu0 0.0
      %932 = vmatpush1.msra.mxu0 0.0
      %933 = vmatprep.subr.mxu0 0.0
      %934 = vmatpush1.msra.mxu0 0.0
      %935 = vmatprep.subr.mxu0 0.0
      %936 = vmatpush1.msra.mxu0 0.0
      %937 = vmatprep.subr.mxu0 0.0
      %938 = vmatpush1.msra.mxu0 0.0
      %939 = vmatprep.subr.mxu0 0.0
      %940 = vmatpush1.msra.mxu0 0.0
      %941 = vmatprep.subr.mxu0 0.0
      %942 = vmatpush1.msra.mxu0 0.0
      %943 = vmatprep.subr.mxu0 %v819
      %944 = vmatpush1.msra.mxu0 %v816
      %945 = vmatprep.subr.mxu0 %v640
      %946 = vmatpush1.msra.mxu0 %v639
      %947 = vmatprep.subr.mxu0 %v633
      %948 = vmatpush1.msra.mxu0 %v632
      %949 = vmatprep.subr.mxu0 %v626
      %950 = vmatpush1.msra.mxu0 %v625
      %951 = vmatprep.subr.mxu0 0.0
      %952 = vmatpush2.msra.mxu0 0.0
      %953 = vmatprep.subr.mxu0 0.0
      %954 = vmatpush2.msra.mxu0 0.0
      %955 = vmatprep.subr.mxu0 0.0
      %956 = vmatpush2.msra.mxu0 0.0
      %957 = vmatprep.subr.mxu0 0.0
      %958 = vmatpush2.msra.mxu0 0.0
      %959 = vmatprep.subr.mxu0 0.0
      %960 = vmatpush2.msra.mxu0 0.0
      %961 = vmatprep.subr.mxu0 0.0
      %962 = vmatpush2.msra.mxu0 0.0
      %963 = vmatprep.subr.mxu0 0.0
      %964 = vmatpush2.msra.mxu0 0.0
      %965 = vmatprep.subr.mxu0 0.0
      %966 = vmatpush2.msra.mxu0 0.0
      %967 = vmatprep.subr.mxu0 0.0
      %968 = vmatpush2.msra.mxu0 0.0
      %969 = vmatprep.subr.mxu0 0.0
      %970 = vmatpush2.msra.mxu0 0.0
      %971 = vmatprep.subr.mxu0 0.0
      %972 = vmatpush2.msra.mxu0 0.0
      %973 = vmatprep.subr.mxu0 0.0
      %974 = vmatpush2.msra.mxu0 0.0
      %975 = vmatprep.subr.mxu0 0.0
      %976 = vmatpush2.msra.mxu0 0.0
      %977 = vmatprep.subr.mxu0 0.0
      %978 = vmatpush2.msra.mxu0 0.0
      %979 = vmatprep.subr.mxu0 0.0
      %980 = vmatpush2.msra.mxu0 0.0
      %981 = vmatprep.subr.mxu0 0.0
      %982 = vmatpush2.msra.mxu0 0.0
      %983 = vmatprep.mubr.f32.mxu0 0.0
      %984 = vmatmul.mubr.f32.gmra.mxu0 %v797
      %v985 = vpop.f32.mrf.mxu0
      %v986 = vadd.f32 0.0, %v985
      %v987 = vpop.f32.mrf.mxu0
      %v988 = vadd.f32 0.0, %v987
      %989 = vmatprep.mubr.f32.mxu0 0.0
      %990 = vmatmul.mubr.f32.gmra.mxu0 %v800
      %v991 = vpop.f32.mrf.mxu0
      %v992 = vadd.f32 0.0, %v991
      %v993 = vpop.f32.mrf.mxu0
      %v994 = vadd.f32 0.0, %v993
      %995 = vmatprep.mubr.f32.mxu0 0.0
      %996 = vmatmul.mubr.f32.gmra.mxu0 %v803
      %v997 = vpop.f32.mrf.mxu0
      %v998 = vadd.f32 0.0, %v997
      %v999 = vpop.f32.mrf.mxu0
      %v1000 = vadd.f32 0.0, %v999
      %1001 = vmatprep.mubr.f32.mxu0 0.0
      %1002 = vmatmul.mubr.f32.gmra.mxu0 %v806
      %v1003 = vpop.f32.mrf.mxu0
      %v1004 = vadd.f32 0.0, %v1003
      %v1005 = vpop.f32.mrf.mxu0
      %v1006 = vadd.f32 0.0, %v1005
      %1007 = vdwg.mxu0
      %1008 = vmatprep.subr.mxu0 0.0
      %1009 = vmatpush1.msra.mxu0 0.0
      %1010 = vmatprep.subr.mxu0 0.0
      %1011 = vmatpush1.msra.mxu0 0.0
      %1012 = vmatprep.subr.mxu0 0.0
      %1013 = vmatpush1.msra.mxu0 0.0
      %1014 = vmatprep.subr.mxu0 0.0
      %1015 = vmatpush1.msra.mxu0 0.0
      %1016 = vmatprep.subr.mxu0 0.0
      %1017 = vmatpush1.msra.mxu0 0.0
      %1018 = vmatprep.subr.mxu0 0.0
      %1019 = vmatpush1.msra.mxu0 0.0
      %1020 = vmatprep.subr.mxu0 0.0
      %1021 = vmatpush1.msra.mxu0 0.0
      %1022 = vmatprep.subr.mxu0 0.0
      %1023 = vmatpush1.msra.mxu0 0.0
      %1024 = vmatprep.subr.mxu0 0.0
      %1025 = vmatpush1.msra.mxu0 0.0
      %1026 = vmatprep.subr.mxu0 0.0
      %1027 = vmatpush1.msra.mxu0 0.0
      %1028 = vmatprep.subr.mxu0 0.0
      %1029 = vmatpush1.msra.mxu0 0.0
      %1030 = vmatprep.subr.mxu0 0.0
      %1031 = vmatpush1.msra.mxu0 0.0
      %1032 = vmatprep.subr.mxu0 %v825
      %1033 = vmatpush1.msra.mxu0 %v822
      %1034 = vmatprep.subr.mxu0 %v642
      %1035 = vmatpush1.msra.mxu0 %v641
      %1036 = vmatprep.subr.mxu0 %v635
      %1037 = vmatpush1.msra.mxu0 %v634
      %1038 = vmatprep.subr.mxu0 %v628
      %1039 = vmatpush1.msra.mxu0 %v627
      %1040 = vmatprep.subr.mxu0 0.0
      %1041 = vmatpush2.msra.mxu0 0.0
      %1042 = vmatprep.subr.mxu0 0.0
      %1043 = vmatpush2.msra.mxu0 0.0
      %1044 = vmatprep.subr.mxu0 0.0
      %1045 = vmatpush2.msra.mxu0 0.0
      %1046 = vmatprep.subr.mxu0 0.0
      %1047 = vmatpush2.msra.mxu0 0.0
      %1048 = vmatprep.subr.mxu0 0.0
      %1049 = vmatpush2.msra.mxu0 0.0
      %1050 = vmatprep.subr.mxu0 0.0
      %1051 = vmatpush2.msra.mxu0 0.0
      %1052 = vmatprep.subr.mxu0 0.0
      %1053 = vmatpush2.msra.mxu0 0.0
      %1054 = vmatprep.subr.mxu0 0.0
      %1055 = vmatpush2.msra.mxu0 0.0
      %1056 = vmatprep.subr.mxu0 0.0
      %1057 = vmatpush2.msra.mxu0 0.0
      %1058 = vmatprep.subr.mxu0 0.0
      %1059 = vmatpush2.msra.mxu0 0.0
      %1060 = vmatprep.subr.mxu0 0.0
      %1061 = vmatpush2.msra.mxu0 0.0
      %1062 = vmatprep.subr.mxu0 0.0
      %1063 = vmatpush2.msra.mxu0 0.0
      %1064 = vmatprep.subr.mxu0 0.0
      %1065 = vmatpush2.msra.mxu0 0.0
      %1066 = vmatprep.subr.mxu0 0.0
      %1067 = vmatpush2.msra.mxu0 0.0
      %1068 = vmatprep.subr.mxu0 0.0
      %1069 = vmatpush2.msra.mxu0 0.0
      %1070 = vmatprep.subr.mxu0 0.0
      %1071 = vmatpush2.msra.mxu0 0.0
      %1072 = vmatprep.mubr.f32.mxu0 0.0
      %1073 = vmatmul.mubr.f32.gmra.mxu0 %v797
      %v1074 = vpop.f32.mrf.mxu0
      %v1075 = vadd.f32 0.0, %v1074
      %v1076 = vpop.f32.mrf.mxu0
      %v1077 = vadd.f32 0.0, %v1076
      %1078 = vmatprep.mubr.f32.mxu0 0.0
      %1079 = vmatmul.mubr.f32.gmra.mxu0 %v800
      %v1080 = vpop.f32.mrf.mxu0
      %v1081 = vadd.f32 0.0, %v1080
      %v1082 = vpop.f32.mrf.mxu0
      %v1083 = vadd.f32 0.0, %v1082
      %1084 = vmatprep.mubr.f32.mxu0 0.0
      %1085 = vmatmul.mubr.f32.gmra.mxu0 %v803
      %v1086 = vpop.f32.mrf.mxu0
      %v1087 = vadd.f32 0.0, %v1086
      %v1088 = vpop.f32.mrf.mxu0
      %v1089 = vadd.f32 0.0, %v1088
      %1090 = vmatprep.mubr.f32.mxu0 0.0
      %1091 = vmatmul.mubr.f32.gmra.mxu0 %v806
      %v1092 = vpop.f32.mrf.mxu0
      %v1093 = vadd.f32 0.0, %v1092
      %v1094 = vpop.f32.mrf.mxu0
      %v1095 = vadd.f32 0.0, %v1094
      %1096 = vdwg.mxu0
      %1097 = vmatprep.subr.mxu0 0.0
      %1098 = vmatpush1.msra.mxu0 0.0
      %1099 = vmatprep.subr.mxu0 0.0
      %1100 = vmatpush1.msra.mxu0 0.0
      %1101 = vmatprep.subr.mxu0 0.0
      %1102 = vmatpush1.msra.mxu0 0.0
      %1103 = vmatprep.subr.mxu0 0.0
      %1104 = vmatpush1.msra.mxu0 0.0
      %1105 = vmatprep.subr.mxu0 0.0
      %1106 = vmatpush1.msra.mxu0 0.0
      %1107 = vmatprep.subr.mxu0 0.0
      %1108 = vmatpush1.msra.mxu0 0.0
      %1109 = vmatprep.subr.mxu0 0.0
      %1110 = vmatpush1.msra.mxu0 0.0
      %1111 = vmatprep.subr.mxu0 0.0
      %1112 = vmatpush1.msra.mxu0 0.0
      %1113 = vmatprep.subr.mxu0 0.0
      %1114 = vmatpush1.msra.mxu0 0.0
      %1115 = vmatprep.subr.mxu0 0.0
      %1116 = vmatpush1.msra.mxu0 0.0
      %1117 = vmatprep.subr.mxu0 0.0
      %1118 = vmatpush1.msra.mxu0 0.0
      %1119 = vmatprep.subr.mxu0 0.0
      %1120 = vmatpush1.msra.mxu0 0.0
      %1121 = vmatprep.subr.mxu0 0.0
      %1122 = vmatpush1.msra.mxu0 %v828
      %1123 = vmatprep.subr.mxu0 0.0
      %1124 = vmatpush1.msra.mxu0 %v643
      %1125 = vmatprep.subr.mxu0 0.0
      %1126 = vmatpush1.msra.mxu0 %v636
      %1127 = vmatprep.subr.mxu0 0.0
      %1128 = vmatpush1.msra.mxu0 %v629
      %1129 = vmatprep.subr.mxu0 0.0
      %1130 = vmatpush2.msra.mxu0 0.0
      %1131 = vmatprep.subr.mxu0 0.0
      %1132 = vmatpush2.msra.mxu0 0.0
      %1133 = vmatprep.subr.mxu0 0.0
      %1134 = vmatpush2.msra.mxu0 0.0
      %1135 = vmatprep.subr.mxu0 0.0
      %1136 = vmatpush2.msra.mxu0 0.0
      %1137 = vmatprep.subr.mxu0 0.0
      %1138 = vmatpush2.msra.mxu0 0.0
      %1139 = vmatprep.subr.mxu0 0.0
      %1140 = vmatpush2.msra.mxu0 0.0
      %1141 = vmatprep.subr.mxu0 0.0
      %1142 = vmatpush2.msra.mxu0 0.0
      %1143 = vmatprep.subr.mxu0 0.0
      %1144 = vmatpush2.msra.mxu0 0.0
      %1145 = vmatprep.subr.mxu0 0.0
      %1146 = vmatpush2.msra.mxu0 0.0
      %1147 = vmatprep.subr.mxu0 0.0
      %1148 = vmatpush2.msra.mxu0 0.0
      %1149 = vmatprep.subr.mxu0 0.0
      %1150 = vmatpush2.msra.mxu0 0.0
      %1151 = vmatprep.subr.mxu0 0.0
      %1152 = vmatpush2.msra.mxu0 0.0
      %1153 = vmatprep.subr.mxu0 0.0
      %1154 = vmatpush2.msra.mxu0 0.0
      %1155 = vmatprep.subr.mxu0 0.0
      %1156 = vmatpush2.msra.mxu0 0.0
      %1157 = vmatprep.subr.mxu0 0.0
      %1158 = vmatpush2.msra.mxu0 0.0
      %1159 = vmatprep.subr.mxu0 0.0
      %1160 = vmatpush2.msra.mxu0 0.0
      %1161 = vmatprep.mubr.f32.mxu0 0.0
      %1162 = vmatmul.mubr.f32.gmra.mxu0 %v797
      %v1163 = vpop.f32.mrf.mxu0
      %v1164 = vadd.f32 0.0, %v1163
      %v1165 = vpop.f32.mrf.mxu0
      %1166 = vmatprep.mubr.f32.mxu0 0.0
      %1167 = vmatmul.mubr.f32.gmra.mxu0 %v800
      %v1168 = vpop.f32.mrf.mxu0
      %v1169 = vadd.f32 0.0, %v1168
      %v1170 = vpop.f32.mrf.mxu0
      %1171 = vmatprep.mubr.f32.mxu0 0.0
      %1172 = vmatmul.mubr.f32.gmra.mxu0 %v803
      %v1173 = vpop.f32.mrf.mxu0
      %v1174 = vadd.f32 0.0, %v1173
      %v1175 = vpop.f32.mrf.mxu0
      %1176 = vmatprep.mubr.f32.mxu0 0.0
      %1177 = vmatmul.mubr.f32.gmra.mxu0 %v806
      %v1178 = vpop.f32.mrf.mxu0
      %v1179 = vadd.f32 0.0, %v1178
      %v1180 = vpop.f32.mrf.mxu0
      %1181 = vdwg.mxu0
      %v1182 = vmul.f32 %v763, %v897
      %v1183 = vmul.f32 %v764, %v899
      %v1184 = vmul.f32 %v765, %v986
      %v1185 = vmul.f32 %v766, %v988
      %v1186 = vmul.f32 %v767, %v1075
      %v1187 = vmul.f32 %v768, %v1077
      %v1188 = vmul.f32 %v769, %v1164
      %v1189 = vmul.f32 %v770, %v903
      %v1190 = vmul.f32 %v771, %v905
      %v1191 = vmul.f32 %v772, %v992
      %v1192 = vmul.f32 %v773, %v994
      %v1193 = vmul.f32 %v774, %v1081
      %v1194 = vmul.f32 %v775, %v1083
      %v1195 = vmul.f32 %v776, %v1169
      %v1196 = vmul.f32 %v777, %v909
      %v1197 = vmul.f32 %v778, %v911
      %v1198 = vmul.f32 %v779, %v998
      %v1199 = vmul.f32 %v780, %v1000
      %v1200 = vmul.f32 %v781, %v1087
      %v1201 = vmul.f32 %v782, %v1089
      %v1202 = vmul.f32 %v783, %v1174
      %v1203 = vmul.f32 %v784, %v915
      %v1204 = vmul.f32 %v785, %v917
      %v1205 = vmul.f32 %v786, %v1004
      %v1206 = vmul.f32 %v787, %v1006
      %v1207 = vmul.f32 %v788, %v1093
      %v1208 = vmul.f32 %v789, %v1095
      %v1209 = vmul.f32 %v790, %v1179
      %v1211 = vsel %vm795, 1.0, 0
      %v1214 = vsel %vm808, %v1203, 0
      %v1217 = vsel %vm808, %v1204, 0
      %v1220 = vsel %vm808, %v1205, 0
      %v1223 = vsel %vm808, %v1206, 0
      %v1226 = vsel %vm808, %v1207, 0
      %v1229 = vsel %vm808, %v1208, 0
      %v1232 = vsel %vm808, %v1209, 0
      %1234 = vmatprep.subr.mxu0 0.0
      %1235 = vmatpush1.msra.mxu0 0.0
      %1236 = vmatprep.subr.mxu0 0.0
      %1237 = vmatpush1.msra.mxu0 0.0
      %1238 = vmatprep.subr.mxu0 0.0
      %1239 = vmatpush1.msra.mxu0 0.0
      %1240 = vmatprep.subr.mxu0 0.0
      %1241 = vmatpush1.msra.mxu0 0.0
      %1242 = vmatprep.subr.mxu0 0.0
      %1243 = vmatpush1.msra.mxu0 0.0
      %1244 = vmatprep.subr.mxu0 0.0
      %1245 = vmatpush1.msra.mxu0 0.0
      %1246 = vmatprep.subr.mxu0 0.0
      %1247 = vmatpush1.msra.mxu0 0.0
      %1248 = vmatprep.subr.mxu0 0.0
      %1249 = vmatpush1.msra.mxu0 0.0
      %1250 = vmatprep.subr.mxu0 0.0
      %1251 = vmatpush1.msra.mxu0 0.0
      %1252 = vmatprep.subr.mxu0 0.0
      %1253 = vmatpush1.msra.mxu0 0.0
      %1254 = vmatprep.subr.mxu0 0.0
      %1255 = vmatpush1.msra.mxu0 0.0
      %1256 = vmatprep.subr.mxu0 0.0
      %1257 = vmatpush1.msra.mxu0 0.0
      %1258 = vmatprep.subr.mxu0 %v1217
      %1259 = vmatpush1.msra.mxu0 %v1214
      %1260 = vmatprep.subr.mxu0 %v1197
      %1261 = vmatpush1.msra.mxu0 %v1196
      %1262 = vmatprep.subr.mxu0 %v1190
      %1263 = vmatpush1.msra.mxu0 %v1189
      %1264 = vmatprep.subr.mxu0 %v1183
      %1265 = vmatpush1.msra.mxu0 %v1182
      %1266 = vmatprep.subr.mxu0 0.0
      %1267 = vmatpush2.msra.mxu0 0.0
      %1268 = vmatprep.subr.mxu0 0.0
      %1269 = vmatpush2.msra.mxu0 0.0
      %1270 = vmatprep.subr.mxu0 0.0
      %1271 = vmatpush2.msra.mxu0 0.0
      %1272 = vmatprep.subr.mxu0 0.0
      %1273 = vmatpush2.msra.mxu0 0.0
      %1274 = vmatprep.subr.mxu0 0.0
      %1275 = vmatpush2.msra.mxu0 0.0
      %1276 = vmatprep.subr.mxu0 0.0
      %1277 = vmatpush2.msra.mxu0 0.0
      %1278 = vmatprep.subr.mxu0 0.0
      %1279 = vmatpush2.msra.mxu0 0.0
      %1280 = vmatprep.subr.mxu0 0.0
      %1281 = vmatpush2.msra.mxu0 0.0
      %1282 = vmatprep.subr.mxu0 0.0
      %1283 = vmatpush2.msra.mxu0 0.0
      %1284 = vmatprep.subr.mxu0 0.0
      %1285 = vmatpush2.msra.mxu0 0.0
      %1286 = vmatprep.subr.mxu0 0.0
      %1287 = vmatpush2.msra.mxu0 0.0
      %1288 = vmatprep.subr.mxu0 0.0
      %1289 = vmatpush2.msra.mxu0 0.0
      %1290 = vmatprep.subr.mxu0 0.0
      %1291 = vmatpush2.msra.mxu0 0.0
      %1292 = vmatprep.subr.mxu0 0.0
      %1293 = vmatpush2.msra.mxu0 0.0
      %1294 = vmatprep.subr.mxu0 0.0
      %1295 = vmatpush2.msra.mxu0 0.0
      %1296 = vmatprep.subr.mxu0 0.0
      %1297 = vmatpush2.msra.mxu0 0.0
      %1298 = vmatprep.mubr.f32.mxu0 0.0
      %1299 = vmatmul.mubr.f32.gmra.mxu0 %v1211
      %v1300 = vpop.f32.mrf.mxu0
      %v1301 = vadd.f32 0.0, %v1300
      %v1302 = vpop.f32.mrf.mxu0
      %v1303 = vadd.f32 0.0, %v1302
      %1304 = vdwg.mxu0
      %1305 = vmatprep.subr.mxu0 0.0
      %1306 = vmatpush1.msra.mxu0 0.0
      %1307 = vmatprep.subr.mxu0 0.0
      %1308 = vmatpush1.msra.mxu0 0.0
      %1309 = vmatprep.subr.mxu0 0.0
      %1310 = vmatpush1.msra.mxu0 0.0
      %1311 = vmatprep.subr.mxu0 0.0
      %1312 = vmatpush1.msra.mxu0 0.0
      %1313 = vmatprep.subr.mxu0 0.0
      %1314 = vmatpush1.msra.mxu0 0.0
      %1315 = vmatprep.subr.mxu0 0.0
      %1316 = vmatpush1.msra.mxu0 0.0
      %1317 = vmatprep.subr.mxu0 0.0
      %1318 = vmatpush1.msra.mxu0 0.0
      %1319 = vmatprep.subr.mxu0 0.0
      %1320 = vmatpush1.msra.mxu0 0.0
      %1321 = vmatprep.subr.mxu0 0.0
      %1322 = vmatpush1.msra.mxu0 0.0
      %1323 = vmatprep.subr.mxu0 0.0
      %1324 = vmatpush1.msra.mxu0 0.0
      %1325 = vmatprep.subr.mxu0 0.0
      %1326 = vmatpush1.msra.mxu0 0.0
      %1327 = vmatprep.subr.mxu0 0.0
      %1328 = vmatpush1.msra.mxu0 0.0
      %1329 = vmatprep.subr.mxu0 %v1223
      %1330 = vmatpush1.msra.mxu0 %v1220
      %1331 = vmatprep.subr.mxu0 %v1199
      %1332 = vmatpush1.msra.mxu0 %v1198
      %1333 = vmatprep.subr.mxu0 %v1192
      %1334 = vmatpush1.msra.mxu0 %v1191
      %1335 = vmatprep.subr.mxu0 %v1185
      %1336 = vmatpush1.msra.mxu0 %v1184
      %1337 = vmatprep.subr.mxu0 0.0
      %1338 = vmatpush2.msra.mxu0 0.0
      %1339 = vmatprep.subr.mxu0 0.0
      %1340 = vmatpush2.msra.mxu0 0.0
      %1341 = vmatprep.subr.mxu0 0.0
      %1342 = vmatpush2.msra.mxu0 0.0
      %1343 = vmatprep.subr.mxu0 0.0
      %1344 = vmatpush2.msra.mxu0 0.0
      %1345 = vmatprep.subr.mxu0 0.0
      %1346 = vmatpush2.msra.mxu0 0.0
      %1347 = vmatprep.subr.mxu0 0.0
      %1348 = vmatpush2.msra.mxu0 0.0
      %1349 = vmatprep.subr.mxu0 0.0
      %1350 = vmatpush2.msra.mxu0 0.0
      %1351 = vmatprep.subr.mxu0 0.0
      %1352 = vmatpush2.msra.mxu0 0.0
      %1353 = vmatprep.subr.mxu0 0.0
      %1354 = vmatpush2.msra.mxu0 0.0
      %1355 = vmatprep.subr.mxu0 0.0
      %1356 = vmatpush2.msra.mxu0 0.0
      %1357 = vmatprep.subr.mxu0 0.0
      %1358 = vmatpush2.msra.mxu0 0.0
      %1359 = vmatprep.subr.mxu0 0.0
      %1360 = vmatpush2.msra.mxu0 0.0
      %1361 = vmatprep.subr.mxu0 0.0
      %1362 = vmatpush2.msra.mxu0 0.0
      %1363 = vmatprep.subr.mxu0 0.0
      %1364 = vmatpush2.msra.mxu0 0.0
      %1365 = vmatprep.subr.mxu0 0.0
      %1366 = vmatpush2.msra.mxu0 0.0
      %1367 = vmatprep.subr.mxu0 0.0
      %1368 = vmatpush2.msra.mxu0 0.0
      %1369 = vmatprep.mubr.f32.mxu0 0.0
      %1370 = vmatmul.mubr.f32.gmra.mxu0 %v1211
      %v1371 = vpop.f32.mrf.mxu0
      %v1372 = vadd.f32 0.0, %v1371
      %v1373 = vpop.f32.mrf.mxu0
      %v1374 = vadd.f32 0.0, %v1373
      %1375 = vdwg.mxu0
      %1376 = vmatprep.subr.mxu0 0.0
      %1377 = vmatpush1.msra.mxu0 0.0
      %1378 = vmatprep.subr.mxu0 0.0
      %1379 = vmatpush1.msra.mxu0 0.0
      %1380 = vmatprep.subr.mxu0 0.0
      %1381 = vmatpush1.msra.mxu0 0.0
      %1382 = vmatprep.subr.mxu0 0.0
      %1383 = vmatpush1.msra.mxu0 0.0
      %1384 = vmatprep.subr.mxu0 0.0
      %1385 = vmatpush1.msra.mxu0 0.0
      %1386 = vmatprep.subr.mxu0 0.0
      %1387 = vmatpush1.msra.mxu0 0.0
      %1388 = vmatprep.subr.mxu0 0.0
      %1389 = vmatpush1.msra.mxu0 0.0
      %1390 = vmatprep.subr.mxu0 0.0
      %1391 = vmatpush1.msra.mxu0 0.0
      %1392 = vmatprep.subr.mxu0 0.0
      %1393 = vmatpush1.msra.mxu0 0.0
      %1394 = vmatprep.subr.mxu0 0.0
      %1395 = vmatpush1.msra.mxu0 0.0
      %1396 = vmatprep.subr.mxu0 0.0
      %1397 = vmatpush1.msra.mxu0 0.0
      %1398 = vmatprep.subr.mxu0 0.0
      %1399 = vmatpush1.msra.mxu0 0.0
      %1400 = vmatprep.subr.mxu0 %v1229
      %1401 = vmatpush1.msra.mxu0 %v1226
      %1402 = vmatprep.subr.mxu0 %v1201
      %1403 = vmatpush1.msra.mxu0 %v1200
      %1404 = vmatprep.subr.mxu0 %v1194
      %1405 = vmatpush1.msra.mxu0 %v1193
      %1406 = vmatprep.subr.mxu0 %v1187
      %1407 = vmatpush1.msra.mxu0 %v1186
      %1408 = vmatprep.subr.mxu0 0.0
      %1409 = vmatpush2.msra.mxu0 0.0
      %1410 = vmatprep.subr.mxu0 0.0
      %1411 = vmatpush2.msra.mxu0 0.0
      %1412 = vmatprep.subr.mxu0 0.0
      %1413 = vmatpush2.msra.mxu0 0.0
      %1414 = vmatprep.subr.mxu0 0.0
      %1415 = vmatpush2.msra.mxu0 0.0
      %1416 = vmatprep.subr.mxu0 0.0
      %1417 = vmatpush2.msra.mxu0 0.0
      %1418 = vmatprep.subr.mxu0 0.0
      %1419 = vmatpush2.msra.mxu0 0.0
      %1420 = vmatprep.subr.mxu0 0.0
      %1421 = vmatpush2.msra.mxu0 0.0
      %1422 = vmatprep.subr.mxu0 0.0
      %1423 = vmatpush2.msra.mxu0 0.0
      %1424 = vmatprep.subr.mxu0 0.0
      %1425 = vmatpush2.msra.mxu0 0.0
      %1426 = vmatprep.subr.mxu0 0.0
      %1427 = vmatpush2.msra.mxu0 0.0
      %1428 = vmatprep.subr.mxu0 0.0
      %1429 = vmatpush2.msra.mxu0 0.0
      %1430 = vmatprep.subr.mxu0 0.0
      %1431 = vmatpush2.msra.mxu0 0.0
      %1432 = vmatprep.subr.mxu0 0.0
      %1433 = vmatpush2.msra.mxu0 0.0
      %1434 = vmatprep.subr.mxu0 0.0
      %1435 = vmatpush2.msra.mxu0 0.0
      %1436 = vmatprep.subr.mxu0 0.0
      %1437 = vmatpush2.msra.mxu0 0.0
      %1438 = vmatprep.subr.mxu0 0.0
      %1439 = vmatpush2.msra.mxu0 0.0
      %1440 = vmatprep.mubr.f32.mxu0 0.0
      %1441 = vmatmul.mubr.f32.gmra.mxu0 %v1211
      %v1442 = vpop.f32.mrf.mxu0
      %v1443 = vadd.f32 0.0, %v1442
      %v1444 = vpop.f32.mrf.mxu0
      %v1445 = vadd.f32 0.0, %v1444
      %1446 = vdwg.mxu0
      %1447 = vmatprep.subr.mxu0 0.0
      %1448 = vmatpush1.msra.mxu0 0.0
      %1449 = vmatprep.subr.mxu0 0.0
      %1450 = vmatpush1.msra.mxu0 0.0
      %1451 = vmatprep.subr.mxu0 0.0
      %1452 = vmatpush1.msra.mxu0 0.0
      %1453 = vmatprep.subr.mxu0 0.0
      %1454 = vmatpush1.msra.mxu0 0.0
      %1455 = vmatprep.subr.mxu0 0.0
      %1456 = vmatpush1.msra.mxu0 0.0
      %1457 = vmatprep.subr.mxu0 0.0
      %1458 = vmatpush1.msra.mxu0 0.0
      %1459 = vmatprep.subr.mxu0 0.0
      %1460 = vmatpush1.msra.mxu0 0.0
      %1461 = vmatprep.subr.mxu0 0.0
      %1462 = vmatpush1.msra.mxu0 0.0
      %1463 = vmatprep.subr.mxu0 0.0
      %1464 = vmatpush1.msra.mxu0 0.0
      %1465 = vmatprep.subr.mxu0 0.0
      %1466 = vmatpush1.msra.mxu0 0.0
      %1467 = vmatprep.subr.mxu0 0.0
      %1468 = vmatpush1.msra.mxu0 0.0
      %1469 = vmatprep.subr.mxu0 0.0
      %1470 = vmatpush1.msra.mxu0 0.0
      %1471 = vmatprep.subr.mxu0 0.0
      %1472 = vmatpush1.msra.mxu0 %v1232
      %1473 = vmatprep.subr.mxu0 0.0
      %1474 = vmatpush1.msra.mxu0 %v1202
      %1475 = vmatprep.subr.mxu0 0.0
      %1476 = vmatpush1.msra.mxu0 %v1195
      %1477 = vmatprep.subr.mxu0 0.0
      %1478 = vmatpush1.msra.mxu0 %v1188
      %1479 = vmatprep.subr.mxu0 0.0
      %1480 = vmatpush2.msra.mxu0 0.0
      %1481 = vmatprep.subr.mxu0 0.0
      %1482 = vmatpush2.msra.mxu0 0.0
      %1483 = vmatprep.subr.mxu0 0.0
      %1484 = vmatpush2.msra.mxu0 0.0
      %1485 = vmatprep.subr.mxu0 0.0
      %1486 = vmatpush2.msra.mxu0 0.0
      %1487 = vmatprep.subr.mxu0 0.0
      %1488 = vmatpush2.msra.mxu0 0.0
      %1489 = vmatprep.subr.mxu0 0.0
      %1490 = vmatpush2.msra.mxu0 0.0
      %1491 = vmatprep.subr.mxu0 0.0
      %1492 = vmatpush2.msra.mxu0 0.0
      %1493 = vmatprep.subr.mxu0 0.0
      %1494 = vmatpush2.msra.mxu0 0.0
      %1495 = vmatprep.subr.mxu0 0.0
      %1496 = vmatpush2.msra.mxu0 0.0
      %1497 = vmatprep.subr.mxu0 0.0
      %1498 = vmatpush2.msra.mxu0 0.0
      %1499 = vmatprep.subr.mxu0 0.0
      %1500 = vmatpush2.msra.mxu0 0.0
      %1501 = vmatprep.subr.mxu0 0.0
      %1502 = vmatpush2.msra.mxu0 0.0
      %1503 = vmatprep.subr.mxu0 0.0
      %1504 = vmatpush2.msra.mxu0 0.0
      %1505 = vmatprep.subr.mxu0 0.0
      %1506 = vmatpush2.msra.mxu0 0.0
      %1507 = vmatprep.subr.mxu0 0.0
      %1508 = vmatpush2.msra.mxu0 0.0
      %1509 = vmatprep.subr.mxu0 0.0
      %1510 = vmatpush2.msra.mxu0 0.0
      %1511 = vmatprep.mubr.f32.mxu0 0.0
      %1512 = vmatmul.mubr.f32.gmra.mxu0 %v1211
      %v1513 = vpop.f32.mrf.mxu0
      %v1514 = vadd.f32 0.0, %v1513
      %v1515 = vpop.f32.mrf.mxu0
      %1516 = vdwg.mxu0
      %v1524 = vcombine.low %v1301, %v1303
      %v1525 = vcombine.low %v1372, %v1374
      %v1526 = vcombine.low %v1443, %v1445
      %v1528 = vunpack.c.l.s4 1966171168
      %v1529 = vunpack.c.0.s8 %v1528
      %v1530 = vlaneseq
      %v1531 = vshrl.u32 %v1530, 7
      %v1532 = vsub.s32 %v1529, %v1531
      %v1533 = vrot.slane %v1524, %v1532
      %v1535 = vunpack.c.l.s4 1966171168
      %v1536 = vunpack.c.0.s8 %v1535
      %v1537 = vlaneseq
      %v1538 = vshrl.u32 %v1537, 7
      %v1539 = vsub.s32 %v1536, %v1538
      %v1540 = vrot.slane %v1525, %v1539
      %v1542 = vunpack.c.l.s4 1966171168
      %v1543 = vunpack.c.0.s8 %v1542
      %v1544 = vlaneseq
      %v1545 = vshrl.u32 %v1544, 7
      %v1546 = vsub.s32 %v1543, %v1545
      %v1547 = vrot.slane %v1526, %v1546
      %v1549 = vunpack.c.l.s4 1966171168
      %v1550 = vunpack.c.0.s8 %v1549
      %v1551 = vlaneseq
      %v1552 = vshrl.u32 %v1551, 7
      %v1553 = vsub.s32 %v1550, %v1552
      %v1554 = vrot.slane %v1514, %v1553
      %v1555 = vcombine.low %v1533, %v1540
      %v1556 = vcombine.low %v1547, %v1554
      %v1558 = vunpack.c.l.s4 1966171168
      %v1559 = vunpack.c.0.s8 %v1558
      %v1560 = vlaneseq
      %v1561 = vshrl.u32 %v1560, 7
      %v1562 = vsub.s32 %v1559, %v1561
      %v1563 = vrot.slane %v1555, %v1562
      %v1565 = vunpack.c.l.s4 1966171168
      %v1566 = vunpack.c.0.s8 %v1565
      %v1567 = vlaneseq
      %v1568 = vshrl.u32 %v1567, 7
      %v1569 = vsub.s32 %v1566, %v1568
      %v1570 = vrot.slane %v1556, %v1569
      %v1571 = vcombine.low %v1563, %v1570
      %v1573 = vlaneseq
      %vm1574 = vcmp.ge.s32.totalorder %v1573, 0
      %vm1575 = vcmp.lt.s32.totalorder %v1573, 784
      %vm1576 = vmand %vm1574, %vm1575
      %1577 = vst.msk [vmem:[%s185] sm:$0x7f] %vm1576, %v1571
      %p1578 = scmp.lt.s32.totalorder %s14, 1
      %s1579 = scalar_select %p1578, %s14, 1
      %s1580 = smul.addr %s1579, 7
      %s1581 = scalar_lea.vmem %s3, %s1580
      // Predicated region
      $region33: #{stn_forward.10} parent=31 // pred_check
        %p1582 = pneg %p105
      $region34: #{stn_forward.10} parent=31 // pred_check_branch
        %1584 = sbr.rel (%p1582) target = $region36
      $region35: #{stn_forward.10} parent=31 // pred_region
        _
      $region36: #{stn_forward.10} parent=31 // pred_fallthru
        _
    $region32: #{stn_forward.10} parent=5 // pred_fallthru
      _
    %p1585 = scmp.le.s32.totalorder 2, %s9
    // Predicated region
    $region37: #{stn_forward.10} parent=5 // pred_check
      %p1586 = pneg %p1585
    $region38: #{stn_forward.10} parent=5 // pred_check_branch
      %1588 = sbr.rel (%p1586) target = $region40
    $region39: #{stn_forward.10} parent=5 // pred_region
      %s1589 = ssub.s32 %s9, 2
      // Predicated region
      $region41: #{stn_forward.10} parent=39 // pred_check
        %p1590 = pneg %p111
      $region42: #{stn_forward.10} parent=39 // pred_check_branch
        %1592 = sbr.rel (%p1590) target = $region44
      $region43: #{stn_forward.10} parent=39 // pred_region
        %p1593 = scmp.lt.s32.totalorder %s15, 1
        %s1594 = scalar_select %p1593, %s15, 1
        %s1595 = smul.addr %s1594, 7
        %s1596 = scalar_lea.vmem %s3, %s1595
      $region44: #{stn_forward.10} parent=39 // pred_fallthru
        _
    $region40: #{stn_forward.10} parent=5 // pred_fallthru
      _
  $region6: #{stn_forward.10} parent=0 // loop_footer
    %s13 = sadd.s32 1, %s9
  $region7: #{stn_forward.10} parent=0 // loop_footer_branch
    %8 = sbr.rel target = $region3
  $region8: #{stn_forward.10} parent=0 // loop_exit
    _

// kernel: stn_forward.13
$region0: #{stn_forward.13}
  #allocation0 [shape = 'u32[]', space=smem, size = 0x4, offset = 0x4, fixed_abs, tag = 'smem constant byte address 0x4 - core index']
  #allocation1 [shape = 'u32[144,128]{1,0:T(1,128)}', space=vmem, size = 0x12000, scoped, tag = 'internal scratch']
  %s0 = inlined_call_operand.vmem [shape: bf16[8,320], index: 0, kind: input, shape index: {}]
  %s1 = inlined_call_operand.vmem [shape: bf16[320,128], index: 1, kind: input, shape index: {}]
  %s2 = inlined_call_operand.vmem [shape: f32[1,128], index: 2, kind: input, shape index: {}]
  %s3 = inlined_call_operand.vmem [shape: bf16[128,128], index: 3, kind: input, shape index: {}]
  %s4 = inlined_call_operand.vmem [shape: f32[1,128], index: 4, kind: input, shape index: {}]
  %s5 = inlined_call_operand.vmem [shape: f32[8,128], index: 5, kind: output, shape index: {}]
  %s6 = sld [smem:[#allocation0]]
  $region30: #{stn_forward.13} parent=0
    _
  %s8 = ssub.s32 1, %s6
  %s9 = scalar_select 0, %s8, %s6
  // Predicated region
  $region2: #{stn_forward.13} parent=0 // pred_check
    _
  $region3: #{stn_forward.13} parent=0 // pred_check_branch
    %11 = sbr.rel (0) target = $region5
  $region4: #{stn_forward.13} parent=0 // pred_region
    _
  $region5: #{stn_forward.13} parent=0 // pred_fallthru
    _
  // Predicated region
  $region6: #{stn_forward.13} parent=0 // pred_check
    _
  $region7: #{stn_forward.13} parent=0 // pred_check_branch
    %13 = sbr.rel (0) target = $region9
  $region8: #{stn_forward.13} parent=0 // pred_region
    _
  $region9: #{stn_forward.13} parent=0 // pred_fallthru
    _
  // Predicated region
  $region10: #{stn_forward.13} parent=0 // pred_check
    _
  $region11: #{stn_forward.13} parent=0 // pred_check_branch
    %15 = sbr.rel (0) target = $region13
  $region12: #{stn_forward.13} parent=0 // pred_region
    _
  $region13: #{stn_forward.13} parent=0 // pred_fallthru
    _
  // Predicated region
  $region14: #{stn_forward.13} parent=0 // pred_check
    _
  $region15: #{stn_forward.13} parent=0 // pred_check_branch
    %17 = sbr.rel (0) target = $region17
  $region16: #{stn_forward.13} parent=0 // pred_region
    _
  $region17: #{stn_forward.13} parent=0 // pred_fallthru
    _
  // Predicated region
  $region18: #{stn_forward.13} parent=0 // pred_check
    _
  $region19: #{stn_forward.13} parent=0 // pred_check_branch
    %19 = sbr.rel (0) target = $region21
  $region20: #{stn_forward.13} parent=0 // pred_region
    _
  $region21: #{stn_forward.13} parent=0 // pred_fallthru
    _
  %v21 = vld [vmem:[%s0] sm:$0xff]
  %v22 = vld [vmem:[%s0 + $0x8] sm:$0xf]
  %v23 = vld [vmem:[%s1] sm:$0xf]
  %v24 = vld [vmem:[%s1 + $0x4] sm:$0xf]
  %v25 = vld [vmem:[%s1 + $0x8] sm:$0xf]
  %v26 = vld [vmem:[%s1 + $0xc] sm:$0xf]
  %v27 = vld [vmem:[%s1 + $0x10] sm:$0xf]
  %v28 = vld [vmem:[%s1 + $0x14] sm:$0xf]
  %v29 = vld [vmem:[%s1 + $0x18] sm:$0xf]
  %v30 = vld [vmem:[%s1 + $0x1c] sm:$0xf]
  %v31 = vld [vmem:[%s1 + $0x20] sm:$0xf]
  %v32 = vld [vmem:[%s1 + $0x24] sm:$0xf]
  %v33 = vld [vmem:[%s1 + $0x28] sm:$0xf]
  %v34 = vld [vmem:[%s1 + $0x2c] sm:$0xf]
  %v35 = vld [vmem:[%s1 + $0x30] sm:$0xf]
  %v36 = vld [vmem:[%s1 + $0x34] sm:$0xf]
  %v37 = vld [vmem:[%s1 + $0x38] sm:$0xf]
  %v38 = vld [vmem:[%s1 + $0x3c] sm:$0xf]
  %v39 = vld [vmem:[%s1 + $0x40] sm:$0xf]
  %v40 = vld [vmem:[%s1 + $0x44] sm:$0xf]
  %v41 = vld [vmem:[%s1 + $0x48] sm:$0xf]
  %v42 = vld [vmem:[%s1 + $0x4c] sm:$0xf]
  %v43 = vld [vmem:[%s1 + $0x50] sm:$0xf]
  %v44 = vld [vmem:[%s1 + $0x54] sm:$0xf]
  %v45 = vld [vmem:[%s1 + $0x58] sm:$0xf]
  %v46 = vld [vmem:[%s1 + $0x5c] sm:$0xf]
  %v47 = vld [vmem:[%s1 + $0x60] sm:$0xf]
  %v48 = vld [vmem:[%s1 + $0x64] sm:$0xf]
  %v49 = vld [vmem:[%s1 + $0x68] sm:$0xf]
  %v50 = vld [vmem:[%s1 + $0x6c] sm:$0xf]
  %v51 = vld [vmem:[%s1 + $0x70] sm:$0xf]
  %v52 = vld [vmem:[%s1 + $0x74] sm:$0xf]
  %v53 = vld [vmem:[%s1 + $0x78] sm:$0xf]
  %v54 = vld [vmem:[%s1 + $0x7c] sm:$0xf]
  %v55 = vld [vmem:[%s1 + $0x80] sm:$0xf]
  %v56 = vld [vmem:[%s1 + $0x84] sm:$0xf]
  %v57 = vld [vmem:[%s1 + $0x88] sm:$0xf]
  %v58 = vld [vmem:[%s1 + $0x8c] sm:$0xf]
  %v59 = vld [vmem:[%s1 + $0x90] sm:$0xf]
  %v60 = vld [vmem:[%s1 + $0x94] sm:$0xf]
  %v61 = vld [vmem:[%s1 + $0x98] sm:$0xf]
  %v62 = vld [vmem:[%s1 + $0x9c] sm:$0xf]
  %v63 = vld [vmem:[%s2] sm:$0x1]
  %v65 = vlaneseq
  %v66 = vshrl.u32 %v65, 7
  %v67 = vsub.s32 0, %v66
  %v68 = vrot.slane %v63, %v67
  %v72 = vunpack.c.l.b16 %v21
  %v73 = vunpack.c.h.b16 %v21
  %v74 = vunpack.c.l.b16 %v22
  %v75 = vpack.c.b16 %v72, %v72
  %v76 = vpack.c.b16 %v73, %v73
  %v77 = vpack.c.b16 %v74, %v74
  %v120 = vunpack.c.l.b16 %v23
  %v121 = vunpack.c.l.b16 %v24
  %v122 = vunpack.c.l.b16 %v25
  %v123 = vunpack.c.l.b16 %v26
  %v124 = vunpack.c.l.b16 %v27
  %v125 = vunpack.c.l.b16 %v28
  %v126 = vunpack.c.l.b16 %v29
  %v127 = vunpack.c.l.b16 %v30
  %v128 = vunpack.c.l.b16 %v31
  %v129 = vunpack.c.l.b16 %v32
  %v130 = vunpack.c.l.b16 %v33
  %v131 = vunpack.c.l.b16 %v34
  %v132 = vunpack.c.l.b16 %v35
  %v133 = vunpack.c.l.b16 %v36
  %v134 = vunpack.c.l.b16 %v37
  %v135 = vunpack.c.l.b16 %v38
  %v136 = vunpack.c.l.b16 %v39
  %v137 = vunpack.c.l.b16 %v40
  %v138 = vunpack.c.l.b16 %v41
  %v139 = vunpack.c.l.b16 %v42
  %v140 = vunpack.c.l.b16 %v43
  %v141 = vunpack.c.l.b16 %v44
  %v142 = vunpack.c.l.b16 %v45
  %v143 = vunpack.c.l.b16 %v46
  %v144 = vunpack.c.l.b16 %v47
  %v145 = vunpack.c.l.b16 %v48
  %v146 = vunpack.c.l.b16 %v49
  %v147 = vunpack.c.l.b16 %v50
  %v148 = vunpack.c.l.b16 %v51
  %v149 = vunpack.c.l.b16 %v52
  %v150 = vunpack.c.l.b16 %v53
  %v151 = vunpack.c.l.b16 %v54
  %v152 = vunpack.c.l.b16 %v55
  %v153 = vunpack.c.l.b16 %v56
  %v154 = vunpack.c.l.b16 %v57
  %v155 = vunpack.c.l.b16 %v58
  %v156 = vunpack.c.l.b16 %v59
  %v157 = vunpack.c.l.b16 %v60
  %v158 = vunpack.c.l.b16 %v61
  %v159 = vunpack.c.l.b16 %v62
  %v160 = vpack.c.b16 %v121, %v120
  %v161 = vpack.c.b16 %v123, %v122
  %v162 = vpack.c.b16 %v125, %v124
  %v163 = vpack.c.b16 %v127, %v126
  %v164 = vpack.c.b16 %v129, %v128
  %v165 = vpack.c.b16 %v131, %v130
  %v166 = vpack.c.b16 %v133, %v132
  %v167 = vpack.c.b16 %v135, %v134
  %v168 = vpack.c.b16 %v137, %v136
  %v169 = vpack.c.b16 %v139, %v138
  %v170 = vpack.c.b16 %v141, %v140
  %v171 = vpack.c.b16 %v143, %v142
  %v172 = vpack.c.b16 %v145, %v144
  %v173 = vpack.c.b16 %v147, %v146
  %v174 = vpack.c.b16 %v149, %v148
  %v175 = vpack.c.b16 %v151, %v150
  %v176 = vpack.c.b16 %v153, %v152
  %v177 = vpack.c.b16 %v155, %v154
  %v178 = vpack.c.b16 %v157, %v156
  %v179 = vpack.c.b16 %v159, %v158
  %vm200 = vcmask 523264
  %v202 = vsel %vm200, %v77, 0
  %204 = vmatprep.subr.bf16.mxu0 0
  %205 = vmatpush1.bf16.msra.mxu0 %v167
  %206 = vmatprep.subr.bf16.mxu0 0
  %207 = vmatpush1.bf16.msra.mxu0 %v166
  %208 = vmatprep.subr.bf16.mxu0 0
  %209 = vmatpush1.bf16.msra.mxu0 %v165
  %210 = vmatprep.subr.bf16.mxu0 0
  %211 = vmatpush1.bf16.msra.mxu0 %v164
  %212 = vmatprep.subr.bf16.mxu0 0
  %213 = vmatpush1.bf16.msra.mxu0 %v163
  %214 = vmatprep.subr.bf16.mxu0 0
  %215 = vmatpush1.bf16.msra.mxu0 %v162
  %216 = vmatprep.subr.bf16.mxu0 0
  %217 = vmatpush1.bf16.msra.mxu0 %v161
  %218 = vmatprep.subr.bf16.mxu0 0
  %219 = vmatpush1.bf16.msra.mxu0 %v160
  %220 = vmatprep.subr.bf16.mxu0 0
  %221 = vmatpush2.bf16.msra.mxu0 %v175
  %222 = vmatprep.subr.bf16.mxu0 0
  %223 = vmatpush2.bf16.msra.mxu0 %v174
  %224 = vmatprep.subr.bf16.mxu0 0
  %225 = vmatpush2.bf16.msra.mxu0 %v173
  %226 = vmatprep.subr.bf16.mxu0 0
  %227 = vmatpush2.bf16.msra.mxu0 %v172
  %228 = vmatprep.subr.bf16.mxu0 0
  %229 = vmatpush2.bf16.msra.mxu0 %v171
  %230 = vmatprep.subr.bf16.mxu0 0
  %231 = vmatpush2.bf16.msra.mxu0 %v170
  %232 = vmatprep.subr.bf16.mxu0 0
  %233 = vmatpush2.bf16.msra.mxu0 %v169
  %234 = vmatprep.subr.bf16.mxu0 0
  %235 = vmatpush2.bf16.msra.mxu0 %v168
  %236 = vmatprep.mubr.bf16.mxu0 %v76
  %237 = vmatmul.mubr.bf16.gmra.mxu0 %v75
  %v238 = vpop.f32.mrf.mxu0
  %v239 = vadd.f32 %v68, %v238
  %v240 = vpop.f32.mrf.mxu0
  %v241 = vpop.f32.mrf.mxu0
  %v242 = vpop.f32.mrf.mxu0
  %243 = vdwg.mxu0
  %244 = vmatprep.subr.bf16.mxu0 0
  %245 = vmatpush1.bf16.msra.mxu0 0
  %246 = vmatprep.subr.bf16.mxu0 0
  %247 = vmatpush1.bf16.msra.mxu0 0
  %248 = vmatprep.subr.bf16.mxu0 0
  %249 = vmatpush1.bf16.msra.mxu0 0
  %250 = vmatprep.subr.bf16.mxu0 0
  %251 = vmatpush1.bf16.msra.mxu0 0
  %252 = vmatprep.subr.bf16.mxu0 0
  %253 = vmatpush1.bf16.msra.mxu0 %v179
  %254 = vmatprep.subr.bf16.mxu0 0
  %255 = vmatpush1.bf16.msra.mxu0 %v178
  %256 = vmatprep.subr.bf16.mxu0 0
  %257 = vmatpush1.bf16.msra.mxu0 %v177
  %258 = vmatprep.subr.bf16.mxu0 0
  %259 = vmatpush1.bf16.msra.mxu0 %v176
  %260 = vmatprep.subr.bf16.mxu0 0
  %261 = vmatpush2.bf16.msra.mxu0 0
  %262 = vmatprep.subr.bf16.mxu0 0
  %263 = vmatpush2.bf16.msra.mxu0 0
  %264 = vmatprep.subr.bf16.mxu0 0
  %265 = vmatpush2.bf16.msra.mxu0 0
  %266 = vmatprep.subr.bf16.mxu0 0
  %267 = vmatpush2.bf16.msra.mxu0 0
  %268 = vmatprep.subr.bf16.mxu0 0
  %269 = vmatpush2.bf16.msra.mxu0 0
  %270 = vmatprep.subr.bf16.mxu0 0
  %271 = vmatpush2.bf16.msra.mxu0 0
  %272 = vmatprep.subr.bf16.mxu0 0
  %273 = vmatpush2.bf16.msra.mxu0 0
  %274 = vmatprep.subr.bf16.mxu0 0
  %275 = vmatpush2.bf16.msra.mxu0 0
  %276 = vmatprep.mubr.bf16.mxu0 0
  %277 = vmatmul.mubr.bf16.gmra.mxu0 %v202
  %v278 = vpop.f32.mrf.mxu0
  %v279 = vadd.f32 %v239, %v278
  %v280 = vpop.f32.mrf.mxu0
  %v281 = vpop.f32.mrf.mxu0
  %v282 = vpop.f32.mrf.mxu0
  %283 = vdwg.mxu0
  %v284 = vmax.f32 %v279, 0.0
  %v285 = vpack.c.bf16 %v284, %v284
  %v286 = vld [vmem:[%s3] sm:$0xf]
  %v287 = vld [vmem:[%s3 + $0x4] sm:$0xf]
  %v288 = vld [vmem:[%s3 + $0x8] sm:$0xf]
  %v289 = vld [vmem:[%s3 + $0xc] sm:$0xf]
  %v290 = vld [vmem:[%s3 + $0x10] sm:$0xf]
  %v291 = vld [vmem:[%s3 + $0x14] sm:$0xf]
  %v292 = vld [vmem:[%s3 + $0x18] sm:$0xf]
  %v293 = vld [vmem:[%s3 + $0x1c] sm:$0xf]
  %v294 = vld [vmem:[%s3 + $0x20] sm:$0xf]
  %v295 = vld [vmem:[%s3 + $0x24] sm:$0xf]
  %v296 = vld [vmem:[%s3 + $0x28] sm:$0xf]
  %v297 = vld [vmem:[%s3 + $0x2c] sm:$0xf]
  %v298 = vld [vmem:[%s3 + $0x30] sm:$0xf]
  %v299 = vld [vmem:[%s3 + $0x34] sm:$0xf]
  %v300 = vld [vmem:[%s3 + $0x38] sm:$0xf]
  %v301 = vld [vmem:[%s3 + $0x3c] sm:$0xf]
  %v302 = vld [vmem:[%s4] sm:$0x1]
  %v304 = vlaneseq
  %v305 = vshrl.u32 %v304, 7
  %v306 = vsub.s32 0, %v305
  %v307 = vrot.slane %v302, %v306
  %v325 = vunpack.c.l.b16 %v286
  %v326 = vunpack.c.l.b16 %v287
  %v327 = vunpack.c.l.b16 %v288
  %v328 = vunpack.c.l.b16 %v289
  %v329 = vunpack.c.l.b16 %v290
  %v330 = vunpack.c.l.b16 %v291
  %v331 = vunpack.c.l.b16 %v292
  %v332 = vunpack.c.l.b16 %v293
  %v333 = vunpack.c.l.b16 %v294
  %v334 = vunpack.c.l.b16 %v295
  %v335 = vunpack.c.l.b16 %v296
  %v336 = vunpack.c.l.b16 %v297
  %v337 = vunpack.c.l.b16 %v298
  %v338 = vunpack.c.l.b16 %v299
  %v339 = vunpack.c.l.b16 %v300
  %v340 = vunpack.c.l.b16 %v301
  %v341 = vpack.c.b16 %v326, %v325
  %v342 = vpack.c.b16 %v328, %v327
  %v343 = vpack.c.b16 %v330, %v329
  %v344 = vpack.c.b16 %v332, %v331
  %v345 = vpack.c.b16 %v334, %v333
  %v346 = vpack.c.b16 %v336, %v335
  %v347 = vpack.c.b16 %v338, %v337
  %v348 = vpack.c.b16 %v340, %v339
  %357 = vmatprep.subr.bf16.mxu0 0
  %358 = vmatpush1.bf16.msra.mxu0 %v348
  %359 = vmatprep.subr.bf16.mxu0 0
  %360 = vmatpush1.bf16.msra.mxu0 %v347
  %361 = vmatprep.subr.bf16.mxu0 0
  %362 = vmatpush1.bf16.msra.mxu0 %v346
  %363 = vmatprep.subr.bf16.mxu0 0
  %364 = vmatpush1.bf16.msra.mxu0 %v345
  %365 = vmatprep.subr.bf16.mxu0 0
  %366 = vmatpush1.bf16.msra.mxu0 %v344
  %367 = vmatprep.subr.bf16.mxu0 0
  %368 = vmatpush1.bf16.msra.mxu0 %v343
  %369 = vmatprep.subr.bf16.mxu0 0
  %370 = vmatpush1.bf16.msra.mxu0 %v342
  %371 = vmatprep.subr.bf16.mxu0 0
  %372 = vmatpush1.bf16.msra.mxu0 %v341
  %373 = vmatprep.subr.bf16.mxu0 0
  %374 = vmatpush2.bf16.msra.mxu0 0
  %375 = vmatprep.subr.bf16.mxu0 0
  %376 = vmatpush2.bf16.msra.mxu0 0
  %377 = vmatprep.subr.bf16.mxu0 0
  %378 = vmatpush2.bf16.msra.mxu0 0
  %379 = vmatprep.subr.bf16.mxu0 0
  %380 = vmatpush2.bf16.msra.mxu0 0
  %381 = vmatprep.subr.bf16.mxu0 0
  %382 = vmatpush2.bf16.msra.mxu0 0
  %383 = vmatprep.subr.bf16.mxu0 0
  %384 = vmatpush2.bf16.msra.mxu0 0
  %385 = vmatprep.subr.bf16.mxu0 0
  %386 = vmatpush2.bf16.msra.mxu0 0
  %387 = vmatprep.subr.bf16.mxu0 0
  %388 = vmatpush2.bf16.msra.mxu0 0
  %389 = vmatprep.mubr.bf16.mxu0 0
  %390 = vmatmul.mubr.bf16.gmra.mxu0 %v285
  %v391 = vpop.f32.mrf.mxu0
  %v392 = vadd.f32 %v307, %v391
  %v393 = vpop.f32.mrf.mxu0
  %v394 = vpop.f32.mrf.mxu0
  %v395 = vpop.f32.mrf.mxu0
  %396 = vdwg.mxu0
  %v397 = vlaneseq
  %v398 = vand.u32 %v397, 127
  %vm399 = vcmp.lt.s32.totalorder %v398, 10
  %v400 = vsel %vm399, %v392, -inf
  %401 = vmax.xlane.f32.xlu0 %v400
  %v402 = vpop.xlane.xlu0 %401
  %v403 = vsub.f32 %v392, %v402
  %v404 = vmul.f32 %v403, 1.442695
  %v405 = vpow.pop %v404
  %v406 = vsel %vm399, %v405, 0.0
  %407 = vadd.xlane.f32.xlu0 %v406
  %v408 = vpop.xlane.xlu0 %407
  %v409 = vlog2.pop %v408
  %v410 = vmul.f32 %v409, 0.6931472
  %v411 = vsub.f32 %v403, %v410
  %412 = vst [vmem:[%s5] sm:$0xff] %v411
  // Predicated region
  $region22: #{stn_forward.13} parent=0 // pred_check
    _
  $region23: #{stn_forward.13} parent=0 // pred_check_branch
    %414 = sbr.rel (0) target = $region25
  $region24: #{stn_forward.13} parent=0 // pred_region
    _
  $region25: #{stn_forward.13} parent=0 // pred_fallthru
    _
  // Predicated region
  $region26: #{stn_forward.13} parent=0 // pred_check
    _
  $region27: #{stn_forward.13} parent=0 // pred_check_branch
    %416 = sbr.rel (0) target = $region29
  $region28: #{stn_forward.13} parent=0 // pred_region
    _
  $region29: #{stn_forward.13} parent=0 // pred_fallthru
    _

</llo_original>
